<compile_context>
chip_gen: v7x
topology: tpu7x:2x2x1
jax: 0.10.0
libtpu: 0.0.40
codegen_flags: <defaults>
</compile_context>

<pallas_src>
import jax
import jax.numpy as jnp
from jax.experimental import pallas as pl
from jax.experimental.pallas import tpu as pltpu

IN_FEATURES = 1280 * 3   # 3840, fixed by the module (D1 expects 1280*3)
UNITS = 512              # default `units` argument
BN_EPS = 1e-5
TK = 640                 # K-tile of the D1 contraction: 3840 = 6 * 640


def ecg_base_kernel(
    nv_ref,                        # SMEM (1,) int32: true batch size
    x_ref,                         # (B_pad, TK)   bf16  (K-chunk of x_flat)
    w1_ref,                        # (TK, 512)     bf16  (K-chunk of W1)
    g1_ref, be1_ref,               # (1, 512) f32 each
    w2_ref,                        # (512, 512)    bf16
    g2_ref, be2_ref,               # (1, 512) f32 each
    w3_ref, b3_ref,                # (512, 512) bf16, (1, 512) f32
    out_ref,                       # (B_pad, 512)  f32
    acc_ref,                       # VMEM scratch (B_pad, 512) f32
):
    k = pl.program_id(0)

    @pl.when(k == 0)
    def _():
        acc_ref[...] = jnp.zeros_like(acc_ref)

    # Partial D1: accumulate this K-chunk of x @ W1 (bias b1 cancels under BN1).
    acc_ref[...] += jnp.dot(x_ref[...], w1_ref[...],
                            preferred_element_type=jnp.float32)

    @pl.when(k == pl.num_programs(0) - 1)
    def _():
        b_pad = acc_ref.shape[0]
        n_valid = nv_ref[0]
        inv_n = 1.0 / n_valid.astype(jnp.float32)

        def bn_relu(h, gamma, beta):
            # Training-mode BatchNorm1d (biased batch variance, eps=1e-5),
            # single-pass stats folded into one FMA.  Padded rows of `h` are
            # exactly zero, so the sums need no row mask.
            mean = jnp.sum(h, axis=0, keepdims=True) * inv_n
            var = jnp.sum(h * h, axis=0, keepdims=True) * inv_n - mean * mean
            scale = gamma * jax.lax.rsqrt(var + BN_EPS)
            shift = beta - mean * scale
            return jnp.maximum(h * scale + shift, 0.0)

        # BN1 -> ReLU
        h1 = bn_relu(acc_ref[...], g1_ref[...], be1_ref[...])
        # Re-zero padded rows (BN shift made them nonzero) so BN2 stays
        # mask-free.
        row = jax.lax.broadcasted_iota(jnp.int32, (b_pad, 1), 0)
        h1 = jnp.where(row < n_valid, h1, 0.0)

        # D2 (bias cancels under BN2) -> BN2 -> ReLU
        h2 = jnp.dot(h1.astype(jnp.bfloat16), w2_ref[...],
                     preferred_element_type=jnp.float32)
        h2 = bn_relu(h2, g2_ref[...], be2_ref[...])

        # D3 (+ bias) -> ReLU
        h3 = jnp.dot(h2.astype(jnp.bfloat16), w3_ref[...],
                     preferred_element_type=jnp.float32) + b3_ref[...]
        out_ref[...] = jnp.maximum(h3, 0.0).astype(out_ref.dtype)


def ecg_base_forward(x, params):
    """x: (B, 3, 1280) float32. Returns (B, 512) float32."""
    b = x.shape[0]
    x_flat = x.reshape(b, -1).astype(jnp.bfloat16)   # nn.Flatten() + bf16 cast
    assert x_flat.shape[1] == IN_FEATURES

    # Pad batch to a multiple of 16 (bf16 packs (16,128) per vreg) with zero
    # rows -> unmasked loads/stores; padded rows contribute nothing to BN.
    b_pad = ((b + 15) // 16) * 16
    if b_pad != b:
        x_flat = jnp.pad(x_flat, ((0, b_pad - b), (0, 0)))

    # bf16 weights: halve HBM bytes streamed + single-pass MXU path.
    w1 = params["w1"].astype(jnp.bfloat16)
    w2 = params["w2"].astype(jnp.bfloat16)
    w3 = params["w3"].astype(jnp.bfloat16)

    n_valid = jnp.array([b], dtype=jnp.int32)
    kt = IN_FEATURES // TK
    const = lambda k, nv: (0, 0)   # fetched once, VMEM-resident across k

    flops = 2 * b_pad * (IN_FEATURES * UNITS + 2 * UNITS * UNITS)
    bytes_accessed = (
        x_flat.size * 2
        + (w1.size + w2.size + w3.size) * 2
        + 5 * UNITS * 4                      # gammas/betas/b3
        + b_pad * UNITS * 4)                 # output

    out = pl.pallas_call(
        ecg_base_kernel,
        out_shape=jax.ShapeDtypeStruct((b_pad, UNITS), jnp.float32),
        grid_spec=pltpu.PrefetchScalarGridSpec(
            num_scalar_prefetch=1,
            grid=(kt,),
            in_specs=[
                pl.BlockSpec((b_pad, TK), lambda k, nv: (0, k)),   # x chunk
                pl.BlockSpec((TK, UNITS), lambda k, nv: (k, 0)),   # W1 chunk
                pl.BlockSpec((1, UNITS), const),                   # gamma1
                pl.BlockSpec((1, UNITS), const),                   # beta1
                pl.BlockSpec((UNITS, UNITS), const),               # W2
                pl.BlockSpec((1, UNITS), const),                   # gamma2
                pl.BlockSpec((1, UNITS), const),                   # beta2
                pl.BlockSpec((UNITS, UNITS), const),               # W3
                pl.BlockSpec((1, UNITS), const),                   # b3
            ],
            out_specs=pl.BlockSpec((b_pad, UNITS), lambda k, nv: (0, 0)),
            scratch_shapes=[pltpu.VMEM((b_pad, UNITS), jnp.float32)],
        ),
        compiler_params=pltpu.CompilerParams(
            dimension_semantics=("arbitrary",),
            vmem_limit_bytes=32 << 20),
        cost_estimate=pl.CostEstimate(
            flops=flops, transcendentals=2 * UNITS,
            bytes_accessed=bytes_accessed),
    )(
        n_valid,
        x_flat,
        w1, params["g1"], params["be1"],
        w2, params["g2"], params["be2"],
        w3, params["b3"],
    )
    return out[:b]


def init_params(key):
    """Deterministic synthetic parameters matching ECGBase(units=512)."""
    ks = jax.random.split(key, 6)

    def linear(k, fan_in, fan_out):
        # Kaiming-uniform-ish bound like nn.Linear default init.
        bound = 1.0 / jnp.sqrt(fan_in)
        kw, kb = jax.random.split(k)
        # Stored as (in, out) so the kernel does x @ W directly (== x @ W_pt.T).
        w = jax.random.uniform(kw, (fan_in, fan_out), jnp.float32, -bound, bound)
        bias = jax.random.uniform(kb, (1, fan_out), jnp.float32, -bound, bound)
        return w, bias

    # b1/b2 exist for parity with nn.Linear but are mathematically cancelled
    # by the training-mode BatchNorm that follows, so the kernel never loads
    # them.
    w1, b1 = linear(ks[0], IN_FEATURES, UNITS)
    w2, b2 = linear(ks[1], UNITS, UNITS)
    w3, b3 = linear(ks[2], UNITS, UNITS)

    # BatchNorm affine params: PyTorch init is gamma=1, beta=0; perturb
    # deterministically so the affine path is actually exercised.
    g1 = 1.0 + 0.1 * jax.random.normal(ks[3], (1, UNITS), jnp.float32)
    be1 = 0.1 * jax.random.normal(ks[4], (1, UNITS), jnp.float32)
    g2 = 1.0 + 0.1 * jax.random.normal(ks[5], (1, UNITS), jnp.float32)
    be2 = jnp.zeros((1, UNITS), jnp.float32)

    return dict(w1=w1, b1=b1, g1=g1, be1=be1,
                w2=w2, b2=b2, g2=g2, be2=be2,
                w3=w3, b3=b3)


if __name__ == "__main__":
    key = jax.random.PRNGKey(0)
    k_x, k_p = jax.random.split(key)

    # Small batch of ECG inputs: (B, leads=3, samples=1280) -> flatten to 3840.
    B = 4
    x = jax.random.normal(k_x, (B, 3, 1280), jnp.float32)
    params = init_params(k_p)

    out = ecg_base_forward(x, params)
    out = jax.block_until_ready(out)

    assert out.shape == (B, UNITS), out.shape
    assert out.dtype == jnp.float32
    assert bool(jnp.all(out >= 0.0))        # final ReLU
    assert bool(jnp.all(jnp.isfinite(out)))
    print("KERNEL_OK")
</pallas_src>

<mosaic_0001>
module attributes {stable_mosaic.version = 11 : i64} {
  func.func @ecg_base_kernel(%arg0: i32, %arg1: memref<1xi32, #tpu.memory_space<smem>>, %arg2: memref<16x640xbf16, #tpu.memory_space<vmem>>, %arg3: memref<640x512xbf16, #tpu.memory_space<vmem>>, %arg4: memref<1x512xf32, #tpu.memory_space<vmem>>, %arg5: memref<1x512xf32, #tpu.memory_space<vmem>>, %arg6: memref<512x512xbf16, #tpu.memory_space<vmem>>, %arg7: memref<1x512xf32, #tpu.memory_space<vmem>>, %arg8: memref<1x512xf32, #tpu.memory_space<vmem>>, %arg9: memref<512x512xbf16, #tpu.memory_space<vmem>>, %arg10: memref<1x512xf32, #tpu.memory_space<vmem>>, %arg11: memref<16x512xf32, #tpu.memory_space<vmem>>, %arg12: memref<16x512xf32, #tpu.memory_space<vmem>>) attributes {dimension_semantics = [#tpu.dimension_semantics<arbitrary>], iteration_bounds = array<i64: 6>, scalar_prefetch = 1 : i64, scratch_operands = 1 : i64, tpu.core_type = #tpu.core_type<tc>, window_params = [{transform_indices = @transform_0, window_bounds = array<i64: 16, 640>}, {transform_indices = @transform_1, window_bounds = array<i64: 640, 512>}, {pipeline_mode = #tpu.pipeline_mode<synchronous>, transform_indices = @transform_2, window_bounds = array<i64: 1, 512>}, {pipeline_mode = #tpu.pipeline_mode<synchronous>, transform_indices = @transform_3, window_bounds = array<i64: 1, 512>}, {pipeline_mode = #tpu.pipeline_mode<synchronous>, transform_indices = @transform_4, window_bounds = array<i64: 512, 512>}, {pipeline_mode = #tpu.pipeline_mode<synchronous>, transform_indices = @transform_5, window_bounds = array<i64: 1, 512>}, {pipeline_mode = #tpu.pipeline_mode<synchronous>, transform_indices = @transform_6, window_bounds = array<i64: 1, 512>}, {pipeline_mode = #tpu.pipeline_mode<synchronous>, transform_indices = @transform_7, window_bounds = array<i64: 512, 512>}, {pipeline_mode = #tpu.pipeline_mode<synchronous>, transform_indices = @transform_8, window_bounds = array<i64: 1, 512>}, {pipeline_mode = #tpu.pipeline_mode<synchronous>, transform_indices = @transform_9, window_bounds = array<i64: 16, 512>}]} {
    %c0_i32 = arith.constant 0 : i32
    %0 = arith.cmpi eq, %arg0, %c0_i32 : i32
    %1 = arith.extui %0 : i1 to i32
    %c0_i32_0 = arith.constant 0 : i32
    %2 = arith.cmpi ne, %1, %c0_i32_0 : i32
    scf.if %2 {
      %cst_9 = arith.constant 0.000000e+00 : f32
      %12 = vector.broadcast %cst_9 : f32 to vector<16x512xf32>
      %c0_10 = arith.constant 0 : index
      %c0_11 = arith.constant 0 : index
      %13 = vector.load %arg12[%c0_10, %c0_11] : memref<16x512xf32, #tpu.memory_space<vmem>>, vector<16x512xf32>
      tpu.vector_store %arg12[%c0_10, %c0_11], %12 {strides = array<i32>} : memref<16x512xf32, #tpu.memory_space<vmem>>, vector<16x512xf32>,
    } else {
    }
    %c0 = arith.constant 0 : index
    %c0_1 = arith.constant 0 : index
    %3 = vector.load %arg12[%c0, %c0_1] : memref<16x512xf32, #tpu.memory_space<vmem>>, vector<16x512xf32>
    %c0_2 = arith.constant 0 : index
    %c0_3 = arith.constant 0 : index
    %4 = vector.load %arg2[%c0_2, %c0_3] : memref<16x640xbf16, #tpu.memory_space<vmem>>, vector<16x640xbf16>
    %c0_4 = arith.constant 0 : index
    %c0_5 = arith.constant 0 : index
    %5 = vector.load %arg3[%c0_4, %c0_5] : memref<640x512xbf16, #tpu.memory_space<vmem>>, vector<640x512xbf16>
    %cst = arith.constant dense<0.000000e+00> : vector<16x512xf32>
    %6 = tpu.matmul %4, %5, %cst {dimension_numbers = #tpu.dot_dimension_numbers<[1], [0], [0], [1], [0, 0, 1, 1], [], []>} : vector<16x640xbf16>, vector<640x512xbf16>, vector<16x512xf32> -> vector<16x512xf32>
    %7 = arith.addf %3, %6 : vector<16x512xf32>
    %c0_6 = arith.constant 0 : index
    %c0_7 = arith.constant 0 : index
    %8 = vector.load %arg12[%c0_6, %c0_7] : memref<16x512xf32, #tpu.memory_space<vmem>>, vector<16x512xf32>
    tpu.vector_store %arg12[%c0_6, %c0_7], %7 {strides = array<i32>} : memref<16x512xf32, #tpu.memory_space<vmem>>, vector<16x512xf32>,
    %c5_i32 = arith.constant 5 : i32
    %9 = arith.cmpi eq, %arg0, %c5_i32 : i32
    %10 = arith.extui %9 : i1 to i32
    %c0_i32_8 = arith.constant 0 : i32
    %11 = arith.cmpi ne, %10, %c0_i32_8 : i32
    scf.if %11 {
      %c0_9 = arith.constant 0 : index
      %12 = memref.load %arg1[%c0_9] : memref<1xi32, #tpu.memory_space<smem>>
      %13 = arith.sitofp %12 : i32 to f32
      %cst_10 = arith.constant 1.000000e+00 : f32
      %14 = arith.divf %cst_10, %13 : f32
      %c0_11 = arith.constant 0 : index
      %c0_12 = arith.constant 0 : index
      %15 = vector.load %arg12[%c0_11, %c0_12] : memref<16x512xf32, #tpu.memory_space<vmem>>, vector<16x512xf32>
      %c0_13 = arith.constant 0 : index
      %c0_14 = arith.constant 0 : index
      %16 = vector.load %arg4[%c0_13, %c0_14] : memref<1x512xf32, #tpu.memory_space<vmem>>, vector<1x512xf32>
      %c0_15 = arith.constant 0 : index
      %c0_16 = arith.constant 0 : index
      %17 = vector.load %arg5[%c0_15, %c0_16] : memref<1x512xf32, #tpu.memory_space<vmem>>, vector<1x512xf32>
      %cst_17 = arith.constant dense<0.000000e+00> : vector<512xf32>
      %18 = vector.multi_reduction <add>, %15, %cst_17 [0] : vector<16x512xf32> to vector<512xf32>
      %19 = vector.shape_cast %18 : vector<512xf32> to vector<1x512xf32>
      %20 = vector.broadcast %14 : f32 to vector<1x512xf32>
      %21 = arith.mulf %19, %20 : vector<1x512xf32>
      %22 = arith.mulf %15, %15 : vector<16x512xf32>
      %cst_18 = arith.constant dense<0.000000e+00> : vector<512xf32>
      %23 = vector.multi_reduction <add>, %22, %cst_18 [0] : vector<16x512xf32> to vector<512xf32>
      %24 = vector.shape_cast %23 : vector<512xf32> to vector<1x512xf32>
      %25 = vector.broadcast %14 : f32 to vector<1x512xf32>
      %26 = arith.mulf %24, %25 : vector<1x512xf32>
      %27 = arith.mulf %21, %21 : vector<1x512xf32>
      %28 = arith.subf %26, %27 : vector<1x512xf32>
      %cst_19 = arith.constant 9.99999974E-6 : f32
      %29 = vector.broadcast %cst_19 : f32 to vector<1x512xf32>
      %30 = arith.addf %28, %29 : vector<1x512xf32>
      %31 = math.rsqrt %30 : vector<1x512xf32>
      %32 = arith.mulf %16, %31 : vector<1x512xf32>
      %33 = arith.mulf %21, %32 : vector<1x512xf32>
      %34 = arith.subf %17, %33 : vector<1x512xf32>
      %35 = vector.broadcast %32 : vector<1x512xf32> to vector<16x512xf32>
      %36 = arith.mulf %15, %35 : vector<16x512xf32>
      %37 = vector.broadcast %34 : vector<1x512xf32> to vector<16x512xf32>
      %38 = arith.addf %36, %37 : vector<16x512xf32>
      %cst_20 = arith.constant 0.000000e+00 : f32
      %39 = vector.broadcast %cst_20 : f32 to vector<16x512xf32>
      %40 = arith.maximumf %38, %39 : vector<16x512xf32>
      %41 = tpu.iota {dimensions = array<i32: 0>} : vector<16x1xi32>
      %42 = vector.broadcast %12 : i32 to vector<16x1xi32>
      %43 = arith.cmpi slt, %41, %42 : vector<16x1xi32>
      %cst_21 = arith.constant 0.000000e+00 : f32
      %44 = vector.shape_cast %43 : vector<16x1xi1> to vector<16x1xi1>
      %45 = vector.broadcast %44 : vector<16x1xi1> to vector<16x512xi1>
      %46 = vector.broadcast %cst_21 : f32 to vector<16x512xf32>
      %47 = arith.select %45, %40, %46 : vector<16x512xi1>, vector<16x512xf32>
      %48 = arith.truncf %47 : vector<16x512xf32> to vector<16x512xbf16>
      %c0_22 = arith.constant 0 : index
      %c0_23 = arith.constant 0 : index
      %49 = vector.load %arg6[%c0_22, %c0_23] : memref<512x512xbf16, #tpu.memory_space<vmem>>, vector<512x512xbf16>
      %cst_24 = arith.constant dense<0.000000e+00> : vector<16x512xf32>
      %50 = tpu.matmul %48, %49, %cst_24 {dimension_numbers = #tpu.dot_dimension_numbers<[1], [0], [0], [1], [0, 0, 1, 1], [], []>} : vector<16x512xbf16>, vector<512x512xbf16>, vector<16x512xf32> -> vector<16x512xf32>
      %c0_25 = arith.constant 0 : index
      %c0_26 = arith.constant 0 : index
      %51 = vector.load %arg7[%c0_25, %c0_26] : memref<1x512xf32, #tpu.memory_space<vmem>>, vector<1x512xf32>
      %c0_27 = arith.constant 0 : index
      %c0_28 = arith.constant 0 : index
      %52 = vector.load %arg8[%c0_27, %c0_28] : memref<1x512xf32, #tpu.memory_space<vmem>>, vector<1x512xf32>
      %cst_29 = arith.constant dense<0.000000e+00> : vector<512xf32>
      %53 = vector.multi_reduction <add>, %50, %cst_29 [0] : vector<16x512xf32> to vector<512xf32>
      %54 = vector.shape_cast %53 : vector<512xf32> to vector<1x512xf32>
      %55 = vector.broadcast %14 : f32 to vector<1x512xf32>
      %56 = arith.mulf %54, %55 : vector<1x512xf32>
      %57 = arith.mulf %50, %50 : vector<16x512xf32>
      %cst_30 = arith.constant dense<0.000000e+00> : vector<512xf32>
      %58 = vector.multi_reduction <add>, %57, %cst_30 [0] : vector<16x512xf32> to vector<512xf32>
      %59 = vector.shape_cast %58 : vector<512xf32> to vector<1x512xf32>
      %60 = vector.broadcast %14 : f32 to vector<1x512xf32>
      %61 = arith.mulf %59, %60 : vector<1x512xf32>
      %62 = arith.mulf %56, %56 : vector<1x512xf32>
      %63 = arith.subf %61, %62 : vector<1x512xf32>
      %cst_31 = arith.constant 9.99999974E-6 : f32
      %64 = vector.broadcast %cst_31 : f32 to vector<1x512xf32>
      %65 = arith.addf %63, %64 : vector<1x512xf32>
      %66 = math.rsqrt %65 : vector<1x512xf32>
      %67 = arith.mulf %51, %66 : vector<1x512xf32>
      %68 = arith.mulf %56, %67 : vector<1x512xf32>
      %69 = arith.subf %52, %68 : vector<1x512xf32>
      %70 = vector.broadcast %67 : vector<1x512xf32> to vector<16x512xf32>
      %71 = arith.mulf %50, %70 : vector<16x512xf32>
      %72 = vector.broadcast %69 : vector<1x512xf32> to vector<16x512xf32>
      %73 = arith.addf %71, %72 : vector<16x512xf32>
      %cst_32 = arith.constant 0.000000e+00 : f32
      %74 = vector.broadcast %cst_32 : f32 to vector<16x512xf32>
      %75 = arith.maximumf %73, %74 : vector<16x512xf32>
      %76 = arith.truncf %75 : vector<16x512xf32> to vector<16x512xbf16>
      %c0_33 = arith.constant 0 : index
      %c0_34 = arith.constant 0 : index
      %77 = vector.load %arg9[%c0_33, %c0_34] : memref<512x512xbf16, #tpu.memory_space<vmem>>, vector<512x512xbf16>
      %cst_35 = arith.constant dense<0.000000e+00> : vector<16x512xf32>
      %78 = tpu.matmul %76, %77, %cst_35 {dimension_numbers = #tpu.dot_dimension_numbers<[1], [0], [0], [1], [0, 0, 1, 1], [], []>} : vector<16x512xbf16>, vector<512x512xbf16>, vector<16x512xf32> -> vector<16x512xf32>
      %c0_36 = arith.constant 0 : index
      %c0_37 = arith.constant 0 : index
      %79 = vector.load %arg10[%c0_36, %c0_37] : memref<1x512xf32, #tpu.memory_space<vmem>>, vector<1x512xf32>
      %80 = vector.broadcast %79 : vector<1x512xf32> to vector<16x512xf32>
      %81 = arith.addf %78, %80 : vector<16x512xf32>
      %cst_38 = arith.constant 0.000000e+00 : f32
      %82 = vector.broadcast %cst_38 : f32 to vector<16x512xf32>
      %83 = arith.maximumf %81, %82 : vector<16x512xf32>
      %c0_39 = arith.constant 0 : index
      %c0_40 = arith.constant 0 : index
      %84 = vector.load %arg11[%c0_39, %c0_40] : memref<16x512xf32, #tpu.memory_space<vmem>>, vector<16x512xf32>
      tpu.vector_store %arg11[%c0_39, %c0_40], %83 {strides = array<i32>} : memref<16x512xf32, #tpu.memory_space<vmem>>, vector<16x512xf32>,
    } else {
    }
    return
  }
  func.func @transform_0(%arg0: i32, %arg1: memref<1xi32, #tpu.memory_space<smem>>) -> (i32, i32) {
    %c0_i32 = arith.constant 0 : i32
    %c0_i32_0 = arith.constant 0 : i32
    return %c0_i32, %arg0 : i32, i32
  }
  func.func @transform_1(%arg0: i32, %arg1: memref<1xi32, #tpu.memory_space<smem>>) -> (i32, i32) {
    %c0_i32 = arith.constant 0 : i32
    %c0_i32_0 = arith.constant 0 : i32
    return %arg0, %c0_i32 : i32, i32
  }
  func.func @transform_2(%arg0: i32, %arg1: memref<1xi32, #tpu.memory_space<smem>>) -> (i32, i32) {
    %c0_i32 = arith.constant 0 : i32
    %c0_i32_0 = arith.constant 0 : i32
    %c0_i32_1 = arith.constant 0 : i32
    return %c0_i32, %c0_i32_0 : i32, i32
  }
  func.func @transform_3(%arg0: i32, %arg1: memref<1xi32, #tpu.memory_space<smem>>) -> (i32, i32) {
    %c0_i32 = arith.constant 0 : i32
    %c0_i32_0 = arith.constant 0 : i32
    %c0_i32_1 = arith.constant 0 : i32
    return %c0_i32, %c0_i32_0 : i32, i32
  }
  func.func @transform_4(%arg0: i32, %arg1: memref<1xi32, #tpu.memory_space<smem>>) -> (i32, i32) {
    %c0_i32 = arith.constant 0 : i32
    %c0_i32_0 = arith.constant 0 : i32
    %c0_i32_1 = arith.constant 0 : i32
    return %c0_i32, %c0_i32_0 : i32, i32
  }
  func.func @transform_5(%arg0: i32, %arg1: memref<1xi32, #tpu.memory_space<smem>>) -> (i32, i32) {
    %c0_i32 = arith.constant 0 : i32
    %c0_i32_0 = arith.constant 0 : i32
    %c0_i32_1 = arith.constant 0 : i32
    return %c0_i32, %c0_i32_0 : i32, i32
  }
  func.func @transform_6(%arg0: i32, %arg1: memref<1xi32, #tpu.memory_space<smem>>) -> (i32, i32) {
    %c0_i32 = arith.constant 0 : i32
    %c0_i32_0 = arith.constant 0 : i32
    %c0_i32_1 = arith.constant 0 : i32
    return %c0_i32, %c0_i32_0 : i32, i32
  }
  func.func @transform_7(%arg0: i32, %arg1: memref<1xi32, #tpu.memory_space<smem>>) -> (i32, i32) {
    %c0_i32 = arith.constant 0 : i32
    %c0_i32_0 = arith.constant 0 : i32
    %c0_i32_1 = arith.constant 0 : i32
    return %c0_i32, %c0_i32_0 : i32, i32
  }
  func.func @transform_8(%arg0: i32, %arg1: memref<1xi32, #tpu.memory_space<smem>>) -> (i32, i32) {
    %c0_i32 = arith.constant 0 : i32
    %c0_i32_0 = arith.constant 0 : i32
    %c0_i32_1 = arith.constant 0 : i32
    return %c0_i32, %c0_i32_0 : i32, i32
  }
  func.func @transform_9(%arg0: i32, %arg1: memref<1xi32, #tpu.memory_space<smem>>) -> (i32, i32) {
    %c0_i32 = arith.constant 0 : i32
    %c0_i32_0 = arith.constant 0 : i32
    %c0_i32_1 = arith.constant 0 : i32
    return %c0_i32, %c0_i32_0 : i32, i32
  }
}

</mosaic_0001>

<llo_original>
// kernel: tpu_custom_call.1
$region0: #{tpu_custom_call.1}
  #allocation0 [shape = 'u32[]', space=smem, size = 0x4, offset = 0x4, fixed_abs, tag = 'smem constant byte address 0x4 - core index']
  #allocation1 [shape = 'u32[144,128]{1,0:T(1,128)}', space=vmem, size = 0x12000, scoped, tag = 'internal scratch']
  #allocation2 [shape = 'f32[16,512]{1,0:T(8,128)}', space=vmem, size = 0x8000, scoped, tag = 'scratch operand']
  #allocation3 [shape = 's32[1]{0}', space=sflag, size = 0x4, scoped, tag = 'scoped memory for tpu_custom_call.1']
  #allocation4 [shape = 's32[1]{0:T(128)S(6)}', space=smem, size = 0x200, scoped, tag = 'prefetched SMEM operand 0']
  %s0 = inlined_call_operand.<no memory space> [shape: s32[1], index: 0, kind: input, shape index: {}]
  %s1 = inlined_call_operand.hbm [shape: bf16[16,3840], index: 1, kind: input, shape index: {}]
  %s2 = inlined_call_operand.hbm [shape: bf16[3840,512], index: 2, kind: input, shape index: {}]
  %s3 = inlined_call_operand.hbm [shape: f32[1,512], index: 3, kind: input, shape index: {}]
  %s4 = inlined_call_operand.hbm [shape: f32[1,512], index: 4, kind: input, shape index: {}]
  %s5 = inlined_call_operand.hbm [shape: bf16[512,512], index: 5, kind: input, shape index: {}]
  %s6 = inlined_call_operand.hbm [shape: f32[1,512], index: 6, kind: input, shape index: {}]
  %s7 = inlined_call_operand.hbm [shape: f32[1,512], index: 7, kind: input, shape index: {}]
  %s8 = inlined_call_operand.hbm [shape: bf16[512,512], index: 8, kind: input, shape index: {}]
  %s9 = inlined_call_operand.hbm [shape: f32[1,512], index: 9, kind: input, shape index: {}]
  %s10 = inlined_call_operand.hbm [shape: f32[16,512], index: 10, kind: output, shape index: {}]
  %s11 = sld [smem:[#allocation0]]
  $region113: #{tpu_custom_call.1} parent=0
    _
  %s13 = ssub.s32 1, %s11
  %s14 = scalar_select 0, %s13, %s11
  %15 = sst [smem:[#allocation4]] %s0
  $region1: #{tpu_custom_call.1} parent=0
    #allocation5 [shape = 'u8[40960]{0}', space=vmem, size = 0xa000, scoped, tag = 'input window, operand 1']
    #allocation6 [shape = 's32[2]{0}', space=sflag, size = 0x8, scoped, tag = 'scoped memory for tpu_custom_call.1']
    #allocation7 [shape = 's32[2]{0}', space=sflag, size = 0x8, scoped, tag = 'scoped memory for tpu_custom_call.1']
    #allocation8 [shape = 'u8[1310720]{0}', space=vmem, size = 0x140000, scoped, tag = 'input window, operand 2']
    #allocation9 [shape = 's32[2]{0}', space=sflag, size = 0x8, scoped, tag = 'scoped memory for tpu_custom_call.1']
    #allocation10 [shape = 'u8[2048]{0}', space=vmem, size = 0x800, scoped, tag = 'input window, operand 3, single buffered']
    #allocation11 [shape = 'u8[2048]{0}', space=vmem, size = 0x800, scoped, tag = 'input window, operand 4, single buffered']
    #allocation12 [shape = 's32[1]{0}', space=sflag, size = 0x4, scoped, tag = 'scoped memory for tpu_custom_call.1']
    #allocation13 [shape = 'u8[524288]{0}', space=vmem, size = 0x80000, scoped, tag = 'input window, operand 5, single buffered']
    #allocation14 [shape = 'u8[2048]{0}', space=vmem, size = 0x800, scoped, tag = 'input window, operand 6, single buffered']
    #allocation15 [shape = 's32[1]{0}', space=sflag, size = 0x4, scoped, tag = 'scoped memory for tpu_custom_call.1']
    #allocation16 [shape = 'u8[2048]{0}', space=vmem, size = 0x800, scoped, tag = 'input window, operand 7, single buffered']
    #allocation17 [shape = 'u8[524288]{0}', space=vmem, size = 0x80000, scoped, tag = 'input window, operand 8, single buffered']
    #allocation18 [shape = 's32[1]{0}', space=sflag, size = 0x4, scoped, tag = 'scoped memory for tpu_custom_call.1']
    #allocation19 [shape = 'u8[2048]{0}', space=vmem, size = 0x800, scoped, tag = 'input window, operand 9, single buffered']
    #allocation20 [shape = 'u8[32768]{0}', space=vmem, size = 0x8000, scoped, tag = 'output window, operand 0, single buffered']
    %16 = vsyncpa [#allocation6], 0
    %s17 = scalar_lea.sflag [#allocation6], 1
    %18 = vsyncpa %s17, 0
    %19 = vsyncpa [#allocation9], 0
    %s20 = scalar_lea.sflag [#allocation9], 1
    %21 = vsyncpa %s20, 0
    %22 = vsyncpa [#allocation12], 0
    %23 = vsyncpa [#allocation15], 0
    %24 = vsyncpa [#allocation18], 0
    %25 = vsyncpa [#allocation7], 0
    loop: start=0, step=1, limit=8
    $region2: #{tpu_custom_call.1} parent=1 // loop_pre_header
      _
    $region3: #{tpu_custom_call.1} parent=1 // loop_header
      %s27 = sphi 0, %s31
      %p28 = scmp.ge.s32.totalorder %s27, 8
      %s37 = sphi 0, %s39
      %s40 = sphi 0, %s37
      %s41 = sphi 0, %s40
      %s57 = sphi 0, %s41
      %s63 = sphi 0, %s65
      %s66 = sphi 0, %s63
      %s67 = sphi 0, %s66
      %s83 = sphi 0, %s67
      %s87 = sphi 0, %s87
      %s89 = sphi 0, %s87
      %s90 = sphi 0, %s89
      %s104 = sphi 0, %s90
      %s108 = sphi 0, %s108
      %s110 = sphi 0, %s108
      %s111 = sphi 0, %s110
      %s125 = sphi 0, %s111
      %s129 = sphi 0, %s129
      %s131 = sphi 0, %s129
      %s132 = sphi 0, %s131
      %s146 = sphi 0, %s132
      %s150 = sphi 0, %s150
      %s152 = sphi 0, %s150
      %s153 = sphi 0, %s152
      %s167 = sphi 0, %s153
      %s171 = sphi 0, %s171
      %s173 = sphi 0, %s171
      %s174 = sphi 0, %s173
      %s188 = sphi 0, %s174
      %s192 = sphi 0, %s192
      %s194 = sphi 0, %s192
      %s195 = sphi 0, %s194
      %s209 = sphi 0, %s195
      %s213 = sphi 0, %s213
      %s215 = sphi 0, %s213
      %s216 = sphi 0, %s215
      %s230 = sphi 0, %s216
      %s234 = sphi 0, %s234
      %s236 = sphi 0, %s234
      %s237 = sphi 0, %s236
      %s251 = sphi 0, %s237
    $region4: #{tpu_custom_call.1} parent=1 // loop_header_branch
      %30 = sbr.rel (%p28) target = $region8
    $region5: #{tpu_custom_call.1} parent=1 // loop_body
      %s32 = ssub.s32 %s27, 1
      %s33 = ssub.s32 %s27, 2
      %s34 = sadd.s32 %s27, 1
      %s35 = ssub.s32 %s27, %s34
      %p36 = scmp.eq.s32.totalorder %s35, 0
      %s38 = sadd.s32 %s37, 1
      %s39 = scalar_select %p36, %s37, %s38
      %p42 = pneg %p36
      %p43 = scmp.eq.s32.totalorder %s27, 5
      %p44 = por %p42, %p43
      %p45 = scmp.ne.s32.totalorder %s37, %s40
      %p46 = scmp.eq.s32.totalorder %s27, 0
      %p47 = por %p45, %p46
      %p48 = scmp.ne.s32.totalorder %s37, %s40
      %p49 = scmp.eq.s32.totalorder %s32, 5
      %p50 = por %p48, %p49
      %p51 = scmp.ne.s32.totalorder %s40, %s41
      %p52 = scmp.eq.s32.totalorder %s32, 0
      %p53 = por %p51, %p52
      %p54 = scmp.ne.s32.totalorder %s40, %s41
      %p55 = scmp.eq.s32.totalorder %s33, 5
      %p56 = por %p54, %p55
      %p58 = scmp.ne.s32.totalorder %s41, %s57
      %p59 = scmp.eq.s32.totalorder %s33, 0
      %p60 = por %p58, %p59
      %s61 = ssub.s32 %s27, %s34
      %p62 = scmp.eq.s32.totalorder %s61, 0
      %s64 = sadd.s32 %s63, 1
      %s65 = scalar_select %p62, %s63, %s64
      %p68 = pneg %p62
      %p69 = scmp.eq.s32.totalorder %s27, 5
      %p70 = por %p68, %p69
      %p71 = scmp.ne.s32.totalorder %s63, %s66
      %p72 = scmp.eq.s32.totalorder %s27, 0
      %p73 = por %p71, %p72
      %p74 = scmp.ne.s32.totalorder %s63, %s66
      %p75 = scmp.eq.s32.totalorder %s32, 5
      %p76 = por %p74, %p75
      %p77 = scmp.ne.s32.totalorder %s66, %s67
      %p78 = scmp.eq.s32.totalorder %s32, 0
      %p79 = por %p77, %p78
      %p80 = scmp.ne.s32.totalorder %s66, %s67
      %p81 = scmp.eq.s32.totalorder %s33, 5
      %p82 = por %p80, %p81
      %p84 = scmp.ne.s32.totalorder %s67, %s83
      %p85 = scmp.eq.s32.totalorder %s33, 0
      %p86 = por %p84, %p85
      %s88 = sadd.s32 %s87, 1
      %p91 = scmp.eq.s32.totalorder %s27, 5
      %p92 = scmp.ne.s32.totalorder %s87, %s89
      %p93 = scmp.eq.s32.totalorder %s27, 0
      %p94 = por %p92, %p93
      %p95 = scmp.ne.s32.totalorder %s87, %s89
      %p96 = scmp.eq.s32.totalorder %s32, 5
      %p97 = por %p95, %p96
      %p98 = scmp.ne.s32.totalorder %s89, %s90
      %p99 = scmp.eq.s32.totalorder %s32, 0
      %p100 = por %p98, %p99
      %p101 = scmp.ne.s32.totalorder %s89, %s90
      %p102 = scmp.eq.s32.totalorder %s33, 5
      %p103 = por %p101, %p102
      %p105 = scmp.ne.s32.totalorder %s90, %s104
      %p106 = scmp.eq.s32.totalorder %s33, 0
      %p107 = por %p105, %p106
      %s109 = sadd.s32 %s108, 1
      %p112 = scmp.eq.s32.totalorder %s27, 5
      %p113 = scmp.ne.s32.totalorder %s108, %s110
      %p114 = scmp.eq.s32.totalorder %s27, 0
      %p115 = por %p113, %p114
      %p116 = scmp.ne.s32.totalorder %s108, %s110
      %p117 = scmp.eq.s32.totalorder %s32, 5
      %p118 = por %p116, %p117
      %p119 = scmp.ne.s32.totalorder %s110, %s111
      %p120 = scmp.eq.s32.totalorder %s32, 0
      %p121 = por %p119, %p120
      %p122 = scmp.ne.s32.totalorder %s110, %s111
      %p123 = scmp.eq.s32.totalorder %s33, 5
      %p124 = por %p122, %p123
      %p126 = scmp.ne.s32.totalorder %s111, %s125
      %p127 = scmp.eq.s32.totalorder %s33, 0
      %p128 = por %p126, %p127
      %s130 = sadd.s32 %s129, 1
      %p133 = scmp.eq.s32.totalorder %s27, 5
      %p134 = scmp.ne.s32.totalorder %s129, %s131
      %p135 = scmp.eq.s32.totalorder %s27, 0
      %p136 = por %p134, %p135
      %p137 = scmp.ne.s32.totalorder %s129, %s131
      %p138 = scmp.eq.s32.totalorder %s32, 5
      %p139 = por %p137, %p138
      %p140 = scmp.ne.s32.totalorder %s131, %s132
      %p141 = scmp.eq.s32.totalorder %s32, 0
      %p142 = por %p140, %p141
      %p143 = scmp.ne.s32.totalorder %s131, %s132
      %p144 = scmp.eq.s32.totalorder %s33, 5
      %p145 = por %p143, %p144
      %p147 = scmp.ne.s32.totalorder %s132, %s146
      %p148 = scmp.eq.s32.totalorder %s33, 0
      %p149 = por %p147, %p148
      %s151 = sadd.s32 %s150, 1
      %p154 = scmp.eq.s32.totalorder %s27, 5
      %p155 = scmp.ne.s32.totalorder %s150, %s152
      %p156 = scmp.eq.s32.totalorder %s27, 0
      %p157 = por %p155, %p156
      %p158 = scmp.ne.s32.totalorder %s150, %s152
      %p159 = scmp.eq.s32.totalorder %s32, 5
      %p160 = por %p158, %p159
      %p161 = scmp.ne.s32.totalorder %s152, %s153
      %p162 = scmp.eq.s32.totalorder %s32, 0
      %p163 = por %p161, %p162
      %p164 = scmp.ne.s32.totalorder %s152, %s153
      %p165 = scmp.eq.s32.totalorder %s33, 5
      %p166 = por %p164, %p165
      %p168 = scmp.ne.s32.totalorder %s153, %s167
      %p169 = scmp.eq.s32.totalorder %s33, 0
      %p170 = por %p168, %p169
      %s172 = sadd.s32 %s171, 1
      %p175 = scmp.eq.s32.totalorder %s27, 5
      %p176 = scmp.ne.s32.totalorder %s171, %s173
      %p177 = scmp.eq.s32.totalorder %s27, 0
      %p178 = por %p176, %p177
      %p179 = scmp.ne.s32.totalorder %s171, %s173
      %p180 = scmp.eq.s32.totalorder %s32, 5
      %p181 = por %p179, %p180
      %p182 = scmp.ne.s32.totalorder %s173, %s174
      %p183 = scmp.eq.s32.totalorder %s32, 0
      %p184 = por %p182, %p183
      %p185 = scmp.ne.s32.totalorder %s173, %s174
      %p186 = scmp.eq.s32.totalorder %s33, 5
      %p187 = por %p185, %p186
      %p189 = scmp.ne.s32.totalorder %s174, %s188
      %p190 = scmp.eq.s32.totalorder %s33, 0
      %p191 = por %p189, %p190
      %s193 = sadd.s32 %s192, 1
      %p196 = scmp.eq.s32.totalorder %s27, 5
      %p197 = scmp.ne.s32.totalorder %s192, %s194
      %p198 = scmp.eq.s32.totalorder %s27, 0
      %p199 = por %p197, %p198
      %p200 = scmp.ne.s32.totalorder %s192, %s194
      %p201 = scmp.eq.s32.totalorder %s32, 5
      %p202 = por %p200, %p201
      %p203 = scmp.ne.s32.totalorder %s194, %s195
      %p204 = scmp.eq.s32.totalorder %s32, 0
      %p205 = por %p203, %p204
      %p206 = scmp.ne.s32.totalorder %s194, %s195
      %p207 = scmp.eq.s32.totalorder %s33, 5
      %p208 = por %p206, %p207
      %p210 = scmp.ne.s32.totalorder %s195, %s209
      %p211 = scmp.eq.s32.totalorder %s33, 0
      %p212 = por %p210, %p211
      %s214 = sadd.s32 %s213, 1
      %p217 = scmp.eq.s32.totalorder %s27, 5
      %p218 = scmp.ne.s32.totalorder %s213, %s215
      %p219 = scmp.eq.s32.totalorder %s27, 0
      %p220 = por %p218, %p219
      %p221 = scmp.ne.s32.totalorder %s213, %s215
      %p222 = scmp.eq.s32.totalorder %s32, 5
      %p223 = por %p221, %p222
      %p224 = scmp.ne.s32.totalorder %s215, %s216
      %p225 = scmp.eq.s32.totalorder %s32, 0
      %p226 = por %p224, %p225
      %p227 = scmp.ne.s32.totalorder %s215, %s216
      %p228 = scmp.eq.s32.totalorder %s33, 5
      %p229 = por %p227, %p228
      %p231 = scmp.ne.s32.totalorder %s216, %s230
      %p232 = scmp.eq.s32.totalorder %s33, 0
      %p233 = por %p231, %p232
      %s235 = sadd.s32 %s234, 1
      %p238 = scmp.eq.s32.totalorder %s27, 5
      %p239 = scmp.ne.s32.totalorder %s234, %s236
      %p240 = scmp.eq.s32.totalorder %s27, 0
      %p241 = por %p239, %p240
      %p242 = scmp.ne.s32.totalorder %s234, %s236
      %p243 = scmp.eq.s32.totalorder %s32, 5
      %p244 = por %p242, %p243
      %p245 = scmp.ne.s32.totalorder %s236, %s237
      %p246 = scmp.eq.s32.totalorder %s32, 0
      %p247 = por %p245, %p246
      %p248 = scmp.ne.s32.totalorder %s236, %s237
      %p249 = scmp.eq.s32.totalorder %s33, 5
      %p250 = por %p248, %p249
      %p252 = scmp.ne.s32.totalorder %s237, %s251
      %p253 = scmp.eq.s32.totalorder %s33, 0
      %p254 = por %p252, %p253
      %p255 = scmp.le.s32.totalorder 1, %s27
      %p256 = scmp.lt.s32.totalorder %s27, 7
      %p257 = pnand %p255, %p256
      %p258 = pneg %p257
      // Predicated region
      $region9: #{tpu_custom_call.1} parent=5 // pred_check
        _
      $region10: #{tpu_custom_call.1} parent=5 // pred_check_branch
        %260 = sbr.rel (%p257) target = $region12
      $region11: #{tpu_custom_call.1} parent=5 // pred_region
        %s261 = ssub.s32 %s27, 1
        // Predicated region
        $region13: #{tpu_custom_call.1} parent=11 // pred_check
          %p262 = pneg %p100
        $region14: #{tpu_custom_call.1} parent=11 // pred_check_branch
          %264 = sbr.rel (%p262) target = $region16
        $region15: #{tpu_custom_call.1} parent=11 // pred_region
          %s266 = ssub.s32 64, 64
          %267 = vsyncadd [#allocation9], %s266
          %s269 = sshll.u32 [#allocation10], 4
          %s270 = int_to_ptr.vmem [resolvable:$true] %s269
          %272 = dma.hbm_to_vmem [thread:$0]  %s3, 64, %s270, [#allocation9]
        $region16: #{tpu_custom_call.1} parent=11 // pred_fallthru
          _
        // Predicated region
        $region17: #{tpu_custom_call.1} parent=11 // pred_check
          %p273 = pneg %p121
        $region18: #{tpu_custom_call.1} parent=11 // pred_check_branch
          %275 = sbr.rel (%p273) target = $region20
        $region19: #{tpu_custom_call.1} parent=11 // pred_region
          %s277 = ssub.s32 64, 64
          %278 = vsyncadd [#allocation12], %s277
          %s280 = sshll.u32 [#allocation11], 4
          %s281 = int_to_ptr.vmem [resolvable:$true] %s280
          %283 = dma.hbm_to_vmem [thread:$0]  %s4, 64, %s281, [#allocation12]
        $region20: #{tpu_custom_call.1} parent=11 // pred_fallthru
          _
        // Predicated region
        $region21: #{tpu_custom_call.1} parent=11 // pred_check
          %p284 = pneg %p142
        $region22: #{tpu_custom_call.1} parent=11 // pred_check_branch
          %286 = sbr.rel (%p284) target = $region24
        $region23: #{tpu_custom_call.1} parent=11 // pred_region
          %s288 = ssub.s32 16384, 16384
          %289 = vsyncadd [#allocation12], %s288
          %s290 = sshll.u32 [#allocation13], 4
          %s291 = int_to_ptr.vmem [resolvable:$true] %s290
          %296 = dma.hbm_to_vmem [thread:$0]  %s5, 16384, %s291, [#allocation12], 256, 256, 16
        $region24: #{tpu_custom_call.1} parent=11 // pred_fallthru
          _
        // Predicated region
        $region25: #{tpu_custom_call.1} parent=11 // pred_check
          %p297 = pneg %p163
        $region26: #{tpu_custom_call.1} parent=11 // pred_check_branch
          %299 = sbr.rel (%p297) target = $region28
        $region27: #{tpu_custom_call.1} parent=11 // pred_region
          %s301 = ssub.s32 64, 64
          %302 = vsyncadd [#allocation15], %s301
          %s304 = sshll.u32 [#allocation14], 4
          %s305 = int_to_ptr.vmem [resolvable:$true] %s304
          %307 = dma.hbm_to_vmem [thread:$0]  %s6, 64, %s305, [#allocation15]
        $region28: #{tpu_custom_call.1} parent=11 // pred_fallthru
          _
        // Predicated region
        $region29: #{tpu_custom_call.1} parent=11 // pred_check
          %p308 = pneg %p184
        $region30: #{tpu_custom_call.1} parent=11 // pred_check_branch
          %310 = sbr.rel (%p308) target = $region32
        $region31: #{tpu_custom_call.1} parent=11 // pred_region
          %s312 = ssub.s32 64, 64
          %313 = vsyncadd [#allocation15], %s312
          %s315 = sshll.u32 [#allocation16], 4
          %s316 = int_to_ptr.vmem [resolvable:$true] %s315
          %318 = dma.hbm_to_vmem [thread:$0]  %s7, 64, %s316, [#allocation15]
        $region32: #{tpu_custom_call.1} parent=11 // pred_fallthru
          _
        // Predicated region
        $region33: #{tpu_custom_call.1} parent=11 // pred_check
          %p319 = pneg %p205
        $region34: #{tpu_custom_call.1} parent=11 // pred_check_branch
          %321 = sbr.rel (%p319) target = $region36
        $region35: #{tpu_custom_call.1} parent=11 // pred_region
          %s323 = ssub.s32 16384, 16384
          %324 = vsyncadd [#allocation18], %s323
          %s325 = sshll.u32 [#allocation17], 4
          %s326 = int_to_ptr.vmem [resolvable:$true] %s325
          %331 = dma.hbm_to_vmem [thread:$0]  %s8, 16384, %s326, [#allocation18], 256, 256, 16
        $region36: #{tpu_custom_call.1} parent=11 // pred_fallthru
          _
        // Predicated region
        $region37: #{tpu_custom_call.1} parent=11 // pred_check
          %p332 = pneg %p226
        $region38: #{tpu_custom_call.1} parent=11 // pred_check_branch
          %334 = sbr.rel (%p332) target = $region40
        $region39: #{tpu_custom_call.1} parent=11 // pred_region
          %s336 = ssub.s32 64, 64
          %337 = vsyncadd [#allocation18], %s336
          %s339 = sshll.u32 [#allocation19], 4
          %s340 = int_to_ptr.vmem [resolvable:$true] %s339
          %342 = dma.hbm_to_vmem [thread:$0]  %s9, 64, %s340, [#allocation18]
        $region40: #{tpu_custom_call.1} parent=11 // pred_fallthru
          _
      $region12: #{tpu_custom_call.1} parent=5 // pred_fallthru
        _
      %p343 = scmp.lt.s32.totalorder %s27, 6
      // Predicated region
      $region41: #{tpu_custom_call.1} parent=5 // pred_check
        %p344 = pneg %p343
      $region42: #{tpu_custom_call.1} parent=5 // pred_check_branch
        %346 = sbr.rel (%p344) target = $region44
      $region43: #{tpu_custom_call.1} parent=5 // pred_region
        // Predicated region
        $region45: #{tpu_custom_call.1} parent=43 // pred_check
          %p347 = pneg %p47
        $region46: #{tpu_custom_call.1} parent=43 // pred_check_branch
          %349 = sbr.rel (%p347) target = $region48
        $region47: #{tpu_custom_call.1} parent=43 // pred_region
          %s350 = sand.u32 %s37, 1
          %s351 = scalar_lea.sflag [#allocation6], %s350
          %s352 = sand.u32 %s37, 1
          %s353 = smul.addr %s352, 40
          %s354 = scalar_lea.vmem [#allocation5], %s353
          %s355 = smul.u32 5, %s27
          %s357 = ssub.s32 640, 640
          %358 = vsyncadd %s351, %s357
          %s359 = smul.addr %s355, 64
          %s360 = scalar_lea.hbm %s1, %s359
          %s361 = sshll.u32 %s354, 4
          %s362 = int_to_ptr.vmem [resolvable:$true] %s361
          %367 = dma.hbm_to_vmem [thread:$0]  %s360, 640, %s362, %s351, 1920, 320, 20
        $region48: #{tpu_custom_call.1} parent=43 // pred_fallthru
          _
        // Predicated region
        $region49: #{tpu_custom_call.1} parent=43 // pred_check
          %p368 = pneg %p73
        $region50: #{tpu_custom_call.1} parent=43 // pred_check_branch
          %370 = sbr.rel (%p368) target = $region52
        $region51: #{tpu_custom_call.1} parent=43 // pred_region
          %s371 = sand.u32 %s27, 1
          %s372 = scalar_lea.sflag [#allocation9], %s371
          %s373 = sand.u32 %s63, 1
          %s374 = smul.addr %s373, 1280
          %s375 = scalar_lea.vmem [#allocation8], %s374
          %s376 = smul.u32 80, %s27
          %s378 = ssub.s32 20480, 20480
          %379 = vsyncadd %s372, %s378
          %s380 = smul.addr %s376, 4
          %s381 = smul.addr %s380, 64
          %s382 = scalar_lea.hbm %s2, %s381
          %s383 = sshll.u32 %s375, 4
          %s384 = int_to_ptr.vmem [resolvable:$true] %s383
          %389 = dma.hbm_to_vmem [thread:$0]  %s382, 20480, %s384, %s372, 256, 256, 16
        $region52: #{tpu_custom_call.1} parent=43 // pred_fallthru
          _
      $region44: #{tpu_custom_call.1} parent=5 // pred_fallthru
        _
      %p390 = scmp.le.s32.totalorder 1, %s27
      %p391 = scmp.lt.s32.totalorder %s27, 7
      %p392 = pnand %p390, %p391
      %p393 = pneg %p392
      // Predicated region
      $region53: #{tpu_custom_call.1} parent=5 // pred_check
        _
      $region54: #{tpu_custom_call.1} parent=5 // pred_check_branch
        %395 = sbr.rel (%p392) target = $region56
      $region55: #{tpu_custom_call.1} parent=5 // pred_region
        %s396 = ssub.s32 %s27, 1
        %s397 = sand.u32 %s40, 1
        %s398 = scalar_lea.sflag [#allocation6], %s397
        %s399 = sand.u32 %s40, 1
        %s400 = smul.addr %s399, 40
        %s401 = scalar_lea.vmem [#allocation5], %s400
        // Predicated region
        $region57: #{tpu_custom_call.1} parent=55 // pred_check
          %p402 = pneg %p53
        $region58: #{tpu_custom_call.1} parent=55 // pred_check_branch
          %404 = sbr.rel (%p402) target = $region60
        $region59: #{tpu_custom_call.1} parent=55 // pred_region
          %405 = dma.done %s398, 640
        $region60: #{tpu_custom_call.1} parent=55 // pred_fallthru
          _
        %s406 = sand.u32 %s32, 1
        %s407 = scalar_lea.sflag [#allocation9], %s406
        %s408 = sand.u32 %s66, 1
        %s409 = smul.addr %s408, 1280
        %s410 = scalar_lea.vmem [#allocation8], %s409
        // Predicated region
        $region61: #{tpu_custom_call.1} parent=55 // pred_check
          %p411 = pneg %p79
        $region62: #{tpu_custom_call.1} parent=55 // pred_check_branch
          %413 = sbr.rel (%p411) target = $region64
        $region63: #{tpu_custom_call.1} parent=55 // pred_region
          %414 = dma.done %s407, 20480
        $region64: #{tpu_custom_call.1} parent=55 // pred_fallthru
          _
        // Predicated region
        $region65: #{tpu_custom_call.1} parent=55 // pred_check
          %p415 = pneg %p100
        $region66: #{tpu_custom_call.1} parent=55 // pred_check_branch
          %417 = sbr.rel (%p415) target = $region68
        $region67: #{tpu_custom_call.1} parent=55 // pred_region
          %418 = dma.done [#allocation9], 64
        $region68: #{tpu_custom_call.1} parent=55 // pred_fallthru
          _
        // Predicated region
        $region69: #{tpu_custom_call.1} parent=55 // pred_check
          %p419 = pneg %p121
        $region70: #{tpu_custom_call.1} parent=55 // pred_check_branch
          %421 = sbr.rel (%p419) target = $region72
        $region71: #{tpu_custom_call.1} parent=55 // pred_region
          %422 = dma.done [#allocation12], 64
        $region72: #{tpu_custom_call.1} parent=55 // pred_fallthru
          _
        // Predicated region
        $region73: #{tpu_custom_call.1} parent=55 // pred_check
          %p423 = pneg %p142
        $region74: #{tpu_custom_call.1} parent=55 // pred_check_branch
          %425 = sbr.rel (%p423) target = $region76
        $region75: #{tpu_custom_call.1} parent=55 // pred_region
          %426 = dma.done [#allocation12], 16384
        $region76: #{tpu_custom_call.1} parent=55 // pred_fallthru
          _
        // Predicated region
        $region77: #{tpu_custom_call.1} parent=55 // pred_check
          %p427 = pneg %p163
        $region78: #{tpu_custom_call.1} parent=55 // pred_check_branch
          %429 = sbr.rel (%p427) target = $region80
        $region79: #{tpu_custom_call.1} parent=55 // pred_region
          %430 = dma.done [#allocation15], 64
        $region80: #{tpu_custom_call.1} parent=55 // pred_fallthru
          _
        // Predicated region
        $region81: #{tpu_custom_call.1} parent=55 // pred_check
          %p431 = pneg %p184
        $region82: #{tpu_custom_call.1} parent=55 // pred_check_branch
          %433 = sbr.rel (%p431) target = $region84
        $region83: #{tpu_custom_call.1} parent=55 // pred_region
          %434 = dma.done [#allocation15], 64
        $region84: #{tpu_custom_call.1} parent=55 // pred_fallthru
          _
        // Predicated region
        $region85: #{tpu_custom_call.1} parent=55 // pred_check
          %p435 = pneg %p205
        $region86: #{tpu_custom_call.1} parent=55 // pred_check_branch
          %437 = sbr.rel (%p435) target = $region88
        $region87: #{tpu_custom_call.1} parent=55 // pred_region
          %438 = dma.done [#allocation18], 16384
        $region88: #{tpu_custom_call.1} parent=55 // pred_fallthru
          _
        // Predicated region
        $region89: #{tpu_custom_call.1} parent=55 // pred_check
          %p439 = pneg %p226
        $region90: #{tpu_custom_call.1} parent=55 // pred_check_branch
          %441 = sbr.rel (%p439) target = $region92
        $region91: #{tpu_custom_call.1} parent=55 // pred_region
          %442 = dma.done [#allocation18], 64
        $region92: #{tpu_custom_call.1} parent=55 // pred_fallthru
          _
        %s443 = sand.u32 %s40, 1
        %s444 = scalar_lea.sflag [#allocation6], %s443
        %s445 = sand.u32 %s40, 1
        %s446 = smul.addr %s445, 40
        %s447 = scalar_lea.vmem [#allocation5], %s446
        %p448 = pneg %p53
        %p449 = pneg %p50
        %s450 = sand.u32 %s32, 1
        %s451 = scalar_lea.sflag [#allocation9], %s450
        %s452 = sand.u32 %s66, 1
        %s453 = smul.addr %s452, 1280
        %s454 = scalar_lea.vmem [#allocation8], %s453
        %p455 = pneg %p79
        %p456 = pneg %p76
        %p457 = pneg %p100
        %p458 = pneg %p97
        %p459 = pneg %p121
        %p460 = pneg %p118
        %p461 = pneg %p142
        %p462 = pneg %p139
        %p463 = pneg %p163
        %p464 = pneg %p160
        %p465 = pneg %p184
        %p466 = pneg %p181
        %p467 = pneg %p205
        %p468 = pneg %p202
        %p469 = pneg %p226
        %p470 = pneg %p223
        %p471 = pneg %p247
        %p472 = pneg %p244
        %s473 = smul.u32 5, %s32
        %s474 = smul.u32 80, %s32
        %p476 = scmp.eq.s32.totalorder %s32, 0
        // Predicated region
        $region93: #{tpu_custom_call.1} parent=55 // pred_check
          %p477 = pneg %p476
        $region94: #{tpu_custom_call.1} parent=55 // pred_check_branch
          %479 = sbr.rel (%p477) target = $region96
        $region95: #{tpu_custom_call.1} parent=55 // pred_region
          %480 = vst [vmem:[#allocation2] sm:$0xff] 0.0
          %481 = vst [vmem:[#allocation2 + $0x8] sm:$0xff] 0.0
          %482 = vst [vmem:[#allocation2 + $0x10] sm:$0xff] 0.0
          %483 = vst [vmem:[#allocation2 + $0x18] sm:$0xff] 0.0
          %484 = vst [vmem:[#allocation2 + $0x20] sm:$0xff] 0.0
          %485 = vst [vmem:[#allocation2 + $0x28] sm:$0xff] 0.0
          %486 = vst [vmem:[#allocation2 + $0x30] sm:$0xff] 0.0
          %487 = vst [vmem:[#allocation2 + $0x38] sm:$0xff] 0.0
        $region96: #{tpu_custom_call.1} parent=55 // pred_fallthru
          _
        %v488 = vld [vmem:[#allocation2] sm:$0xff]
        %v489 = vld [vmem:[#allocation2 + $0x8] sm:$0xff]
        %v490 = vld [vmem:[#allocation2 + $0x10] sm:$0xff]
        %v491 = vld [vmem:[#allocation2 + $0x18] sm:$0xff]
        %v492 = vld [vmem:[#allocation2 + $0x20] sm:$0xff]
        %v493 = vld [vmem:[#allocation2 + $0x28] sm:$0xff]
        %v494 = vld [vmem:[#allocation2 + $0x30] sm:$0xff]
        %v495 = vld [vmem:[#allocation2 + $0x38] sm:$0xff]
        %v496 = vld [vmem:[%s401] sm:$0xff]
        %v497 = vld [vmem:[%s401 + $0x8] sm:$0xff]
        %v498 = vld [vmem:[%s401 + $0x10] sm:$0xf]
        %v499 = vld [vmem:[%s401 + $0x14] sm:$0xff]
        %v500 = vld [vmem:[%s401 + $0x1c] sm:$0xff]
        %v501 = vld [vmem:[%s401 + $0x24] sm:$0xf]
        %v502 = vld [vmem:[%s410] sm:$0xff]
        %v503 = vld [vmem:[%s410 + $0x8] sm:$0xff]
        %v504 = vld [vmem:[%s410 + $0x10] sm:$0xff]
        %v505 = vld [vmem:[%s410 + $0x18] sm:$0xff]
        %v506 = vld [vmem:[%s410 + $0x20] sm:$0xff]
        %v507 = vld [vmem:[%s410 + $0x28] sm:$0xff]
        %v508 = vld [vmem:[%s410 + $0x30] sm:$0xff]
        %v509 = vld [vmem:[%s410 + $0x38] sm:$0xff]
        %v510 = vld [vmem:[%s410 + $0x40] sm:$0xff]
        %v511 = vld [vmem:[%s410 + $0x48] sm:$0xff]
        %v512 = vld [vmem:[%s410 + $0x50] sm:$0xff]
        %v513 = vld [vmem:[%s410 + $0x58] sm:$0xff]
        %v514 = vld [vmem:[%s410 + $0x60] sm:$0xff]
        %v515 = vld [vmem:[%s410 + $0x68] sm:$0xff]
        %v516 = vld [vmem:[%s410 + $0x70] sm:$0xff]
        %v517 = vld [vmem:[%s410 + $0x78] sm:$0xff]
        %v518 = vld [vmem:[%s410 + $0x80] sm:$0xff]
        %v519 = vld [vmem:[%s410 + $0x88] sm:$0xff]
        %v520 = vld [vmem:[%s410 + $0x90] sm:$0xff]
        %v521 = vld [vmem:[%s410 + $0x98] sm:$0xff]
        %v522 = vld [vmem:[%s410 + $0xa0] sm:$0xff]
        %v523 = vld [vmem:[%s410 + $0xa8] sm:$0xff]
        %v524 = vld [vmem:[%s410 + $0xb0] sm:$0xff]
        %v525 = vld [vmem:[%s410 + $0xb8] sm:$0xff]
        %v526 = vld [vmem:[%s410 + $0xc0] sm:$0xff]
        %v527 = vld [vmem:[%s410 + $0xc8] sm:$0xff]
        %v528 = vld [vmem:[%s410 + $0xd0] sm:$0xff]
        %v529 = vld [vmem:[%s410 + $0xd8] sm:$0xff]
        %v530 = vld [vmem:[%s410 + $0xe0] sm:$0xff]
        %v531 = vld [vmem:[%s410 + $0xe8] sm:$0xff]
        %v532 = vld [vmem:[%s410 + $0xf0] sm:$0xff]
        %v533 = vld [vmem:[%s410 + $0xf8] sm:$0xff]
        %v534 = vld [vmem:[%s410 + $0x100] sm:$0xff]
        %v535 = vld [vmem:[%s410 + $0x108] sm:$0xff]
        %v536 = vld [vmem:[%s410 + $0x110] sm:$0xff]
        %v537 = vld [vmem:[%s410 + $0x118] sm:$0xff]
        %v538 = vld [vmem:[%s410 + $0x120] sm:$0xff]
        %v539 = vld [vmem:[%s410 + $0x128] sm:$0xff]
        %v540 = vld [vmem:[%s410 + $0x130] sm:$0xff]
        %v541 = vld [vmem:[%s410 + $0x138] sm:$0xff]
        %v542 = vld [vmem:[%s410 + $0x140] sm:$0xff]
        %v543 = vld [vmem:[%s410 + $0x148] sm:$0xff]
        %v544 = vld [vmem:[%s410 + $0x150] sm:$0xff]
        %v545 = vld [vmem:[%s410 + $0x158] sm:$0xff]
        %v546 = vld [vmem:[%s410 + $0x160] sm:$0xff]
        %v547 = vld [vmem:[%s410 + $0x168] sm:$0xff]
        %v548 = vld [vmem:[%s410 + $0x170] sm:$0xff]
        %v549 = vld [vmem:[%s410 + $0x178] sm:$0xff]
        %v550 = vld [vmem:[%s410 + $0x180] sm:$0xff]
        %v551 = vld [vmem:[%s410 + $0x188] sm:$0xff]
        %v552 = vld [vmem:[%s410 + $0x190] sm:$0xff]
        %v553 = vld [vmem:[%s410 + $0x198] sm:$0xff]
        %v554 = vld [vmem:[%s410 + $0x1a0] sm:$0xff]
        %v555 = vld [vmem:[%s410 + $0x1a8] sm:$0xff]
        %v556 = vld [vmem:[%s410 + $0x1b0] sm:$0xff]
        %v557 = vld [vmem:[%s410 + $0x1b8] sm:$0xff]
        %v558 = vld [vmem:[%s410 + $0x1c0] sm:$0xff]
        %v559 = vld [vmem:[%s410 + $0x1c8] sm:$0xff]
        %v560 = vld [vmem:[%s410 + $0x1d0] sm:$0xff]
        %v561 = vld [vmem:[%s410 + $0x1d8] sm:$0xff]
        %v562 = vld [vmem:[%s410 + $0x1e0] sm:$0xff]
        %v563 = vld [vmem:[%s410 + $0x1e8] sm:$0xff]
        %v564 = vld [vmem:[%s410 + $0x1f0] sm:$0xff]
        %v565 = vld [vmem:[%s410 + $0x1f8] sm:$0xff]
        %v566 = vld [vmem:[%s410 + $0x200] sm:$0xff]
        %v567 = vld [vmem:[%s410 + $0x208] sm:$0xff]
        %v568 = vld [vmem:[%s410 + $0x210] sm:$0xff]
        %v569 = vld [vmem:[%s410 + $0x218] sm:$0xff]
        %v570 = vld [vmem:[%s410 + $0x220] sm:$0xff]
        %v571 = vld [vmem:[%s410 + $0x228] sm:$0xff]
        %v572 = vld [vmem:[%s410 + $0x230] sm:$0xff]
        %v573 = vld [vmem:[%s410 + $0x238] sm:$0xff]
        %v574 = vld [vmem:[%s410 + $0x240] sm:$0xff]
        %v575 = vld [vmem:[%s410 + $0x248] sm:$0xff]
        %v576 = vld [vmem:[%s410 + $0x250] sm:$0xff]
        %v577 = vld [vmem:[%s410 + $0x258] sm:$0xff]
        %v578 = vld [vmem:[%s410 + $0x260] sm:$0xff]
        %v579 = vld [vmem:[%s410 + $0x268] sm:$0xff]
        %v580 = vld [vmem:[%s410 + $0x270] sm:$0xff]
        %v581 = vld [vmem:[%s410 + $0x278] sm:$0xff]
        %v582 = vld [vmem:[%s410 + $0x280] sm:$0xff]
        %v583 = vld [vmem:[%s410 + $0x288] sm:$0xff]
        %v584 = vld [vmem:[%s410 + $0x290] sm:$0xff]
        %v585 = vld [vmem:[%s410 + $0x298] sm:$0xff]
        %v586 = vld [vmem:[%s410 + $0x2a0] sm:$0xff]
        %v587 = vld [vmem:[%s410 + $0x2a8] sm:$0xff]
        %v588 = vld [vmem:[%s410 + $0x2b0] sm:$0xff]
        %v589 = vld [vmem:[%s410 + $0x2b8] sm:$0xff]
        %v590 = vld [vmem:[%s410 + $0x2c0] sm:$0xff]
        %v591 = vld [vmem:[%s410 + $0x2c8] sm:$0xff]
        %v592 = vld [vmem:[%s410 + $0x2d0] sm:$0xff]
        %v593 = vld [vmem:[%s410 + $0x2d8] sm:$0xff]
        %v594 = vld [vmem:[%s410 + $0x2e0] sm:$0xff]
        %v595 = vld [vmem:[%s410 + $0x2e8] sm:$0xff]
        %v596 = vld [vmem:[%s410 + $0x2f0] sm:$0xff]
        %v597 = vld [vmem:[%s410 + $0x2f8] sm:$0xff]
        %v598 = vld [vmem:[%s410 + $0x300] sm:$0xff]
        %v599 = vld [vmem:[%s410 + $0x308] sm:$0xff]
        %v600 = vld [vmem:[%s410 + $0x310] sm:$0xff]
        %v601 = vld [vmem:[%s410 + $0x318] sm:$0xff]
        %v602 = vld [vmem:[%s410 + $0x320] sm:$0xff]
        %v603 = vld [vmem:[%s410 + $0x328] sm:$0xff]
        %v604 = vld [vmem:[%s410 + $0x330] sm:$0xff]
        %v605 = vld [vmem:[%s410 + $0x338] sm:$0xff]
        %v606 = vld [vmem:[%s410 + $0x340] sm:$0xff]
        %v607 = vld [vmem:[%s410 + $0x348] sm:$0xff]
        %v608 = vld [vmem:[%s410 + $0x350] sm:$0xff]
        %v609 = vld [vmem:[%s410 + $0x358] sm:$0xff]
        %v610 = vld [vmem:[%s410 + $0x360] sm:$0xff]
        %v611 = vld [vmem:[%s410 + $0x368] sm:$0xff]
        %v612 = vld [vmem:[%s410 + $0x370] sm:$0xff]
        %v613 = vld [vmem:[%s410 + $0x378] sm:$0xff]
        %v614 = vld [vmem:[%s410 + $0x380] sm:$0xff]
        %v615 = vld [vmem:[%s410 + $0x388] sm:$0xff]
        %v616 = vld [vmem:[%s410 + $0x390] sm:$0xff]
        %v617 = vld [vmem:[%s410 + $0x398] sm:$0xff]
        %v618 = vld [vmem:[%s410 + $0x3a0] sm:$0xff]
        %v619 = vld [vmem:[%s410 + $0x3a8] sm:$0xff]
        %v620 = vld [vmem:[%s410 + $0x3b0] sm:$0xff]
        %v621 = vld [vmem:[%s410 + $0x3b8] sm:$0xff]
        %v622 = vld [vmem:[%s410 + $0x3c0] sm:$0xff]
        %v623 = vld [vmem:[%s410 + $0x3c8] sm:$0xff]
        %v624 = vld [vmem:[%s410 + $0x3d0] sm:$0xff]
        %v625 = vld [vmem:[%s410 + $0x3d8] sm:$0xff]
        %v626 = vld [vmem:[%s410 + $0x3e0] sm:$0xff]
        %v627 = vld [vmem:[%s410 + $0x3e8] sm:$0xff]
        %v628 = vld [vmem:[%s410 + $0x3f0] sm:$0xff]
        %v629 = vld [vmem:[%s410 + $0x3f8] sm:$0xff]
        %v630 = vld [vmem:[%s410 + $0x400] sm:$0xff]
        %v631 = vld [vmem:[%s410 + $0x408] sm:$0xff]
        %v632 = vld [vmem:[%s410 + $0x410] sm:$0xff]
        %v633 = vld [vmem:[%s410 + $0x418] sm:$0xff]
        %v634 = vld [vmem:[%s410 + $0x420] sm:$0xff]
        %v635 = vld [vmem:[%s410 + $0x428] sm:$0xff]
        %v636 = vld [vmem:[%s410 + $0x430] sm:$0xff]
        %v637 = vld [vmem:[%s410 + $0x438] sm:$0xff]
        %v638 = vld [vmem:[%s410 + $0x440] sm:$0xff]
        %v639 = vld [vmem:[%s410 + $0x448] sm:$0xff]
        %v640 = vld [vmem:[%s410 + $0x450] sm:$0xff]
        %v641 = vld [vmem:[%s410 + $0x458] sm:$0xff]
        %v642 = vld [vmem:[%s410 + $0x460] sm:$0xff]
        %v643 = vld [vmem:[%s410 + $0x468] sm:$0xff]
        %v644 = vld [vmem:[%s410 + $0x470] sm:$0xff]
        %v645 = vld [vmem:[%s410 + $0x478] sm:$0xff]
        %v646 = vld [vmem:[%s410 + $0x480] sm:$0xff]
        %v647 = vld [vmem:[%s410 + $0x488] sm:$0xff]
        %v648 = vld [vmem:[%s410 + $0x490] sm:$0xff]
        %v649 = vld [vmem:[%s410 + $0x498] sm:$0xff]
        %v650 = vld [vmem:[%s410 + $0x4a0] sm:$0xff]
        %v651 = vld [vmem:[%s410 + $0x4a8] sm:$0xff]
        %v652 = vld [vmem:[%s410 + $0x4b0] sm:$0xff]
        %v653 = vld [vmem:[%s410 + $0x4b8] sm:$0xff]
        %v654 = vld [vmem:[%s410 + $0x4c0] sm:$0xff]
        %v655 = vld [vmem:[%s410 + $0x4c8] sm:$0xff]
        %v656 = vld [vmem:[%s410 + $0x4d0] sm:$0xff]
        %v657 = vld [vmem:[%s410 + $0x4d8] sm:$0xff]
        %v658 = vld [vmem:[%s410 + $0x4e0] sm:$0xff]
        %v659 = vld [vmem:[%s410 + $0x4e8] sm:$0xff]
        %v660 = vld [vmem:[%s410 + $0x4f0] sm:$0xff]
        %v661 = vld [vmem:[%s410 + $0x4f8] sm:$0xff]
        %v668 = vunpack.c.l.b16 %v496
        %v669 = vunpack.c.h.b16 %v496
        %v670 = vunpack.c.l.b16 %v497
        %v671 = vunpack.c.h.b16 %v497
        %v672 = vunpack.c.l.b16 %v498
        %v673 = vunpack.c.l.b16 %v499
        %v674 = vunpack.c.h.b16 %v499
        %v675 = vunpack.c.l.b16 %v500
        %v676 = vunpack.c.h.b16 %v500
        %v677 = vunpack.c.l.b16 %v501
        %v678 = vpack.c.b16 %v673, %v668
        %v679 = vpack.c.b16 %v674, %v669
        %v680 = vpack.c.b16 %v675, %v670
        %v681 = vpack.c.b16 %v676, %v671
        %v682 = vpack.c.b16 %v677, %v672
        %v848 = vunpack.c.l.b16 %v502
        %v849 = vunpack.c.h.b16 %v502
        %v850 = vunpack.c.l.b16 %v503
        %v851 = vunpack.c.h.b16 %v503
        %v852 = vunpack.c.l.b16 %v504
        %v853 = vunpack.c.h.b16 %v504
        %v854 = vunpack.c.l.b16 %v505
        %v855 = vunpack.c.h.b16 %v505
        %v856 = vunpack.c.l.b16 %v506
        %v857 = vunpack.c.h.b16 %v506
        %v858 = vunpack.c.l.b16 %v507
        %v859 = vunpack.c.h.b16 %v507
        %v860 = vunpack.c.l.b16 %v508
        %v861 = vunpack.c.h.b16 %v508
        %v862 = vunpack.c.l.b16 %v509
        %v863 = vunpack.c.h.b16 %v509
        %v864 = vunpack.c.l.b16 %v510
        %v865 = vunpack.c.h.b16 %v510
        %v866 = vunpack.c.l.b16 %v511
        %v867 = vunpack.c.h.b16 %v511
        %v868 = vunpack.c.l.b16 %v512
        %v869 = vunpack.c.h.b16 %v512
        %v870 = vunpack.c.l.b16 %v513
        %v871 = vunpack.c.h.b16 %v513
        %v872 = vunpack.c.l.b16 %v514
        %v873 = vunpack.c.h.b16 %v514
        %v874 = vunpack.c.l.b16 %v515
        %v875 = vunpack.c.h.b16 %v515
        %v876 = vunpack.c.l.b16 %v516
        %v877 = vunpack.c.h.b16 %v516
        %v878 = vunpack.c.l.b16 %v517
        %v879 = vunpack.c.h.b16 %v517
        %v880 = vunpack.c.l.b16 %v518
        %v881 = vunpack.c.h.b16 %v518
        %v882 = vunpack.c.l.b16 %v519
        %v883 = vunpack.c.h.b16 %v519
        %v884 = vunpack.c.l.b16 %v520
        %v885 = vunpack.c.h.b16 %v520
        %v886 = vunpack.c.l.b16 %v521
        %v887 = vunpack.c.h.b16 %v521
        %v888 = vunpack.c.l.b16 %v522
        %v889 = vunpack.c.h.b16 %v522
        %v890 = vunpack.c.l.b16 %v523
        %v891 = vunpack.c.h.b16 %v523
        %v892 = vunpack.c.l.b16 %v524
        %v893 = vunpack.c.h.b16 %v524
        %v894 = vunpack.c.l.b16 %v525
        %v895 = vunpack.c.h.b16 %v525
        %v896 = vunpack.c.l.b16 %v526
        %v897 = vunpack.c.h.b16 %v526
        %v898 = vunpack.c.l.b16 %v527
        %v899 = vunpack.c.h.b16 %v527
        %v900 = vunpack.c.l.b16 %v528
        %v901 = vunpack.c.h.b16 %v528
        %v902 = vunpack.c.l.b16 %v529
        %v903 = vunpack.c.h.b16 %v529
        %v904 = vunpack.c.l.b16 %v530
        %v905 = vunpack.c.h.b16 %v530
        %v906 = vunpack.c.l.b16 %v531
        %v907 = vunpack.c.h.b16 %v531
        %v908 = vunpack.c.l.b16 %v532
        %v909 = vunpack.c.h.b16 %v532
        %v910 = vunpack.c.l.b16 %v533
        %v911 = vunpack.c.h.b16 %v533
        %v912 = vunpack.c.l.b16 %v534
        %v913 = vunpack.c.h.b16 %v534
        %v914 = vunpack.c.l.b16 %v535
        %v915 = vunpack.c.h.b16 %v535
        %v916 = vunpack.c.l.b16 %v536
        %v917 = vunpack.c.h.b16 %v536
        %v918 = vunpack.c.l.b16 %v537
        %v919 = vunpack.c.h.b16 %v537
        %v920 = vunpack.c.l.b16 %v538
        %v921 = vunpack.c.h.b16 %v538
        %v922 = vunpack.c.l.b16 %v539
        %v923 = vunpack.c.h.b16 %v539
        %v924 = vunpack.c.l.b16 %v540
        %v925 = vunpack.c.h.b16 %v540
        %v926 = vunpack.c.l.b16 %v541
        %v927 = vunpack.c.h.b16 %v541
        %v928 = vunpack.c.l.b16 %v542
        %v929 = vunpack.c.h.b16 %v542
        %v930 = vunpack.c.l.b16 %v543
        %v931 = vunpack.c.h.b16 %v543
        %v932 = vunpack.c.l.b16 %v544
        %v933 = vunpack.c.h.b16 %v544
        %v934 = vunpack.c.l.b16 %v545
        %v935 = vunpack.c.h.b16 %v545
        %v936 = vunpack.c.l.b16 %v546
        %v937 = vunpack.c.h.b16 %v546
        %v938 = vunpack.c.l.b16 %v547
        %v939 = vunpack.c.h.b16 %v547
        %v940 = vunpack.c.l.b16 %v548
        %v941 = vunpack.c.h.b16 %v548
        %v942 = vunpack.c.l.b16 %v549
        %v943 = vunpack.c.h.b16 %v549
        %v944 = vunpack.c.l.b16 %v550
        %v945 = vunpack.c.h.b16 %v550
        %v946 = vunpack.c.l.b16 %v551
        %v947 = vunpack.c.h.b16 %v551
        %v948 = vunpack.c.l.b16 %v552
        %v949 = vunpack.c.h.b16 %v552
        %v950 = vunpack.c.l.b16 %v553
        %v951 = vunpack.c.h.b16 %v553
        %v952 = vunpack.c.l.b16 %v554
        %v953 = vunpack.c.h.b16 %v554
        %v954 = vunpack.c.l.b16 %v555
        %v955 = vunpack.c.h.b16 %v555
        %v956 = vunpack.c.l.b16 %v556
        %v957 = vunpack.c.h.b16 %v556
        %v958 = vunpack.c.l.b16 %v557
        %v959 = vunpack.c.h.b16 %v557
        %v960 = vunpack.c.l.b16 %v558
        %v961 = vunpack.c.h.b16 %v558
        %v962 = vunpack.c.l.b16 %v559
        %v963 = vunpack.c.h.b16 %v559
        %v964 = vunpack.c.l.b16 %v560
        %v965 = vunpack.c.h.b16 %v560
        %v966 = vunpack.c.l.b16 %v561
        %v967 = vunpack.c.h.b16 %v561
        %v968 = vunpack.c.l.b16 %v562
        %v969 = vunpack.c.h.b16 %v562
        %v970 = vunpack.c.l.b16 %v563
        %v971 = vunpack.c.h.b16 %v563
        %v972 = vunpack.c.l.b16 %v564
        %v973 = vunpack.c.h.b16 %v564
        %v974 = vunpack.c.l.b16 %v565
        %v975 = vunpack.c.h.b16 %v565
        %v976 = vunpack.c.l.b16 %v566
        %v977 = vunpack.c.h.b16 %v566
        %v978 = vunpack.c.l.b16 %v567
        %v979 = vunpack.c.h.b16 %v567
        %v980 = vunpack.c.l.b16 %v568
        %v981 = vunpack.c.h.b16 %v568
        %v982 = vunpack.c.l.b16 %v569
        %v983 = vunpack.c.h.b16 %v569
        %v984 = vunpack.c.l.b16 %v570
        %v985 = vunpack.c.h.b16 %v570
        %v986 = vunpack.c.l.b16 %v571
        %v987 = vunpack.c.h.b16 %v571
        %v988 = vunpack.c.l.b16 %v572
        %v989 = vunpack.c.h.b16 %v572
        %v990 = vunpack.c.l.b16 %v573
        %v991 = vunpack.c.h.b16 %v573
        %v992 = vunpack.c.l.b16 %v574
        %v993 = vunpack.c.h.b16 %v574
        %v994 = vunpack.c.l.b16 %v575
        %v995 = vunpack.c.h.b16 %v575
        %v996 = vunpack.c.l.b16 %v576
        %v997 = vunpack.c.h.b16 %v576
        %v998 = vunpack.c.l.b16 %v577
        %v999 = vunpack.c.h.b16 %v577
        %v1000 = vunpack.c.l.b16 %v578
        %v1001 = vunpack.c.h.b16 %v578
        %v1002 = vunpack.c.l.b16 %v579
        %v1003 = vunpack.c.h.b16 %v579
        %v1004 = vunpack.c.l.b16 %v580
        %v1005 = vunpack.c.h.b16 %v580
        %v1006 = vunpack.c.l.b16 %v581
        %v1007 = vunpack.c.h.b16 %v581
        %v1008 = vunpack.c.l.b16 %v582
        %v1009 = vunpack.c.h.b16 %v582
        %v1010 = vunpack.c.l.b16 %v583
        %v1011 = vunpack.c.h.b16 %v583
        %v1012 = vunpack.c.l.b16 %v584
        %v1013 = vunpack.c.h.b16 %v584
        %v1014 = vunpack.c.l.b16 %v585
        %v1015 = vunpack.c.h.b16 %v585
        %v1016 = vunpack.c.l.b16 %v586
        %v1017 = vunpack.c.h.b16 %v586
        %v1018 = vunpack.c.l.b16 %v587
        %v1019 = vunpack.c.h.b16 %v587
        %v1020 = vunpack.c.l.b16 %v588
        %v1021 = vunpack.c.h.b16 %v588
        %v1022 = vunpack.c.l.b16 %v589
        %v1023 = vunpack.c.h.b16 %v589
        %v1024 = vunpack.c.l.b16 %v590
        %v1025 = vunpack.c.h.b16 %v590
        %v1026 = vunpack.c.l.b16 %v591
        %v1027 = vunpack.c.h.b16 %v591
        %v1028 = vunpack.c.l.b16 %v592
        %v1029 = vunpack.c.h.b16 %v592
        %v1030 = vunpack.c.l.b16 %v593
        %v1031 = vunpack.c.h.b16 %v593
        %v1032 = vunpack.c.l.b16 %v594
        %v1033 = vunpack.c.h.b16 %v594
        %v1034 = vunpack.c.l.b16 %v595
        %v1035 = vunpack.c.h.b16 %v595
        %v1036 = vunpack.c.l.b16 %v596
        %v1037 = vunpack.c.h.b16 %v596
        %v1038 = vunpack.c.l.b16 %v597
        %v1039 = vunpack.c.h.b16 %v597
        %v1040 = vunpack.c.l.b16 %v598
        %v1041 = vunpack.c.h.b16 %v598
        %v1042 = vunpack.c.l.b16 %v599
        %v1043 = vunpack.c.h.b16 %v599
        %v1044 = vunpack.c.l.b16 %v600
        %v1045 = vunpack.c.h.b16 %v600
        %v1046 = vunpack.c.l.b16 %v601
        %v1047 = vunpack.c.h.b16 %v601
        %v1048 = vunpack.c.l.b16 %v602
        %v1049 = vunpack.c.h.b16 %v602
        %v1050 = vunpack.c.l.b16 %v603
        %v1051 = vunpack.c.h.b16 %v603
        %v1052 = vunpack.c.l.b16 %v604
        %v1053 = vunpack.c.h.b16 %v604
        %v1054 = vunpack.c.l.b16 %v605
        %v1055 = vunpack.c.h.b16 %v605
        %v1056 = vunpack.c.l.b16 %v606
        %v1057 = vunpack.c.h.b16 %v606
        %v1058 = vunpack.c.l.b16 %v607
        %v1059 = vunpack.c.h.b16 %v607
        %v1060 = vunpack.c.l.b16 %v608
        %v1061 = vunpack.c.h.b16 %v608
        %v1062 = vunpack.c.l.b16 %v609
        %v1063 = vunpack.c.h.b16 %v609
        %v1064 = vunpack.c.l.b16 %v610
        %v1065 = vunpack.c.h.b16 %v610
        %v1066 = vunpack.c.l.b16 %v611
        %v1067 = vunpack.c.h.b16 %v611
        %v1068 = vunpack.c.l.b16 %v612
        %v1069 = vunpack.c.h.b16 %v612
        %v1070 = vunpack.c.l.b16 %v613
        %v1071 = vunpack.c.h.b16 %v613
        %v1072 = vunpack.c.l.b16 %v614
        %v1073 = vunpack.c.h.b16 %v614
        %v1074 = vunpack.c.l.b16 %v615
        %v1075 = vunpack.c.h.b16 %v615
        %v1076 = vunpack.c.l.b16 %v616
        %v1077 = vunpack.c.h.b16 %v616
        %v1078 = vunpack.c.l.b16 %v617
        %v1079 = vunpack.c.h.b16 %v617
        %v1080 = vunpack.c.l.b16 %v618
        %v1081 = vunpack.c.h.b16 %v618
        %v1082 = vunpack.c.l.b16 %v619
        %v1083 = vunpack.c.h.b16 %v619
        %v1084 = vunpack.c.l.b16 %v620
        %v1085 = vunpack.c.h.b16 %v620
        %v1086 = vunpack.c.l.b16 %v621
        %v1087 = vunpack.c.h.b16 %v621
        %v1088 = vunpack.c.l.b16 %v622
        %v1089 = vunpack.c.h.b16 %v622
        %v1090 = vunpack.c.l.b16 %v623
        %v1091 = vunpack.c.h.b16 %v623
        %v1092 = vunpack.c.l.b16 %v624
        %v1093 = vunpack.c.h.b16 %v624
        %v1094 = vunpack.c.l.b16 %v625
        %v1095 = vunpack.c.h.b16 %v625
        %v1096 = vunpack.c.l.b16 %v626
        %v1097 = vunpack.c.h.b16 %v626
        %v1098 = vunpack.c.l.b16 %v627
        %v1099 = vunpack.c.h.b16 %v627
        %v1100 = vunpack.c.l.b16 %v628
        %v1101 = vunpack.c.h.b16 %v628
        %v1102 = vunpack.c.l.b16 %v629
        %v1103 = vunpack.c.h.b16 %v629
        %v1104 = vunpack.c.l.b16 %v630
        %v1105 = vunpack.c.h.b16 %v630
        %v1106 = vunpack.c.l.b16 %v631
        %v1107 = vunpack.c.h.b16 %v631
        %v1108 = vunpack.c.l.b16 %v632
        %v1109 = vunpack.c.h.b16 %v632
        %v1110 = vunpack.c.l.b16 %v633
        %v1111 = vunpack.c.h.b16 %v633
        %v1112 = vunpack.c.l.b16 %v634
        %v1113 = vunpack.c.h.b16 %v634
        %v1114 = vunpack.c.l.b16 %v635
        %v1115 = vunpack.c.h.b16 %v635
        %v1116 = vunpack.c.l.b16 %v636
        %v1117 = vunpack.c.h.b16 %v636
        %v1118 = vunpack.c.l.b16 %v637
        %v1119 = vunpack.c.h.b16 %v637
        %v1120 = vunpack.c.l.b16 %v638
        %v1121 = vunpack.c.h.b16 %v638
        %v1122 = vunpack.c.l.b16 %v639
        %v1123 = vunpack.c.h.b16 %v639
        %v1124 = vunpack.c.l.b16 %v640
        %v1125 = vunpack.c.h.b16 %v640
        %v1126 = vunpack.c.l.b16 %v641
        %v1127 = vunpack.c.h.b16 %v641
        %v1128 = vunpack.c.l.b16 %v642
        %v1129 = vunpack.c.h.b16 %v642
        %v1130 = vunpack.c.l.b16 %v643
        %v1131 = vunpack.c.h.b16 %v643
        %v1132 = vunpack.c.l.b16 %v644
        %v1133 = vunpack.c.h.b16 %v644
        %v1134 = vunpack.c.l.b16 %v645
        %v1135 = vunpack.c.h.b16 %v645
        %v1136 = vunpack.c.l.b16 %v646
        %v1137 = vunpack.c.h.b16 %v646
        %v1138 = vunpack.c.l.b16 %v647
        %v1139 = vunpack.c.h.b16 %v647
        %v1140 = vunpack.c.l.b16 %v648
        %v1141 = vunpack.c.h.b16 %v648
        %v1142 = vunpack.c.l.b16 %v649
        %v1143 = vunpack.c.h.b16 %v649
        %v1144 = vunpack.c.l.b16 %v650
        %v1145 = vunpack.c.h.b16 %v650
        %v1146 = vunpack.c.l.b16 %v651
        %v1147 = vunpack.c.h.b16 %v651
        %v1148 = vunpack.c.l.b16 %v652
        %v1149 = vunpack.c.h.b16 %v652
        %v1150 = vunpack.c.l.b16 %v653
        %v1151 = vunpack.c.h.b16 %v653
        %v1152 = vunpack.c.l.b16 %v654
        %v1153 = vunpack.c.h.b16 %v654
        %v1154 = vunpack.c.l.b16 %v655
        %v1155 = vunpack.c.h.b16 %v655
        %v1156 = vunpack.c.l.b16 %v656
        %v1157 = vunpack.c.h.b16 %v656
        %v1158 = vunpack.c.l.b16 %v657
        %v1159 = vunpack.c.h.b16 %v657
        %v1160 = vunpack.c.l.b16 %v658
        %v1161 = vunpack.c.h.b16 %v658
        %v1162 = vunpack.c.l.b16 %v659
        %v1163 = vunpack.c.h.b16 %v659
        %v1164 = vunpack.c.l.b16 %v660
        %v1165 = vunpack.c.h.b16 %v660
        %v1166 = vunpack.c.l.b16 %v661
        %v1167 = vunpack.c.h.b16 %v661
        %v1168 = vpack.c.b16 %v852, %v848
        %v1169 = vpack.c.b16 %v853, %v849
        %v1170 = vpack.c.b16 %v854, %v850
        %v1171 = vpack.c.b16 %v855, %v851
        %v1172 = vpack.c.b16 %v860, %v856
        %v1173 = vpack.c.b16 %v861, %v857
        %v1174 = vpack.c.b16 %v862, %v858
        %v1175 = vpack.c.b16 %v863, %v859
        %v1176 = vpack.c.b16 %v868, %v864
        %v1177 = vpack.c.b16 %v869, %v865
        %v1178 = vpack.c.b16 %v870, %v866
        %v1179 = vpack.c.b16 %v871, %v867
        %v1180 = vpack.c.b16 %v876, %v872
        %v1181 = vpack.c.b16 %v877, %v873
        %v1182 = vpack.c.b16 %v878, %v874
        %v1183 = vpack.c.b16 %v879, %v875
        %v1184 = vpack.c.b16 %v884, %v880
        %v1185 = vpack.c.b16 %v885, %v881
        %v1186 = vpack.c.b16 %v886, %v882
        %v1187 = vpack.c.b16 %v887, %v883
        %v1188 = vpack.c.b16 %v892, %v888
        %v1189 = vpack.c.b16 %v893, %v889
        %v1190 = vpack.c.b16 %v894, %v890
        %v1191 = vpack.c.b16 %v895, %v891
        %v1192 = vpack.c.b16 %v900, %v896
        %v1193 = vpack.c.b16 %v901, %v897
        %v1194 = vpack.c.b16 %v902, %v898
        %v1195 = vpack.c.b16 %v903, %v899
        %v1196 = vpack.c.b16 %v908, %v904
        %v1197 = vpack.c.b16 %v909, %v905
        %v1198 = vpack.c.b16 %v910, %v906
        %v1199 = vpack.c.b16 %v911, %v907
        %v1200 = vpack.c.b16 %v916, %v912
        %v1201 = vpack.c.b16 %v917, %v913
        %v1202 = vpack.c.b16 %v918, %v914
        %v1203 = vpack.c.b16 %v919, %v915
        %v1204 = vpack.c.b16 %v924, %v920
        %v1205 = vpack.c.b16 %v925, %v921
        %v1206 = vpack.c.b16 %v926, %v922
        %v1207 = vpack.c.b16 %v927, %v923
        %v1208 = vpack.c.b16 %v932, %v928
        %v1209 = vpack.c.b16 %v933, %v929
        %v1210 = vpack.c.b16 %v934, %v930
        %v1211 = vpack.c.b16 %v935, %v931
        %v1212 = vpack.c.b16 %v940, %v936
        %v1213 = vpack.c.b16 %v941, %v937
        %v1214 = vpack.c.b16 %v942, %v938
        %v1215 = vpack.c.b16 %v943, %v939
        %v1216 = vpack.c.b16 %v948, %v944
        %v1217 = vpack.c.b16 %v949, %v945
        %v1218 = vpack.c.b16 %v950, %v946
        %v1219 = vpack.c.b16 %v951, %v947
        %v1220 = vpack.c.b16 %v956, %v952
        %v1221 = vpack.c.b16 %v957, %v953
        %v1222 = vpack.c.b16 %v958, %v954
        %v1223 = vpack.c.b16 %v959, %v955
        %v1224 = vpack.c.b16 %v964, %v960
        %v1225 = vpack.c.b16 %v965, %v961
        %v1226 = vpack.c.b16 %v966, %v962
        %v1227 = vpack.c.b16 %v967, %v963
        %v1228 = vpack.c.b16 %v972, %v968
        %v1229 = vpack.c.b16 %v973, %v969
        %v1230 = vpack.c.b16 %v974, %v970
        %v1231 = vpack.c.b16 %v975, %v971
        %v1232 = vpack.c.b16 %v980, %v976
        %v1233 = vpack.c.b16 %v981, %v977
        %v1234 = vpack.c.b16 %v982, %v978
        %v1235 = vpack.c.b16 %v983, %v979
        %v1236 = vpack.c.b16 %v988, %v984
        %v1237 = vpack.c.b16 %v989, %v985
        %v1238 = vpack.c.b16 %v990, %v986
        %v1239 = vpack.c.b16 %v991, %v987
        %v1240 = vpack.c.b16 %v996, %v992
        %v1241 = vpack.c.b16 %v997, %v993
        %v1242 = vpack.c.b16 %v998, %v994
        %v1243 = vpack.c.b16 %v999, %v995
        %v1244 = vpack.c.b16 %v1004, %v1000
        %v1245 = vpack.c.b16 %v1005, %v1001
        %v1246 = vpack.c.b16 %v1006, %v1002
        %v1247 = vpack.c.b16 %v1007, %v1003
        %v1248 = vpack.c.b16 %v1012, %v1008
        %v1249 = vpack.c.b16 %v1013, %v1009
        %v1250 = vpack.c.b16 %v1014, %v1010
        %v1251 = vpack.c.b16 %v1015, %v1011
        %v1252 = vpack.c.b16 %v1020, %v1016
        %v1253 = vpack.c.b16 %v1021, %v1017
        %v1254 = vpack.c.b16 %v1022, %v1018
        %v1255 = vpack.c.b16 %v1023, %v1019
        %v1256 = vpack.c.b16 %v1028, %v1024
        %v1257 = vpack.c.b16 %v1029, %v1025
        %v1258 = vpack.c.b16 %v1030, %v1026
        %v1259 = vpack.c.b16 %v1031, %v1027
        %v1260 = vpack.c.b16 %v1036, %v1032
        %v1261 = vpack.c.b16 %v1037, %v1033
        %v1262 = vpack.c.b16 %v1038, %v1034
        %v1263 = vpack.c.b16 %v1039, %v1035
        %v1264 = vpack.c.b16 %v1044, %v1040
        %v1265 = vpack.c.b16 %v1045, %v1041
        %v1266 = vpack.c.b16 %v1046, %v1042
        %v1267 = vpack.c.b16 %v1047, %v1043
        %v1268 = vpack.c.b16 %v1052, %v1048
        %v1269 = vpack.c.b16 %v1053, %v1049
        %v1270 = vpack.c.b16 %v1054, %v1050
        %v1271 = vpack.c.b16 %v1055, %v1051
        %v1272 = vpack.c.b16 %v1060, %v1056
        %v1273 = vpack.c.b16 %v1061, %v1057
        %v1274 = vpack.c.b16 %v1062, %v1058
        %v1275 = vpack.c.b16 %v1063, %v1059
        %v1276 = vpack.c.b16 %v1068, %v1064
        %v1277 = vpack.c.b16 %v1069, %v1065
        %v1278 = vpack.c.b16 %v1070, %v1066
        %v1279 = vpack.c.b16 %v1071, %v1067
        %v1280 = vpack.c.b16 %v1076, %v1072
        %v1281 = vpack.c.b16 %v1077, %v1073
        %v1282 = vpack.c.b16 %v1078, %v1074
        %v1283 = vpack.c.b16 %v1079, %v1075
        %v1284 = vpack.c.b16 %v1084, %v1080
        %v1285 = vpack.c.b16 %v1085, %v1081
        %v1286 = vpack.c.b16 %v1086, %v1082
        %v1287 = vpack.c.b16 %v1087, %v1083
        %v1288 = vpack.c.b16 %v1092, %v1088
        %v1289 = vpack.c.b16 %v1093, %v1089
        %v1290 = vpack.c.b16 %v1094, %v1090
        %v1291 = vpack.c.b16 %v1095, %v1091
        %v1292 = vpack.c.b16 %v1100, %v1096
        %v1293 = vpack.c.b16 %v1101, %v1097
        %v1294 = vpack.c.b16 %v1102, %v1098
        %v1295 = vpack.c.b16 %v1103, %v1099
        %v1296 = vpack.c.b16 %v1108, %v1104
        %v1297 = vpack.c.b16 %v1109, %v1105
        %v1298 = vpack.c.b16 %v1110, %v1106
        %v1299 = vpack.c.b16 %v1111, %v1107
        %v1300 = vpack.c.b16 %v1116, %v1112
        %v1301 = vpack.c.b16 %v1117, %v1113
        %v1302 = vpack.c.b16 %v1118, %v1114
        %v1303 = vpack.c.b16 %v1119, %v1115
        %v1304 = vpack.c.b16 %v1124, %v1120
        %v1305 = vpack.c.b16 %v1125, %v1121
        %v1306 = vpack.c.b16 %v1126, %v1122
        %v1307 = vpack.c.b16 %v1127, %v1123
        %v1308 = vpack.c.b16 %v1132, %v1128
        %v1309 = vpack.c.b16 %v1133, %v1129
        %v1310 = vpack.c.b16 %v1134, %v1130
        %v1311 = vpack.c.b16 %v1135, %v1131
        %v1312 = vpack.c.b16 %v1140, %v1136
        %v1313 = vpack.c.b16 %v1141, %v1137
        %v1314 = vpack.c.b16 %v1142, %v1138
        %v1315 = vpack.c.b16 %v1143, %v1139
        %v1316 = vpack.c.b16 %v1148, %v1144
        %v1317 = vpack.c.b16 %v1149, %v1145
        %v1318 = vpack.c.b16 %v1150, %v1146
        %v1319 = vpack.c.b16 %v1151, %v1147
        %v1320 = vpack.c.b16 %v1156, %v1152
        %v1321 = vpack.c.b16 %v1157, %v1153
        %v1322 = vpack.c.b16 %v1158, %v1154
        %v1323 = vpack.c.b16 %v1159, %v1155
        %v1324 = vpack.c.b16 %v1164, %v1160
        %v1325 = vpack.c.b16 %v1165, %v1161
        %v1326 = vpack.c.b16 %v1166, %v1162
        %v1327 = vpack.c.b16 %v1167, %v1163
        %1488 = vmatprep.subr.bf16.mxu0 %v1169
        %1489 = vmatpush1.bf16.msra.mxu0 %v1168
        %1490 = vmatprep.subr.bf16.mxu0 %v1173
        %1491 = vmatpush1.bf16.msra.mxu0 %v1172
        %1492 = vmatprep.subr.bf16.mxu0 %v1177
        %1493 = vmatpush1.bf16.msra.mxu0 %v1176
        %1494 = vmatprep.subr.bf16.mxu0 %v1181
        %1495 = vmatpush1.bf16.msra.mxu0 %v1180
        %1496 = vmatprep.subr.bf16.mxu0 %v1185
        %1497 = vmatpush1.bf16.msra.mxu0 %v1184
        %1498 = vmatprep.subr.bf16.mxu0 %v1189
        %1499 = vmatpush1.bf16.msra.mxu0 %v1188
        %1500 = vmatprep.subr.bf16.mxu0 %v1193
        %1501 = vmatpush1.bf16.msra.mxu0 %v1192
        %1502 = vmatprep.subr.bf16.mxu0 %v1197
        %1503 = vmatpush1.bf16.msra.mxu0 %v1196
        %1504 = vmatprep.subr.bf16.mxu0 %v1201
        %1505 = vmatpush1.bf16.msra.mxu0 %v1200
        %1506 = vmatprep.subr.bf16.mxu0 %v1205
        %1507 = vmatpush1.bf16.msra.mxu0 %v1204
        %1508 = vmatprep.subr.bf16.mxu0 %v1209
        %1509 = vmatpush1.bf16.msra.mxu0 %v1208
        %1510 = vmatprep.subr.bf16.mxu0 %v1213
        %1511 = vmatpush1.bf16.msra.mxu0 %v1212
        %1512 = vmatprep.subr.bf16.mxu0 %v1217
        %1513 = vmatpush1.bf16.msra.mxu0 %v1216
        %1514 = vmatprep.subr.bf16.mxu0 %v1221
        %1515 = vmatpush1.bf16.msra.mxu0 %v1220
        %1516 = vmatprep.subr.bf16.mxu0 %v1225
        %1517 = vmatpush1.bf16.msra.mxu0 %v1224
        %1518 = vmatprep.subr.bf16.mxu0 %v1229
        %1519 = vmatpush1.bf16.msra.mxu0 %v1228
        %1520 = vmatprep.mubr.bf16.mxu0 %v679
        %1521 = vmatmul.mubr.bf16.gmra.mrb[0].mxu0 %v678
        %v1522 = vpop.f32.mrb[0].mxu0
        %v1523 = vadd.f32 0.0, %v1522
        %v1524 = vpop.f32.mrb[0].mxu0
        %v1525 = vadd.f32 0.0, %v1524
        %v1526 = vpop.f32.mrb[0].mxu0
        %v1527 = vadd.f32 0.0, %v1526
        %v1528 = vpop.f32.mrb[0].mxu0
        %v1529 = vadd.f32 0.0, %v1528
        %1530 = vdwg.mxu0
        %1531 = vmatprep.subr.bf16.mxu0 %v1233
        %1532 = vmatpush1.bf16.msra.mxu0 %v1232
        %1533 = vmatprep.subr.bf16.mxu0 %v1237
        %1534 = vmatpush1.bf16.msra.mxu0 %v1236
        %1535 = vmatprep.subr.bf16.mxu0 %v1241
        %1536 = vmatpush1.bf16.msra.mxu0 %v1240
        %1537 = vmatprep.subr.bf16.mxu0 %v1245
        %1538 = vmatpush1.bf16.msra.mxu0 %v1244
        %1539 = vmatprep.subr.bf16.mxu0 %v1249
        %1540 = vmatpush1.bf16.msra.mxu0 %v1248
        %1541 = vmatprep.subr.bf16.mxu0 %v1253
        %1542 = vmatpush1.bf16.msra.mxu0 %v1252
        %1543 = vmatprep.subr.bf16.mxu0 %v1257
        %1544 = vmatpush1.bf16.msra.mxu0 %v1256
        %1545 = vmatprep.subr.bf16.mxu0 %v1261
        %1546 = vmatpush1.bf16.msra.mxu0 %v1260
        %1547 = vmatprep.subr.bf16.mxu0 %v1265
        %1548 = vmatpush1.bf16.msra.mxu0 %v1264
        %1549 = vmatprep.subr.bf16.mxu0 %v1269
        %1550 = vmatpush1.bf16.msra.mxu0 %v1268
        %1551 = vmatprep.subr.bf16.mxu0 %v1273
        %1552 = vmatpush1.bf16.msra.mxu0 %v1272
        %1553 = vmatprep.subr.bf16.mxu0 %v1277
        %1554 = vmatpush1.bf16.msra.mxu0 %v1276
        %1555 = vmatprep.subr.bf16.mxu0 %v1281
        %1556 = vmatpush1.bf16.msra.mxu0 %v1280
        %1557 = vmatprep.subr.bf16.mxu0 %v1285
        %1558 = vmatpush1.bf16.msra.mxu0 %v1284
        %1559 = vmatprep.subr.bf16.mxu0 %v1289
        %1560 = vmatpush1.bf16.msra.mxu0 %v1288
        %1561 = vmatprep.subr.bf16.mxu0 %v1293
        %1562 = vmatpush1.bf16.msra.mxu0 %v1292
        %1563 = vmatprep.mubr.bf16.mxu0 %v681
        %1564 = vmatmul.mubr.bf16.gmra.mrb[0].mxu0 %v680
        %v1565 = vpop.f32.mrb[0].mxu0
        %v1566 = vadd.f32 %v1523, %v1565
        %v1567 = vpop.f32.mrb[0].mxu0
        %v1568 = vadd.f32 %v1525, %v1567
        %v1569 = vpop.f32.mrb[0].mxu0
        %v1570 = vadd.f32 %v1527, %v1569
        %v1571 = vpop.f32.mrb[0].mxu0
        %v1572 = vadd.f32 %v1529, %v1571
        %1573 = vdwg.mxu0
        %1574 = vmatprep.subr.bf16.mxu0 %v1297
        %1575 = vmatpush1.bf16.msra.mxu0 %v1296
        %1576 = vmatprep.subr.bf16.mxu0 %v1301
        %1577 = vmatpush1.bf16.msra.mxu0 %v1300
        %1578 = vmatprep.subr.bf16.mxu0 %v1305
        %1579 = vmatpush1.bf16.msra.mxu0 %v1304
        %1580 = vmatprep.subr.bf16.mxu0 %v1309
        %1581 = vmatpush1.bf16.msra.mxu0 %v1308
        %1582 = vmatprep.subr.bf16.mxu0 %v1313
        %1583 = vmatpush1.bf16.msra.mxu0 %v1312
        %1584 = vmatprep.subr.bf16.mxu0 %v1317
        %1585 = vmatpush1.bf16.msra.mxu0 %v1316
        %1586 = vmatprep.subr.bf16.mxu0 %v1321
        %1587 = vmatpush1.bf16.msra.mxu0 %v1320
        %1588 = vmatprep.subr.bf16.mxu0 %v1325
        %1589 = vmatpush1.bf16.msra.mxu0 %v1324
        %1590 = vmatprep.subr.bf16.mxu0 0
        %1591 = vmatpush1.bf16.msra.mxu0 0
        %1592 = vmatprep.subr.bf16.mxu0 0
        %1593 = vmatpush1.bf16.msra.mxu0 0
        %1594 = vmatprep.subr.bf16.mxu0 0
        %1595 = vmatpush1.bf16.msra.mxu0 0
        %1596 = vmatprep.subr.bf16.mxu0 0
        %1597 = vmatpush1.bf16.msra.mxu0 0
        %1598 = vmatprep.subr.bf16.mxu0 0
        %1599 = vmatpush1.bf16.msra.mxu0 0
        %1600 = vmatprep.subr.bf16.mxu0 0
        %1601 = vmatpush1.bf16.msra.mxu0 0
        %1602 = vmatprep.subr.bf16.mxu0 0
        %1603 = vmatpush1.bf16.msra.mxu0 0
        %1604 = vmatprep.subr.bf16.mxu0 0
        %1605 = vmatpush1.bf16.msra.mxu0 0
        %1606 = vmatprep.mubr.bf16.mxu0 0
        %1607 = vmatmul.mubr.bf16.gmra.mrb[0].mxu0 %v682
        %v1608 = vpop.f32.mrb[0].mxu0
        %v1609 = vadd.f32 %v1566, %v1608
        %v1610 = vpop.f32.mrb[0].mxu0
        %v1611 = vadd.f32 %v1568, %v1610
        %v1612 = vpop.f32.mrb[0].mxu0
        %v1613 = vadd.f32 %v1570, %v1612
        %v1614 = vpop.f32.mrb[0].mxu0
        %v1615 = vadd.f32 %v1572, %v1614
        %1616 = vdwg.mxu0
        %1617 = vmatprep.subr.bf16.mxu0 %v1171
        %1618 = vmatpush1.bf16.msra.mxu0 %v1170
        %1619 = vmatprep.subr.bf16.mxu0 %v1175
        %1620 = vmatpush1.bf16.msra.mxu0 %v1174
        %1621 = vmatprep.subr.bf16.mxu0 %v1179
        %1622 = vmatpush1.bf16.msra.mxu0 %v1178
        %1623 = vmatprep.subr.bf16.mxu0 %v1183
        %1624 = vmatpush1.bf16.msra.mxu0 %v1182
        %1625 = vmatprep.subr.bf16.mxu0 %v1187
        %1626 = vmatpush1.bf16.msra.mxu0 %v1186
        %1627 = vmatprep.subr.bf16.mxu0 %v1191
        %1628 = vmatpush1.bf16.msra.mxu0 %v1190
        %1629 = vmatprep.subr.bf16.mxu0 %v1195
        %1630 = vmatpush1.bf16.msra.mxu0 %v1194
        %1631 = vmatprep.subr.bf16.mxu0 %v1199
        %1632 = vmatpush1.bf16.msra.mxu0 %v1198
        %1633 = vmatprep.subr.bf16.mxu0 %v1203
        %1634 = vmatpush1.bf16.msra.mxu0 %v1202
        %1635 = vmatprep.subr.bf16.mxu0 %v1207
        %1636 = vmatpush1.bf16.msra.mxu0 %v1206
        %1637 = vmatprep.subr.bf16.mxu0 %v1211
        %1638 = vmatpush1.bf16.msra.mxu0 %v1210
        %1639 = vmatprep.subr.bf16.mxu0 %v1215
        %1640 = vmatpush1.bf16.msra.mxu0 %v1214
        %1641 = vmatprep.subr.bf16.mxu0 %v1219
        %1642 = vmatpush1.bf16.msra.mxu0 %v1218
        %1643 = vmatprep.subr.bf16.mxu0 %v1223
        %1644 = vmatpush1.bf16.msra.mxu0 %v1222
        %1645 = vmatprep.subr.bf16.mxu0 %v1227
        %1646 = vmatpush1.bf16.msra.mxu0 %v1226
        %1647 = vmatprep.subr.bf16.mxu0 %v1231
        %1648 = vmatpush1.bf16.msra.mxu0 %v1230
        %1649 = vmatprep.mubr.bf16.mxu0 %v679
        %1650 = vmatmul.mubr.bf16.gmra.mrb[0].mxu0 %v678
        %v1651 = vpop.f32.mrb[0].mxu0
        %v1652 = vadd.f32 0.0, %v1651
        %v1653 = vpop.f32.mrb[0].mxu0
        %v1654 = vadd.f32 0.0, %v1653
        %v1655 = vpop.f32.mrb[0].mxu0
        %v1656 = vadd.f32 0.0, %v1655
        %v1657 = vpop.f32.mrb[0].mxu0
        %v1658 = vadd.f32 0.0, %v1657
        %1659 = vdwg.mxu0
        %1660 = vmatprep.subr.bf16.mxu0 %v1235
        %1661 = vmatpush1.bf16.msra.mxu0 %v1234
        %1662 = vmatprep.subr.bf16.mxu0 %v1239
        %1663 = vmatpush1.bf16.msra.mxu0 %v1238
        %1664 = vmatprep.subr.bf16.mxu0 %v1243
        %1665 = vmatpush1.bf16.msra.mxu0 %v1242
        %1666 = vmatprep.subr.bf16.mxu0 %v1247
        %1667 = vmatpush1.bf16.msra.mxu0 %v1246
        %1668 = vmatprep.subr.bf16.mxu0 %v1251
        %1669 = vmatpush1.bf16.msra.mxu0 %v1250
        %1670 = vmatprep.subr.bf16.mxu0 %v1255
        %1671 = vmatpush1.bf16.msra.mxu0 %v1254
        %1672 = vmatprep.subr.bf16.mxu0 %v1259
        %1673 = vmatpush1.bf16.msra.mxu0 %v1258
        %1674 = vmatprep.subr.bf16.mxu0 %v1263
        %1675 = vmatpush1.bf16.msra.mxu0 %v1262
        %1676 = vmatprep.subr.bf16.mxu0 %v1267
        %1677 = vmatpush1.bf16.msra.mxu0 %v1266
        %1678 = vmatprep.subr.bf16.mxu0 %v1271
        %1679 = vmatpush1.bf16.msra.mxu0 %v1270
        %1680 = vmatprep.subr.bf16.mxu0 %v1275
        %1681 = vmatpush1.bf16.msra.mxu0 %v1274
        %1682 = vmatprep.subr.bf16.mxu0 %v1279
        %1683 = vmatpush1.bf16.msra.mxu0 %v1278
        %1684 = vmatprep.subr.bf16.mxu0 %v1283
        %1685 = vmatpush1.bf16.msra.mxu0 %v1282
        %1686 = vmatprep.subr.bf16.mxu0 %v1287
        %1687 = vmatpush1.bf16.msra.mxu0 %v1286
        %1688 = vmatprep.subr.bf16.mxu0 %v1291
        %1689 = vmatpush1.bf16.msra.mxu0 %v1290
        %1690 = vmatprep.subr.bf16.mxu0 %v1295
        %1691 = vmatpush1.bf16.msra.mxu0 %v1294
        %1692 = vmatprep.mubr.bf16.mxu0 %v681
        %1693 = vmatmul.mubr.bf16.gmra.mrb[0].mxu0 %v680
        %v1694 = vpop.f32.mrb[0].mxu0
        %v1695 = vadd.f32 %v1652, %v1694
        %v1696 = vpop.f32.mrb[0].mxu0
        %v1697 = vadd.f32 %v1654, %v1696
        %v1698 = vpop.f32.mrb[0].mxu0
        %v1699 = vadd.f32 %v1656, %v1698
        %v1700 = vpop.f32.mrb[0].mxu0
        %v1701 = vadd.f32 %v1658, %v1700
        %1702 = vdwg.mxu0
        %1703 = vmatprep.subr.bf16.mxu0 %v1299
        %1704 = vmatpush1.bf16.msra.mxu0 %v1298
        %1705 = vmatprep.subr.bf16.mxu0 %v1303
        %1706 = vmatpush1.bf16.msra.mxu0 %v1302
        %1707 = vmatprep.subr.bf16.mxu0 %v1307
        %1708 = vmatpush1.bf16.msra.mxu0 %v1306
        %1709 = vmatprep.subr.bf16.mxu0 %v1311
        %1710 = vmatpush1.bf16.msra.mxu0 %v1310
        %1711 = vmatprep.subr.bf16.mxu0 %v1315
        %1712 = vmatpush1.bf16.msra.mxu0 %v1314
        %1713 = vmatprep.subr.bf16.mxu0 %v1319
        %1714 = vmatpush1.bf16.msra.mxu0 %v1318
        %1715 = vmatprep.subr.bf16.mxu0 %v1323
        %1716 = vmatpush1.bf16.msra.mxu0 %v1322
        %1717 = vmatprep.subr.bf16.mxu0 %v1327
        %1718 = vmatpush1.bf16.msra.mxu0 %v1326
        %1719 = vmatprep.subr.bf16.mxu0 0
        %1720 = vmatpush1.bf16.msra.mxu0 0
        %1721 = vmatprep.subr.bf16.mxu0 0
        %1722 = vmatpush1.bf16.msra.mxu0 0
        %1723 = vmatprep.subr.bf16.mxu0 0
        %1724 = vmatpush1.bf16.msra.mxu0 0
        %1725 = vmatprep.subr.bf16.mxu0 0
        %1726 = vmatpush1.bf16.msra.mxu0 0
        %1727 = vmatprep.subr.bf16.mxu0 0
        %1728 = vmatpush1.bf16.msra.mxu0 0
        %1729 = vmatprep.subr.bf16.mxu0 0
        %1730 = vmatpush1.bf16.msra.mxu0 0
        %1731 = vmatprep.subr.bf16.mxu0 0
        %1732 = vmatpush1.bf16.msra.mxu0 0
        %1733 = vmatprep.subr.bf16.mxu0 0
        %1734 = vmatpush1.bf16.msra.mxu0 0
        %1735 = vmatprep.mubr.bf16.mxu0 0
        %1736 = vmatmul.mubr.bf16.gmra.mrb[0].mxu0 %v682
        %v1737 = vpop.f32.mrb[0].mxu0
        %v1738 = vadd.f32 %v1695, %v1737
        %v1739 = vpop.f32.mrb[0].mxu0
        %v1740 = vadd.f32 %v1697, %v1739
        %v1741 = vpop.f32.mrb[0].mxu0
        %v1742 = vadd.f32 %v1699, %v1741
        %v1743 = vpop.f32.mrb[0].mxu0
        %v1744 = vadd.f32 %v1701, %v1743
        %1745 = vdwg.mxu0
        %v1746 = vadd.f32 %v488, %v1609
        %v1747 = vadd.f32 %v489, %v1611
        %v1748 = vadd.f32 %v490, %v1738
        %v1749 = vadd.f32 %v491, %v1740
        %v1750 = vadd.f32 %v492, %v1613
        %v1751 = vadd.f32 %v493, %v1615
        %v1752 = vadd.f32 %v494, %v1742
        %v1753 = vadd.f32 %v495, %v1744
        %1754 = vst [vmem:[#allocation2] sm:$0xff] %v1746
        %1755 = vst [vmem:[#allocation2 + $0x8] sm:$0xff] %v1747
        %1756 = vst [vmem:[#allocation2 + $0x10] sm:$0xff] %v1748
        %1757 = vst [vmem:[#allocation2 + $0x18] sm:$0xff] %v1749
        %1758 = vst [vmem:[#allocation2 + $0x20] sm:$0xff] %v1750
        %1759 = vst [vmem:[#allocation2 + $0x28] sm:$0xff] %v1751
        %1760 = vst [vmem:[#allocation2 + $0x30] sm:$0xff] %v1752
        %1761 = vst [vmem:[#allocation2 + $0x38] sm:$0xff] %v1753
        %p1762 = scmp.eq.s32.totalorder %s32, 5
        // Predicated region
        $region97: #{tpu_custom_call.1} parent=55 // pred_check
          %p1763 = pneg %p1762
        $region98: #{tpu_custom_call.1} parent=55 // pred_check_branch
          %1765 = sbr.rel (%p1763) target = $region100
        $region99: #{tpu_custom_call.1} parent=55 // pred_region
          %s1766 = sld [smem:[#allocation4]]
          %s1767 = scvt.s32.f32 %s1766
          %v1768 = vstv %s1767
          %v1769 = vrcp.pop %v1768
          %s1770 = vtos %v1769
          %v1771 = vld [vmem:[#allocation2] sm:$0xff]
          %v1772 = vld [vmem:[#allocation2 + $0x8] sm:$0xff]
          %v1773 = vld [vmem:[#allocation2 + $0x10] sm:$0xff]
          %v1774 = vld [vmem:[#allocation2 + $0x18] sm:$0xff]
          %v1775 = vld [vmem:[#allocation2 + $0x20] sm:$0xff]
          %v1776 = vld [vmem:[#allocation2 + $0x28] sm:$0xff]
          %v1777 = vld [vmem:[#allocation2 + $0x30] sm:$0xff]
          %v1778 = vld [vmem:[#allocation2 + $0x38] sm:$0xff]
          %v1779 = vld [vmem:[#allocation10] sm:$0xf]
          %v1780 = vld [vmem:[#allocation11] sm:$0xf]
          %v1781 = vadd.f32 %v1771, %v1775
          %v1782 = vrot.slane %v1781, 4
          %v1783 = vadd.f32 %v1781, %v1782
          %v1784 = vrot.slane %v1783, 2
          %v1785 = vadd.f32 %v1783, %v1784
          %v1786 = vrot.slane %v1785, 1
          %v1787 = vadd.f32 %v1785, %v1786
          %v1788 = vadd.f32 %v1772, %v1776
          %v1789 = vrot.slane %v1788, 4
          %v1790 = vadd.f32 %v1788, %v1789
          %v1791 = vrot.slane %v1790, 2
          %v1792 = vadd.f32 %v1790, %v1791
          %v1793 = vrot.slane %v1792, 1
          %v1794 = vadd.f32 %v1792, %v1793
          %v1795 = vadd.f32 %v1773, %v1777
          %v1796 = vrot.slane %v1795, 4
          %v1797 = vadd.f32 %v1795, %v1796
          %v1798 = vrot.slane %v1797, 2
          %v1799 = vadd.f32 %v1797, %v1798
          %v1800 = vrot.slane %v1799, 1
          %v1801 = vadd.f32 %v1799, %v1800
          %v1802 = vadd.f32 %v1774, %v1778
          %v1803 = vrot.slane %v1802, 4
          %v1804 = vadd.f32 %v1802, %v1803
          %v1805 = vrot.slane %v1804, 2
          %v1806 = vadd.f32 %v1804, %v1805
          %v1807 = vrot.slane %v1806, 1
          %v1808 = vadd.f32 %v1806, %v1807
          %v1809 = vstv %s1770
          %v1810 = vmul.f32 %v1787, %v1809
          %v1811 = vmul.f32 %v1794, %v1809
          %v1812 = vmul.f32 %v1801, %v1809
          %v1813 = vmul.f32 %v1808, %v1809
          %v1814 = vmul.f32 %v1771, %v1771
          %v1815 = vmul.f32 %v1772, %v1772
          %v1816 = vmul.f32 %v1773, %v1773
          %v1817 = vmul.f32 %v1774, %v1774
          %v1818 = vmul.f32 %v1775, %v1775
          %v1819 = vmul.f32 %v1776, %v1776
          %v1820 = vmul.f32 %v1777, %v1777
          %v1821 = vmul.f32 %v1778, %v1778
          %v1822 = vadd.f32 %v1814, %v1818
          %v1823 = vrot.slane %v1822, 4
          %v1824 = vadd.f32 %v1822, %v1823
          %v1825 = vrot.slane %v1824, 2
          %v1826 = vadd.f32 %v1824, %v1825
          %v1827 = vrot.slane %v1826, 1
          %v1828 = vadd.f32 %v1826, %v1827
          %v1829 = vadd.f32 %v1815, %v1819
          %v1830 = vrot.slane %v1829, 4
          %v1831 = vadd.f32 %v1829, %v1830
          %v1832 = vrot.slane %v1831, 2
          %v1833 = vadd.f32 %v1831, %v1832
          %v1834 = vrot.slane %v1833, 1
          %v1835 = vadd.f32 %v1833, %v1834
          %v1836 = vadd.f32 %v1816, %v1820
          %v1837 = vrot.slane %v1836, 4
          %v1838 = vadd.f32 %v1836, %v1837
          %v1839 = vrot.slane %v1838, 2
          %v1840 = vadd.f32 %v1838, %v1839
          %v1841 = vrot.slane %v1840, 1
          %v1842 = vadd.f32 %v1840, %v1841
          %v1843 = vadd.f32 %v1817, %v1821
          %v1844 = vrot.slane %v1843, 4
          %v1845 = vadd.f32 %v1843, %v1844
          %v1846 = vrot.slane %v1845, 2
          %v1847 = vadd.f32 %v1845, %v1846
          %v1848 = vrot.slane %v1847, 1
          %v1849 = vadd.f32 %v1847, %v1848
          %v1850 = vmul.f32 %v1828, %v1809
          %v1851 = vmul.f32 %v1835, %v1809
          %v1852 = vmul.f32 %v1842, %v1809
          %v1853 = vmul.f32 %v1849, %v1809
          %v1854 = vmul.f32 %v1810, %v1810
          %v1855 = vmul.f32 %v1811, %v1811
          %v1856 = vmul.f32 %v1812, %v1812
          %v1857 = vmul.f32 %v1813, %v1813
          %v1858 = vsub.f32 %v1850, %v1854
          %v1859 = vsub.f32 %v1851, %v1855
          %v1860 = vsub.f32 %v1852, %v1856
          %v1861 = vsub.f32 %v1853, %v1857
          %v1862 = vadd.f32 %v1858, 1e-05
          %v1863 = vadd.f32 %v1859, 1e-05
          %v1864 = vadd.f32 %v1860, 1e-05
          %v1865 = vadd.f32 %v1861, 1e-05
          %v1866 = vrsqrt.pop %v1862
          %v1867 = vrsqrt.pop %v1863
          %v1868 = vrsqrt.pop %v1864
          %v1869 = vrsqrt.pop %v1865
          %v1874 = vcombine.low %v1866, %v1867
          %v1875 = vcombine.low %v1868, %v1869
          %v1877 = vunpack.c.l.s4 1966171168
          %v1878 = vunpack.c.0.s8 %v1877
          %v1879 = vlaneseq
          %v1880 = vshrl.u32 %v1879, 7
          %v1881 = vsub.s32 %v1878, %v1880
          %v1882 = vrot.slane %v1874, %v1881
          %v1884 = vunpack.c.l.s4 1966171168
          %v1885 = vunpack.c.0.s8 %v1884
          %v1886 = vlaneseq
          %v1887 = vshrl.u32 %v1886, 7
          %v1888 = vsub.s32 %v1885, %v1887
          %v1889 = vrot.slane %v1875, %v1888
          %v1890 = vcombine.low %v1882, %v1889
          %v1892 = vunpack.c.l.s4 1966171168
          %v1893 = vunpack.c.0.s8 %v1892
          %v1894 = vlaneseq
          %v1895 = vshrl.u32 %v1894, 7
          %v1896 = vsub.s32 %v1893, %v1895
          %v1897 = vrot.slane %v1890, %v1896
          %v1899 = vmul.f32 %v1779, %v1897
          %v1901 = vlaneseq
          %v1902 = vshrl.u32 %v1901, 7
          %v1903 = vsub.s32 0, %v1902
          %v1904 = vrot.slane %v1899, %v1903
          %v1905 = vlaneseq
          %v1906 = vshrl.u32 %v1905, 7
          %v1907 = vsub.s32 1, %v1906
          %v1908 = vrot.slane %v1899, %v1907
          %v1909 = vlaneseq
          %v1910 = vshrl.u32 %v1909, 7
          %v1911 = vsub.s32 2, %v1910
          %v1912 = vrot.slane %v1899, %v1911
          %v1913 = vlaneseq
          %v1914 = vshrl.u32 %v1913, 7
          %v1915 = vsub.s32 3, %v1914
          %v1916 = vrot.slane %v1899, %v1915
          %v1921 = vmul.f32 %v1810, %v1904
          %v1922 = vmul.f32 %v1811, %v1908
          %v1923 = vmul.f32 %v1812, %v1912
          %v1924 = vmul.f32 %v1813, %v1916
          %v1929 = vcombine.low %v1921, %v1922
          %v1930 = vcombine.low %v1923, %v1924
          %v1932 = vunpack.c.l.s4 1966171168
          %v1933 = vunpack.c.0.s8 %v1932
          %v1934 = vlaneseq
          %v1935 = vshrl.u32 %v1934, 7
          %v1936 = vsub.s32 %v1933, %v1935
          %v1937 = vrot.slane %v1929, %v1936
          %v1939 = vunpack.c.l.s4 1966171168
          %v1940 = vunpack.c.0.s8 %v1939
          %v1941 = vlaneseq
          %v1942 = vshrl.u32 %v1941, 7
          %v1943 = vsub.s32 %v1940, %v1942
          %v1944 = vrot.slane %v1930, %v1943
          %v1945 = vcombine.low %v1937, %v1944
          %v1947 = vunpack.c.l.s4 1966171168
          %v1948 = vunpack.c.0.s8 %v1947
          %v1949 = vlaneseq
          %v1950 = vshrl.u32 %v1949, 7
          %v1951 = vsub.s32 %v1948, %v1950
          %v1952 = vrot.slane %v1945, %v1951
          %v1954 = vsub.f32 %v1780, %v1952
          %v1955 = vmul.f32 %v1771, %v1904
          %v1956 = vmul.f32 %v1772, %v1908
          %v1957 = vmul.f32 %v1773, %v1912
          %v1958 = vmul.f32 %v1774, %v1916
          %v1959 = vmul.f32 %v1775, %v1904
          %v1960 = vmul.f32 %v1776, %v1908
          %v1961 = vmul.f32 %v1777, %v1912
          %v1962 = vmul.f32 %v1778, %v1916
          %v1964 = vlaneseq
          %v1965 = vshrl.u32 %v1964, 7
          %v1966 = vsub.s32 0, %v1965
          %v1967 = vrot.slane %v1954, %v1966
          %v1968 = vlaneseq
          %v1969 = vshrl.u32 %v1968, 7
          %v1970 = vsub.s32 1, %v1969
          %v1971 = vrot.slane %v1954, %v1970
          %v1972 = vlaneseq
          %v1973 = vshrl.u32 %v1972, 7
          %v1974 = vsub.s32 2, %v1973
          %v1975 = vrot.slane %v1954, %v1974
          %v1976 = vlaneseq
          %v1977 = vshrl.u32 %v1976, 7
          %v1978 = vsub.s32 3, %v1977
          %v1979 = vrot.slane %v1954, %v1978
          %v1984 = vadd.f32 %v1955, %v1967
          %v1985 = vadd.f32 %v1956, %v1971
          %v1986 = vadd.f32 %v1957, %v1975
          %v1987 = vadd.f32 %v1958, %v1979
          %v1988 = vadd.f32 %v1959, %v1967
          %v1989 = vadd.f32 %v1960, %v1971
          %v1990 = vadd.f32 %v1961, %v1975
          %v1991 = vadd.f32 %v1962, %v1979
          %v1992 = vmax.f32 %v1984, 0.0
          %v1993 = vmax.f32 %v1985, 0.0
          %v1994 = vmax.f32 %v1986, 0.0
          %v1995 = vmax.f32 %v1987, 0.0
          %v1996 = vmax.f32 %v1988, 0.0
          %v1997 = vmax.f32 %v1989, 0.0
          %v1998 = vmax.f32 %v1990, 0.0
          %v1999 = vmax.f32 %v1991, 0.0
          %v2000 = vlaneseq
          %v2001 = vshrl.u32 %v2000, 7
          %v2002 = vadd.s32 %v2001, 8
          %v2003 = vstv %s1766
          %vm2004 = vcmp.lt.s32.totalorder %v2001, %v2003
          %vm2005 = vcmp.lt.s32.totalorder %v2002, %v2003
          %v2006 = vsel %vm2004, 1, 0
          %v2007 = vsel %vm2005, 1, 0
          %vm2008 = vcmp.eq.s32.totalorder %v2006, 1
          %vm2009 = vcmp.eq.s32.totalorder %v2007, 1
          %v2010 = vsel %vm2008, %v1992, 0.0
          %v2011 = vsel %vm2008, %v1993, 0.0
          %v2012 = vsel %vm2008, %v1994, 0.0
          %v2013 = vsel %vm2008, %v1995, 0.0
          %v2014 = vsel %vm2009, %v1996, 0.0
          %v2015 = vsel %vm2009, %v1997, 0.0
          %v2016 = vsel %vm2009, %v1998, 0.0
          %v2017 = vsel %vm2009, %v1999, 0.0
          %v2018 = vpack.c.bf16 %v2014, %v2010
          %v2019 = vpack.c.bf16 %v2015, %v2011
          %v2020 = vpack.c.bf16 %v2016, %v2012
          %v2021 = vpack.c.bf16 %v2017, %v2013
          %v2022 = vld [vmem:[#allocation13] sm:$0xff]
          %v2023 = vld [vmem:[#allocation13 + $0x8] sm:$0xff]
          %v2024 = vld [vmem:[#allocation13 + $0x10] sm:$0xff]
          %v2025 = vld [vmem:[#allocation13 + $0x18] sm:$0xff]
          %v2026 = vld [vmem:[#allocation13 + $0x20] sm:$0xff]
          %v2027 = vld [vmem:[#allocation13 + $0x28] sm:$0xff]
          %v2028 = vld [vmem:[#allocation13 + $0x30] sm:$0xff]
          %v2029 = vld [vmem:[#allocation13 + $0x38] sm:$0xff]
          %v2030 = vld [vmem:[#allocation13 + $0x40] sm:$0xff]
          %v2031 = vld [vmem:[#allocation13 + $0x48] sm:$0xff]
          %v2032 = vld [vmem:[#allocation13 + $0x50] sm:$0xff]
          %v2033 = vld [vmem:[#allocation13 + $0x58] sm:$0xff]
          %v2034 = vld [vmem:[#allocation13 + $0x60] sm:$0xff]
          %v2035 = vld [vmem:[#allocation13 + $0x68] sm:$0xff]
          %v2036 = vld [vmem:[#allocation13 + $0x70] sm:$0xff]
          %v2037 = vld [vmem:[#allocation13 + $0x78] sm:$0xff]
          %v2038 = vld [vmem:[#allocation13 + $0x80] sm:$0xff]
          %v2039 = vld [vmem:[#allocation13 + $0x88] sm:$0xff]
          %v2040 = vld [vmem:[#allocation13 + $0x90] sm:$0xff]
          %v2041 = vld [vmem:[#allocation13 + $0x98] sm:$0xff]
          %v2042 = vld [vmem:[#allocation13 + $0xa0] sm:$0xff]
          %v2043 = vld [vmem:[#allocation13 + $0xa8] sm:$0xff]
          %v2044 = vld [vmem:[#allocation13 + $0xb0] sm:$0xff]
          %v2045 = vld [vmem:[#allocation13 + $0xb8] sm:$0xff]
          %v2046 = vld [vmem:[#allocation13 + $0xc0] sm:$0xff]
          %v2047 = vld [vmem:[#allocation13 + $0xc8] sm:$0xff]
          %v2048 = vld [vmem:[#allocation13 + $0xd0] sm:$0xff]
          %v2049 = vld [vmem:[#allocation13 + $0xd8] sm:$0xff]
          %v2050 = vld [vmem:[#allocation13 + $0xe0] sm:$0xff]
          %v2051 = vld [vmem:[#allocation13 + $0xe8] sm:$0xff]
          %v2052 = vld [vmem:[#allocation13 + $0xf0] sm:$0xff]
          %v2053 = vld [vmem:[#allocation13 + $0xf8] sm:$0xff]
          %v2054 = vld [vmem:[#allocation13 + $0x100] sm:$0xff]
          %v2055 = vld [vmem:[#allocation13 + $0x108] sm:$0xff]
          %v2056 = vld [vmem:[#allocation13 + $0x110] sm:$0xff]
          %v2057 = vld [vmem:[#allocation13 + $0x118] sm:$0xff]
          %v2058 = vld [vmem:[#allocation13 + $0x120] sm:$0xff]
          %v2059 = vld [vmem:[#allocation13 + $0x128] sm:$0xff]
          %v2060 = vld [vmem:[#allocation13 + $0x130] sm:$0xff]
          %v2061 = vld [vmem:[#allocation13 + $0x138] sm:$0xff]
          %v2062 = vld [vmem:[#allocation13 + $0x140] sm:$0xff]
          %v2063 = vld [vmem:[#allocation13 + $0x148] sm:$0xff]
          %v2064 = vld [vmem:[#allocation13 + $0x150] sm:$0xff]
          %v2065 = vld [vmem:[#allocation13 + $0x158] sm:$0xff]
          %v2066 = vld [vmem:[#allocation13 + $0x160] sm:$0xff]
          %v2067 = vld [vmem:[#allocation13 + $0x168] sm:$0xff]
          %v2068 = vld [vmem:[#allocation13 + $0x170] sm:$0xff]
          %v2069 = vld [vmem:[#allocation13 + $0x178] sm:$0xff]
          %v2070 = vld [vmem:[#allocation13 + $0x180] sm:$0xff]
          %v2071 = vld [vmem:[#allocation13 + $0x188] sm:$0xff]
          %v2072 = vld [vmem:[#allocation13 + $0x190] sm:$0xff]
          %v2073 = vld [vmem:[#allocation13 + $0x198] sm:$0xff]
          %v2074 = vld [vmem:[#allocation13 + $0x1a0] sm:$0xff]
          %v2075 = vld [vmem:[#allocation13 + $0x1a8] sm:$0xff]
          %v2076 = vld [vmem:[#allocation13 + $0x1b0] sm:$0xff]
          %v2077 = vld [vmem:[#allocation13 + $0x1b8] sm:$0xff]
          %v2078 = vld [vmem:[#allocation13 + $0x1c0] sm:$0xff]
          %v2079 = vld [vmem:[#allocation13 + $0x1c8] sm:$0xff]
          %v2080 = vld [vmem:[#allocation13 + $0x1d0] sm:$0xff]
          %v2081 = vld [vmem:[#allocation13 + $0x1d8] sm:$0xff]
          %v2082 = vld [vmem:[#allocation13 + $0x1e0] sm:$0xff]
          %v2083 = vld [vmem:[#allocation13 + $0x1e8] sm:$0xff]
          %v2084 = vld [vmem:[#allocation13 + $0x1f0] sm:$0xff]
          %v2085 = vld [vmem:[#allocation13 + $0x1f8] sm:$0xff]
          %v2086 = vld [vmem:[#allocation13 + $0x200] sm:$0xff]
          %v2087 = vld [vmem:[#allocation13 + $0x208] sm:$0xff]
          %v2088 = vld [vmem:[#allocation13 + $0x210] sm:$0xff]
          %v2089 = vld [vmem:[#allocation13 + $0x218] sm:$0xff]
          %v2090 = vld [vmem:[#allocation13 + $0x220] sm:$0xff]
          %v2091 = vld [vmem:[#allocation13 + $0x228] sm:$0xff]
          %v2092 = vld [vmem:[#allocation13 + $0x230] sm:$0xff]
          %v2093 = vld [vmem:[#allocation13 + $0x238] sm:$0xff]
          %v2094 = vld [vmem:[#allocation13 + $0x240] sm:$0xff]
          %v2095 = vld [vmem:[#allocation13 + $0x248] sm:$0xff]
          %v2096 = vld [vmem:[#allocation13 + $0x250] sm:$0xff]
          %v2097 = vld [vmem:[#allocation13 + $0x258] sm:$0xff]
          %v2098 = vld [vmem:[#allocation13 + $0x260] sm:$0xff]
          %v2099 = vld [vmem:[#allocation13 + $0x268] sm:$0xff]
          %v2100 = vld [vmem:[#allocation13 + $0x270] sm:$0xff]
          %v2101 = vld [vmem:[#allocation13 + $0x278] sm:$0xff]
          %v2102 = vld [vmem:[#allocation13 + $0x280] sm:$0xff]
          %v2103 = vld [vmem:[#allocation13 + $0x288] sm:$0xff]
          %v2104 = vld [vmem:[#allocation13 + $0x290] sm:$0xff]
          %v2105 = vld [vmem:[#allocation13 + $0x298] sm:$0xff]
          %v2106 = vld [vmem:[#allocation13 + $0x2a0] sm:$0xff]
          %v2107 = vld [vmem:[#allocation13 + $0x2a8] sm:$0xff]
          %v2108 = vld [vmem:[#allocation13 + $0x2b0] sm:$0xff]
          %v2109 = vld [vmem:[#allocation13 + $0x2b8] sm:$0xff]
          %v2110 = vld [vmem:[#allocation13 + $0x2c0] sm:$0xff]
          %v2111 = vld [vmem:[#allocation13 + $0x2c8] sm:$0xff]
          %v2112 = vld [vmem:[#allocation13 + $0x2d0] sm:$0xff]
          %v2113 = vld [vmem:[#allocation13 + $0x2d8] sm:$0xff]
          %v2114 = vld [vmem:[#allocation13 + $0x2e0] sm:$0xff]
          %v2115 = vld [vmem:[#allocation13 + $0x2e8] sm:$0xff]
          %v2116 = vld [vmem:[#allocation13 + $0x2f0] sm:$0xff]
          %v2117 = vld [vmem:[#allocation13 + $0x2f8] sm:$0xff]
          %v2118 = vld [vmem:[#allocation13 + $0x300] sm:$0xff]
          %v2119 = vld [vmem:[#allocation13 + $0x308] sm:$0xff]
          %v2120 = vld [vmem:[#allocation13 + $0x310] sm:$0xff]
          %v2121 = vld [vmem:[#allocation13 + $0x318] sm:$0xff]
          %v2122 = vld [vmem:[#allocation13 + $0x320] sm:$0xff]
          %v2123 = vld [vmem:[#allocation13 + $0x328] sm:$0xff]
          %v2124 = vld [vmem:[#allocation13 + $0x330] sm:$0xff]
          %v2125 = vld [vmem:[#allocation13 + $0x338] sm:$0xff]
          %v2126 = vld [vmem:[#allocation13 + $0x340] sm:$0xff]
          %v2127 = vld [vmem:[#allocation13 + $0x348] sm:$0xff]
          %v2128 = vld [vmem:[#allocation13 + $0x350] sm:$0xff]
          %v2129 = vld [vmem:[#allocation13 + $0x358] sm:$0xff]
          %v2130 = vld [vmem:[#allocation13 + $0x360] sm:$0xff]
          %v2131 = vld [vmem:[#allocation13 + $0x368] sm:$0xff]
          %v2132 = vld [vmem:[#allocation13 + $0x370] sm:$0xff]
          %v2133 = vld [vmem:[#allocation13 + $0x378] sm:$0xff]
          %v2134 = vld [vmem:[#allocation13 + $0x380] sm:$0xff]
          %v2135 = vld [vmem:[#allocation13 + $0x388] sm:$0xff]
          %v2136 = vld [vmem:[#allocation13 + $0x390] sm:$0xff]
          %v2137 = vld [vmem:[#allocation13 + $0x398] sm:$0xff]
          %v2138 = vld [vmem:[#allocation13 + $0x3a0] sm:$0xff]
          %v2139 = vld [vmem:[#allocation13 + $0x3a8] sm:$0xff]
          %v2140 = vld [vmem:[#allocation13 + $0x3b0] sm:$0xff]
          %v2141 = vld [vmem:[#allocation13 + $0x3b8] sm:$0xff]
          %v2142 = vld [vmem:[#allocation13 + $0x3c0] sm:$0xff]
          %v2143 = vld [vmem:[#allocation13 + $0x3c8] sm:$0xff]
          %v2144 = vld [vmem:[#allocation13 + $0x3d0] sm:$0xff]
          %v2145 = vld [vmem:[#allocation13 + $0x3d8] sm:$0xff]
          %v2146 = vld [vmem:[#allocation13 + $0x3e0] sm:$0xff]
          %v2147 = vld [vmem:[#allocation13 + $0x3e8] sm:$0xff]
          %v2148 = vld [vmem:[#allocation13 + $0x3f0] sm:$0xff]
          %v2149 = vld [vmem:[#allocation13 + $0x3f8] sm:$0xff]
          %v2278 = vunpack.c.l.b16 %v2022
          %v2279 = vunpack.c.h.b16 %v2022
          %v2280 = vunpack.c.l.b16 %v2023
          %v2281 = vunpack.c.h.b16 %v2023
          %v2282 = vunpack.c.l.b16 %v2024
          %v2283 = vunpack.c.h.b16 %v2024
          %v2284 = vunpack.c.l.b16 %v2025
          %v2285 = vunpack.c.h.b16 %v2025
          %v2286 = vunpack.c.l.b16 %v2026
          %v2287 = vunpack.c.h.b16 %v2026
          %v2288 = vunpack.c.l.b16 %v2027
          %v2289 = vunpack.c.h.b16 %v2027
          %v2290 = vunpack.c.l.b16 %v2028
          %v2291 = vunpack.c.h.b16 %v2028
          %v2292 = vunpack.c.l.b16 %v2029
          %v2293 = vunpack.c.h.b16 %v2029
          %v2294 = vunpack.c.l.b16 %v2030
          %v2295 = vunpack.c.h.b16 %v2030
          %v2296 = vunpack.c.l.b16 %v2031
          %v2297 = vunpack.c.h.b16 %v2031
          %v2298 = vunpack.c.l.b16 %v2032
          %v2299 = vunpack.c.h.b16 %v2032
          %v2300 = vunpack.c.l.b16 %v2033
          %v2301 = vunpack.c.h.b16 %v2033
          %v2302 = vunpack.c.l.b16 %v2034
          %v2303 = vunpack.c.h.b16 %v2034
          %v2304 = vunpack.c.l.b16 %v2035
          %v2305 = vunpack.c.h.b16 %v2035
          %v2306 = vunpack.c.l.b16 %v2036
          %v2307 = vunpack.c.h.b16 %v2036
          %v2308 = vunpack.c.l.b16 %v2037
          %v2309 = vunpack.c.h.b16 %v2037
          %v2310 = vunpack.c.l.b16 %v2038
          %v2311 = vunpack.c.h.b16 %v2038
          %v2312 = vunpack.c.l.b16 %v2039
          %v2313 = vunpack.c.h.b16 %v2039
          %v2314 = vunpack.c.l.b16 %v2040
          %v2315 = vunpack.c.h.b16 %v2040
          %v2316 = vunpack.c.l.b16 %v2041
          %v2317 = vunpack.c.h.b16 %v2041
          %v2318 = vunpack.c.l.b16 %v2042
          %v2319 = vunpack.c.h.b16 %v2042
          %v2320 = vunpack.c.l.b16 %v2043
          %v2321 = vunpack.c.h.b16 %v2043
          %v2322 = vunpack.c.l.b16 %v2044
          %v2323 = vunpack.c.h.b16 %v2044
          %v2324 = vunpack.c.l.b16 %v2045
          %v2325 = vunpack.c.h.b16 %v2045
          %v2326 = vunpack.c.l.b16 %v2046
          %v2327 = vunpack.c.h.b16 %v2046
          %v2328 = vunpack.c.l.b16 %v2047
          %v2329 = vunpack.c.h.b16 %v2047
          %v2330 = vunpack.c.l.b16 %v2048
          %v2331 = vunpack.c.h.b16 %v2048
          %v2332 = vunpack.c.l.b16 %v2049
          %v2333 = vunpack.c.h.b16 %v2049
          %v2334 = vunpack.c.l.b16 %v2050
          %v2335 = vunpack.c.h.b16 %v2050
          %v2336 = vunpack.c.l.b16 %v2051
          %v2337 = vunpack.c.h.b16 %v2051
          %v2338 = vunpack.c.l.b16 %v2052
          %v2339 = vunpack.c.h.b16 %v2052
          %v2340 = vunpack.c.l.b16 %v2053
          %v2341 = vunpack.c.h.b16 %v2053
          %v2342 = vunpack.c.l.b16 %v2054
          %v2343 = vunpack.c.h.b16 %v2054
          %v2344 = vunpack.c.l.b16 %v2055
          %v2345 = vunpack.c.h.b16 %v2055
          %v2346 = vunpack.c.l.b16 %v2056
          %v2347 = vunpack.c.h.b16 %v2056
          %v2348 = vunpack.c.l.b16 %v2057
          %v2349 = vunpack.c.h.b16 %v2057
          %v2350 = vunpack.c.l.b16 %v2058
          %v2351 = vunpack.c.h.b16 %v2058
          %v2352 = vunpack.c.l.b16 %v2059
          %v2353 = vunpack.c.h.b16 %v2059
          %v2354 = vunpack.c.l.b16 %v2060
          %v2355 = vunpack.c.h.b16 %v2060
          %v2356 = vunpack.c.l.b16 %v2061
          %v2357 = vunpack.c.h.b16 %v2061
          %v2358 = vunpack.c.l.b16 %v2062
          %v2359 = vunpack.c.h.b16 %v2062
          %v2360 = vunpack.c.l.b16 %v2063
          %v2361 = vunpack.c.h.b16 %v2063
          %v2362 = vunpack.c.l.b16 %v2064
          %v2363 = vunpack.c.h.b16 %v2064
          %v2364 = vunpack.c.l.b16 %v2065
          %v2365 = vunpack.c.h.b16 %v2065
          %v2366 = vunpack.c.l.b16 %v2066
          %v2367 = vunpack.c.h.b16 %v2066
          %v2368 = vunpack.c.l.b16 %v2067
          %v2369 = vunpack.c.h.b16 %v2067
          %v2370 = vunpack.c.l.b16 %v2068
          %v2371 = vunpack.c.h.b16 %v2068
          %v2372 = vunpack.c.l.b16 %v2069
          %v2373 = vunpack.c.h.b16 %v2069
          %v2374 = vunpack.c.l.b16 %v2070
          %v2375 = vunpack.c.h.b16 %v2070
          %v2376 = vunpack.c.l.b16 %v2071
          %v2377 = vunpack.c.h.b16 %v2071
          %v2378 = vunpack.c.l.b16 %v2072
          %v2379 = vunpack.c.h.b16 %v2072
          %v2380 = vunpack.c.l.b16 %v2073
          %v2381 = vunpack.c.h.b16 %v2073
          %v2382 = vunpack.c.l.b16 %v2074
          %v2383 = vunpack.c.h.b16 %v2074
          %v2384 = vunpack.c.l.b16 %v2075
          %v2385 = vunpack.c.h.b16 %v2075
          %v2386 = vunpack.c.l.b16 %v2076
          %v2387 = vunpack.c.h.b16 %v2076
          %v2388 = vunpack.c.l.b16 %v2077
          %v2389 = vunpack.c.h.b16 %v2077
          %v2390 = vunpack.c.l.b16 %v2078
          %v2391 = vunpack.c.h.b16 %v2078
          %v2392 = vunpack.c.l.b16 %v2079
          %v2393 = vunpack.c.h.b16 %v2079
          %v2394 = vunpack.c.l.b16 %v2080
          %v2395 = vunpack.c.h.b16 %v2080
          %v2396 = vunpack.c.l.b16 %v2081
          %v2397 = vunpack.c.h.b16 %v2081
          %v2398 = vunpack.c.l.b16 %v2082
          %v2399 = vunpack.c.h.b16 %v2082
          %v2400 = vunpack.c.l.b16 %v2083
          %v2401 = vunpack.c.h.b16 %v2083
          %v2402 = vunpack.c.l.b16 %v2084
          %v2403 = vunpack.c.h.b16 %v2084
          %v2404 = vunpack.c.l.b16 %v2085
          %v2405 = vunpack.c.h.b16 %v2085
          %v2406 = vunpack.c.l.b16 %v2086
          %v2407 = vunpack.c.h.b16 %v2086
          %v2408 = vunpack.c.l.b16 %v2087
          %v2409 = vunpack.c.h.b16 %v2087
          %v2410 = vunpack.c.l.b16 %v2088
          %v2411 = vunpack.c.h.b16 %v2088
          %v2412 = vunpack.c.l.b16 %v2089
          %v2413 = vunpack.c.h.b16 %v2089
          %v2414 = vunpack.c.l.b16 %v2090
          %v2415 = vunpack.c.h.b16 %v2090
          %v2416 = vunpack.c.l.b16 %v2091
          %v2417 = vunpack.c.h.b16 %v2091
          %v2418 = vunpack.c.l.b16 %v2092
          %v2419 = vunpack.c.h.b16 %v2092
          %v2420 = vunpack.c.l.b16 %v2093
          %v2421 = vunpack.c.h.b16 %v2093
          %v2422 = vunpack.c.l.b16 %v2094
          %v2423 = vunpack.c.h.b16 %v2094
          %v2424 = vunpack.c.l.b16 %v2095
          %v2425 = vunpack.c.h.b16 %v2095
          %v2426 = vunpack.c.l.b16 %v2096
          %v2427 = vunpack.c.h.b16 %v2096
          %v2428 = vunpack.c.l.b16 %v2097
          %v2429 = vunpack.c.h.b16 %v2097
          %v2430 = vunpack.c.l.b16 %v2098
          %v2431 = vunpack.c.h.b16 %v2098
          %v2432 = vunpack.c.l.b16 %v2099
          %v2433 = vunpack.c.h.b16 %v2099
          %v2434 = vunpack.c.l.b16 %v2100
          %v2435 = vunpack.c.h.b16 %v2100
          %v2436 = vunpack.c.l.b16 %v2101
          %v2437 = vunpack.c.h.b16 %v2101
          %v2438 = vunpack.c.l.b16 %v2102
          %v2439 = vunpack.c.h.b16 %v2102
          %v2440 = vunpack.c.l.b16 %v2103
          %v2441 = vunpack.c.h.b16 %v2103
          %v2442 = vunpack.c.l.b16 %v2104
          %v2443 = vunpack.c.h.b16 %v2104
          %v2444 = vunpack.c.l.b16 %v2105
          %v2445 = vunpack.c.h.b16 %v2105
          %v2446 = vunpack.c.l.b16 %v2106
          %v2447 = vunpack.c.h.b16 %v2106
          %v2448 = vunpack.c.l.b16 %v2107
          %v2449 = vunpack.c.h.b16 %v2107
          %v2450 = vunpack.c.l.b16 %v2108
          %v2451 = vunpack.c.h.b16 %v2108
          %v2452 = vunpack.c.l.b16 %v2109
          %v2453 = vunpack.c.h.b16 %v2109
          %v2454 = vunpack.c.l.b16 %v2110
          %v2455 = vunpack.c.h.b16 %v2110
          %v2456 = vunpack.c.l.b16 %v2111
          %v2457 = vunpack.c.h.b16 %v2111
          %v2458 = vunpack.c.l.b16 %v2112
          %v2459 = vunpack.c.h.b16 %v2112
          %v2460 = vunpack.c.l.b16 %v2113
          %v2461 = vunpack.c.h.b16 %v2113
          %v2462 = vunpack.c.l.b16 %v2114
          %v2463 = vunpack.c.h.b16 %v2114
          %v2464 = vunpack.c.l.b16 %v2115
          %v2465 = vunpack.c.h.b16 %v2115
          %v2466 = vunpack.c.l.b16 %v2116
          %v2467 = vunpack.c.h.b16 %v2116
          %v2468 = vunpack.c.l.b16 %v2117
          %v2469 = vunpack.c.h.b16 %v2117
          %v2470 = vunpack.c.l.b16 %v2118
          %v2471 = vunpack.c.h.b16 %v2118
          %v2472 = vunpack.c.l.b16 %v2119
          %v2473 = vunpack.c.h.b16 %v2119
          %v2474 = vunpack.c.l.b16 %v2120
          %v2475 = vunpack.c.h.b16 %v2120
          %v2476 = vunpack.c.l.b16 %v2121
          %v2477 = vunpack.c.h.b16 %v2121
          %v2478 = vunpack.c.l.b16 %v2122
          %v2479 = vunpack.c.h.b16 %v2122
          %v2480 = vunpack.c.l.b16 %v2123
          %v2481 = vunpack.c.h.b16 %v2123
          %v2482 = vunpack.c.l.b16 %v2124
          %v2483 = vunpack.c.h.b16 %v2124
          %v2484 = vunpack.c.l.b16 %v2125
          %v2485 = vunpack.c.h.b16 %v2125
          %v2486 = vunpack.c.l.b16 %v2126
          %v2487 = vunpack.c.h.b16 %v2126
          %v2488 = vunpack.c.l.b16 %v2127
          %v2489 = vunpack.c.h.b16 %v2127
          %v2490 = vunpack.c.l.b16 %v2128
          %v2491 = vunpack.c.h.b16 %v2128
          %v2492 = vunpack.c.l.b16 %v2129
          %v2493 = vunpack.c.h.b16 %v2129
          %v2494 = vunpack.c.l.b16 %v2130
          %v2495 = vunpack.c.h.b16 %v2130
          %v2496 = vunpack.c.l.b16 %v2131
          %v2497 = vunpack.c.h.b16 %v2131
          %v2498 = vunpack.c.l.b16 %v2132
          %v2499 = vunpack.c.h.b16 %v2132
          %v2500 = vunpack.c.l.b16 %v2133
          %v2501 = vunpack.c.h.b16 %v2133
          %v2502 = vunpack.c.l.b16 %v2134
          %v2503 = vunpack.c.h.b16 %v2134
          %v2504 = vunpack.c.l.b16 %v2135
          %v2505 = vunpack.c.h.b16 %v2135
          %v2506 = vunpack.c.l.b16 %v2136
          %v2507 = vunpack.c.h.b16 %v2136
          %v2508 = vunpack.c.l.b16 %v2137
          %v2509 = vunpack.c.h.b16 %v2137
          %v2510 = vunpack.c.l.b16 %v2138
          %v2511 = vunpack.c.h.b16 %v2138
          %v2512 = vunpack.c.l.b16 %v2139
          %v2513 = vunpack.c.h.b16 %v2139
          %v2514 = vunpack.c.l.b16 %v2140
          %v2515 = vunpack.c.h.b16 %v2140
          %v2516 = vunpack.c.l.b16 %v2141
          %v2517 = vunpack.c.h.b16 %v2141
          %v2518 = vunpack.c.l.b16 %v2142
          %v2519 = vunpack.c.h.b16 %v2142
          %v2520 = vunpack.c.l.b16 %v2143
          %v2521 = vunpack.c.h.b16 %v2143
          %v2522 = vunpack.c.l.b16 %v2144
          %v2523 = vunpack.c.h.b16 %v2144
          %v2524 = vunpack.c.l.b16 %v2145
          %v2525 = vunpack.c.h.b16 %v2145
          %v2526 = vunpack.c.l.b16 %v2146
          %v2527 = vunpack.c.h.b16 %v2146
          %v2528 = vunpack.c.l.b16 %v2147
          %v2529 = vunpack.c.h.b16 %v2147
          %v2530 = vunpack.c.l.b16 %v2148
          %v2531 = vunpack.c.h.b16 %v2148
          %v2532 = vunpack.c.l.b16 %v2149
          %v2533 = vunpack.c.h.b16 %v2149
          %v2534 = vpack.c.b16 %v2282, %v2278
          %v2535 = vpack.c.b16 %v2283, %v2279
          %v2536 = vpack.c.b16 %v2284, %v2280
          %v2537 = vpack.c.b16 %v2285, %v2281
          %v2538 = vpack.c.b16 %v2290, %v2286
          %v2539 = vpack.c.b16 %v2291, %v2287
          %v2540 = vpack.c.b16 %v2292, %v2288
          %v2541 = vpack.c.b16 %v2293, %v2289
          %v2542 = vpack.c.b16 %v2298, %v2294
          %v2543 = vpack.c.b16 %v2299, %v2295
          %v2544 = vpack.c.b16 %v2300, %v2296
          %v2545 = vpack.c.b16 %v2301, %v2297
          %v2546 = vpack.c.b16 %v2306, %v2302
          %v2547 = vpack.c.b16 %v2307, %v2303
          %v2548 = vpack.c.b16 %v2308, %v2304
          %v2549 = vpack.c.b16 %v2309, %v2305
          %v2550 = vpack.c.b16 %v2314, %v2310
          %v2551 = vpack.c.b16 %v2315, %v2311
          %v2552 = vpack.c.b16 %v2316, %v2312
          %v2553 = vpack.c.b16 %v2317, %v2313
          %v2554 = vpack.c.b16 %v2322, %v2318
          %v2555 = vpack.c.b16 %v2323, %v2319
          %v2556 = vpack.c.b16 %v2324, %v2320
          %v2557 = vpack.c.b16 %v2325, %v2321
          %v2558 = vpack.c.b16 %v2330, %v2326
          %v2559 = vpack.c.b16 %v2331, %v2327
          %v2560 = vpack.c.b16 %v2332, %v2328
          %v2561 = vpack.c.b16 %v2333, %v2329
          %v2562 = vpack.c.b16 %v2338, %v2334
          %v2563 = vpack.c.b16 %v2339, %v2335
          %v2564 = vpack.c.b16 %v2340, %v2336
          %v2565 = vpack.c.b16 %v2341, %v2337
          %v2566 = vpack.c.b16 %v2346, %v2342
          %v2567 = vpack.c.b16 %v2347, %v2343
          %v2568 = vpack.c.b16 %v2348, %v2344
          %v2569 = vpack.c.b16 %v2349, %v2345
          %v2570 = vpack.c.b16 %v2354, %v2350
          %v2571 = vpack.c.b16 %v2355, %v2351
          %v2572 = vpack.c.b16 %v2356, %v2352
          %v2573 = vpack.c.b16 %v2357, %v2353
          %v2574 = vpack.c.b16 %v2362, %v2358
          %v2575 = vpack.c.b16 %v2363, %v2359
          %v2576 = vpack.c.b16 %v2364, %v2360
          %v2577 = vpack.c.b16 %v2365, %v2361
          %v2578 = vpack.c.b16 %v2370, %v2366
          %v2579 = vpack.c.b16 %v2371, %v2367
          %v2580 = vpack.c.b16 %v2372, %v2368
          %v2581 = vpack.c.b16 %v2373, %v2369
          %v2582 = vpack.c.b16 %v2378, %v2374
          %v2583 = vpack.c.b16 %v2379, %v2375
          %v2584 = vpack.c.b16 %v2380, %v2376
          %v2585 = vpack.c.b16 %v2381, %v2377
          %v2586 = vpack.c.b16 %v2386, %v2382
          %v2587 = vpack.c.b16 %v2387, %v2383
          %v2588 = vpack.c.b16 %v2388, %v2384
          %v2589 = vpack.c.b16 %v2389, %v2385
          %v2590 = vpack.c.b16 %v2394, %v2390
          %v2591 = vpack.c.b16 %v2395, %v2391
          %v2592 = vpack.c.b16 %v2396, %v2392
          %v2593 = vpack.c.b16 %v2397, %v2393
          %v2594 = vpack.c.b16 %v2402, %v2398
          %v2595 = vpack.c.b16 %v2403, %v2399
          %v2596 = vpack.c.b16 %v2404, %v2400
          %v2597 = vpack.c.b16 %v2405, %v2401
          %v2598 = vpack.c.b16 %v2410, %v2406
          %v2599 = vpack.c.b16 %v2411, %v2407
          %v2600 = vpack.c.b16 %v2412, %v2408
          %v2601 = vpack.c.b16 %v2413, %v2409
          %v2602 = vpack.c.b16 %v2418, %v2414
          %v2603 = vpack.c.b16 %v2419, %v2415
          %v2604 = vpack.c.b16 %v2420, %v2416
          %v2605 = vpack.c.b16 %v2421, %v2417
          %v2606 = vpack.c.b16 %v2426, %v2422
          %v2607 = vpack.c.b16 %v2427, %v2423
          %v2608 = vpack.c.b16 %v2428, %v2424
          %v2609 = vpack.c.b16 %v2429, %v2425
          %v2610 = vpack.c.b16 %v2434, %v2430
          %v2611 = vpack.c.b16 %v2435, %v2431
          %v2612 = vpack.c.b16 %v2436, %v2432
          %v2613 = vpack.c.b16 %v2437, %v2433
          %v2614 = vpack.c.b16 %v2442, %v2438
          %v2615 = vpack.c.b16 %v2443, %v2439
          %v2616 = vpack.c.b16 %v2444, %v2440
          %v2617 = vpack.c.b16 %v2445, %v2441
          %v2618 = vpack.c.b16 %v2450, %v2446
          %v2619 = vpack.c.b16 %v2451, %v2447
          %v2620 = vpack.c.b16 %v2452, %v2448
          %v2621 = vpack.c.b16 %v2453, %v2449
          %v2622 = vpack.c.b16 %v2458, %v2454
          %v2623 = vpack.c.b16 %v2459, %v2455
          %v2624 = vpack.c.b16 %v2460, %v2456
          %v2625 = vpack.c.b16 %v2461, %v2457
          %v2626 = vpack.c.b16 %v2466, %v2462
          %v2627 = vpack.c.b16 %v2467, %v2463
          %v2628 = vpack.c.b16 %v2468, %v2464
          %v2629 = vpack.c.b16 %v2469, %v2465
          %v2630 = vpack.c.b16 %v2474, %v2470
          %v2631 = vpack.c.b16 %v2475, %v2471
          %v2632 = vpack.c.b16 %v2476, %v2472
          %v2633 = vpack.c.b16 %v2477, %v2473
          %v2634 = vpack.c.b16 %v2482, %v2478
          %v2635 = vpack.c.b16 %v2483, %v2479
          %v2636 = vpack.c.b16 %v2484, %v2480
          %v2637 = vpack.c.b16 %v2485, %v2481
          %v2638 = vpack.c.b16 %v2490, %v2486
          %v2639 = vpack.c.b16 %v2491, %v2487
          %v2640 = vpack.c.b16 %v2492, %v2488
          %v2641 = vpack.c.b16 %v2493, %v2489
          %v2642 = vpack.c.b16 %v2498, %v2494
          %v2643 = vpack.c.b16 %v2499, %v2495
          %v2644 = vpack.c.b16 %v2500, %v2496
          %v2645 = vpack.c.b16 %v2501, %v2497
          %v2646 = vpack.c.b16 %v2506, %v2502
          %v2647 = vpack.c.b16 %v2507, %v2503
          %v2648 = vpack.c.b16 %v2508, %v2504
          %v2649 = vpack.c.b16 %v2509, %v2505
          %v2650 = vpack.c.b16 %v2514, %v2510
          %v2651 = vpack.c.b16 %v2515, %v2511
          %v2652 = vpack.c.b16 %v2516, %v2512
          %v2653 = vpack.c.b16 %v2517, %v2513
          %v2654 = vpack.c.b16 %v2522, %v2518
          %v2655 = vpack.c.b16 %v2523, %v2519
          %v2656 = vpack.c.b16 %v2524, %v2520
          %v2657 = vpack.c.b16 %v2525, %v2521
          %v2658 = vpack.c.b16 %v2530, %v2526
          %v2659 = vpack.c.b16 %v2531, %v2527
          %v2660 = vpack.c.b16 %v2532, %v2528
          %v2661 = vpack.c.b16 %v2533, %v2529
          %2790 = vmatprep.subr.bf16.mxu0 %v2535
          %2791 = vmatpush1.bf16.msra.mxu0 %v2534
          %2792 = vmatprep.subr.bf16.mxu0 %v2539
          %2793 = vmatpush1.bf16.msra.mxu0 %v2538
          %2794 = vmatprep.subr.bf16.mxu0 %v2543
          %2795 = vmatpush1.bf16.msra.mxu0 %v2542
          %2796 = vmatprep.subr.bf16.mxu0 %v2547
          %2797 = vmatpush1.bf16.msra.mxu0 %v2546
          %2798 = vmatprep.subr.bf16.mxu0 %v2551
          %2799 = vmatpush1.bf16.msra.mxu0 %v2550
          %2800 = vmatprep.subr.bf16.mxu0 %v2555
          %2801 = vmatpush1.bf16.msra.mxu0 %v2554
          %2802 = vmatprep.subr.bf16.mxu0 %v2559
          %2803 = vmatpush1.bf16.msra.mxu0 %v2558
          %2804 = vmatprep.subr.bf16.mxu0 %v2563
          %2805 = vmatpush1.bf16.msra.mxu0 %v2562
          %2806 = vmatprep.subr.bf16.mxu0 %v2567
          %2807 = vmatpush1.bf16.msra.mxu0 %v2566
          %2808 = vmatprep.subr.bf16.mxu0 %v2571
          %2809 = vmatpush1.bf16.msra.mxu0 %v2570
          %2810 = vmatprep.subr.bf16.mxu0 %v2575
          %2811 = vmatpush1.bf16.msra.mxu0 %v2574
          %2812 = vmatprep.subr.bf16.mxu0 %v2579
          %2813 = vmatpush1.bf16.msra.mxu0 %v2578
          %2814 = vmatprep.subr.bf16.mxu0 %v2583
          %2815 = vmatpush1.bf16.msra.mxu0 %v2582
          %2816 = vmatprep.subr.bf16.mxu0 %v2587
          %2817 = vmatpush1.bf16.msra.mxu0 %v2586
          %2818 = vmatprep.subr.bf16.mxu0 %v2591
          %2819 = vmatpush1.bf16.msra.mxu0 %v2590
          %2820 = vmatprep.subr.bf16.mxu0 %v2595
          %2821 = vmatpush1.bf16.msra.mxu0 %v2594
          %2822 = vmatprep.mubr.bf16.mxu0 %v2019
          %2823 = vmatmul.mubr.bf16.gmra.mrb[0].mxu0 %v2018
          %v2824 = vpop.f32.mrb[0].mxu0
          %v2825 = vadd.f32 0.0, %v2824
          %v2826 = vpop.f32.mrb[0].mxu0
          %v2827 = vadd.f32 0.0, %v2826
          %v2828 = vpop.f32.mrb[0].mxu0
          %v2829 = vadd.f32 0.0, %v2828
          %v2830 = vpop.f32.mrb[0].mxu0
          %v2831 = vadd.f32 0.0, %v2830
          %2832 = vdwg.mxu0
          %2833 = vmatprep.subr.bf16.mxu0 %v2599
          %2834 = vmatpush1.bf16.msra.mxu0 %v2598
          %2835 = vmatprep.subr.bf16.mxu0 %v2603
          %2836 = vmatpush1.bf16.msra.mxu0 %v2602
          %2837 = vmatprep.subr.bf16.mxu0 %v2607
          %2838 = vmatpush1.bf16.msra.mxu0 %v2606
          %2839 = vmatprep.subr.bf16.mxu0 %v2611
          %2840 = vmatpush1.bf16.msra.mxu0 %v2610
          %2841 = vmatprep.subr.bf16.mxu0 %v2615
          %2842 = vmatpush1.bf16.msra.mxu0 %v2614
          %2843 = vmatprep.subr.bf16.mxu0 %v2619
          %2844 = vmatpush1.bf16.msra.mxu0 %v2618
          %2845 = vmatprep.subr.bf16.mxu0 %v2623
          %2846 = vmatpush1.bf16.msra.mxu0 %v2622
          %2847 = vmatprep.subr.bf16.mxu0 %v2627
          %2848 = vmatpush1.bf16.msra.mxu0 %v2626
          %2849 = vmatprep.subr.bf16.mxu0 %v2631
          %2850 = vmatpush1.bf16.msra.mxu0 %v2630
          %2851 = vmatprep.subr.bf16.mxu0 %v2635
          %2852 = vmatpush1.bf16.msra.mxu0 %v2634
          %2853 = vmatprep.subr.bf16.mxu0 %v2639
          %2854 = vmatpush1.bf16.msra.mxu0 %v2638
          %2855 = vmatprep.subr.bf16.mxu0 %v2643
          %2856 = vmatpush1.bf16.msra.mxu0 %v2642
          %2857 = vmatprep.subr.bf16.mxu0 %v2647
          %2858 = vmatpush1.bf16.msra.mxu0 %v2646
          %2859 = vmatprep.subr.bf16.mxu0 %v2651
          %2860 = vmatpush1.bf16.msra.mxu0 %v2650
          %2861 = vmatprep.subr.bf16.mxu0 %v2655
          %2862 = vmatpush1.bf16.msra.mxu0 %v2654
          %2863 = vmatprep.subr.bf16.mxu0 %v2659
          %2864 = vmatpush1.bf16.msra.mxu0 %v2658
          %2865 = vmatprep.mubr.bf16.mxu0 %v2021
          %2866 = vmatmul.mubr.bf16.gmra.mrb[0].mxu0 %v2020
          %v2867 = vpop.f32.mrb[0].mxu0
          %v2868 = vadd.f32 %v2825, %v2867
          %v2869 = vpop.f32.mrb[0].mxu0
          %v2870 = vadd.f32 %v2827, %v2869
          %v2871 = vpop.f32.mrb[0].mxu0
          %v2872 = vadd.f32 %v2829, %v2871
          %v2873 = vpop.f32.mrb[0].mxu0
          %v2874 = vadd.f32 %v2831, %v2873
          %2875 = vdwg.mxu0
          %2876 = vmatprep.subr.bf16.mxu0 %v2537
          %2877 = vmatpush1.bf16.msra.mxu0 %v2536
          %2878 = vmatprep.subr.bf16.mxu0 %v2541
          %2879 = vmatpush1.bf16.msra.mxu0 %v2540
          %2880 = vmatprep.subr.bf16.mxu0 %v2545
          %2881 = vmatpush1.bf16.msra.mxu0 %v2544
          %2882 = vmatprep.subr.bf16.mxu0 %v2549
          %2883 = vmatpush1.bf16.msra.mxu0 %v2548
          %2884 = vmatprep.subr.bf16.mxu0 %v2553
          %2885 = vmatpush1.bf16.msra.mxu0 %v2552
          %2886 = vmatprep.subr.bf16.mxu0 %v2557
          %2887 = vmatpush1.bf16.msra.mxu0 %v2556
          %2888 = vmatprep.subr.bf16.mxu0 %v2561
          %2889 = vmatpush1.bf16.msra.mxu0 %v2560
          %2890 = vmatprep.subr.bf16.mxu0 %v2565
          %2891 = vmatpush1.bf16.msra.mxu0 %v2564
          %2892 = vmatprep.subr.bf16.mxu0 %v2569
          %2893 = vmatpush1.bf16.msra.mxu0 %v2568
          %2894 = vmatprep.subr.bf16.mxu0 %v2573
          %2895 = vmatpush1.bf16.msra.mxu0 %v2572
          %2896 = vmatprep.subr.bf16.mxu0 %v2577
          %2897 = vmatpush1.bf16.msra.mxu0 %v2576
          %2898 = vmatprep.subr.bf16.mxu0 %v2581
          %2899 = vmatpush1.bf16.msra.mxu0 %v2580
          %2900 = vmatprep.subr.bf16.mxu0 %v2585
          %2901 = vmatpush1.bf16.msra.mxu0 %v2584
          %2902 = vmatprep.subr.bf16.mxu0 %v2589
          %2903 = vmatpush1.bf16.msra.mxu0 %v2588
          %2904 = vmatprep.subr.bf16.mxu0 %v2593
          %2905 = vmatpush1.bf16.msra.mxu0 %v2592
          %2906 = vmatprep.subr.bf16.mxu0 %v2597
          %2907 = vmatpush1.bf16.msra.mxu0 %v2596
          %2908 = vmatprep.mubr.bf16.mxu0 %v2019
          %2909 = vmatmul.mubr.bf16.gmra.mrb[0].mxu0 %v2018
          %v2910 = vpop.f32.mrb[0].mxu0
          %v2911 = vadd.f32 0.0, %v2910
          %v2912 = vpop.f32.mrb[0].mxu0
          %v2913 = vadd.f32 0.0, %v2912
          %v2914 = vpop.f32.mrb[0].mxu0
          %v2915 = vadd.f32 0.0, %v2914
          %v2916 = vpop.f32.mrb[0].mxu0
          %v2917 = vadd.f32 0.0, %v2916
          %2918 = vdwg.mxu0
          %2919 = vmatprep.subr.bf16.mxu0 %v2601
          %2920 = vmatpush1.bf16.msra.mxu0 %v2600
          %2921 = vmatprep.subr.bf16.mxu0 %v2605
          %2922 = vmatpush1.bf16.msra.mxu0 %v2604
          %2923 = vmatprep.subr.bf16.mxu0 %v2609
          %2924 = vmatpush1.bf16.msra.mxu0 %v2608
          %2925 = vmatprep.subr.bf16.mxu0 %v2613
          %2926 = vmatpush1.bf16.msra.mxu0 %v2612
          %2927 = vmatprep.subr.bf16.mxu0 %v2617
          %2928 = vmatpush1.bf16.msra.mxu0 %v2616
          %2929 = vmatprep.subr.bf16.mxu0 %v2621
          %2930 = vmatpush1.bf16.msra.mxu0 %v2620
          %2931 = vmatprep.subr.bf16.mxu0 %v2625
          %2932 = vmatpush1.bf16.msra.mxu0 %v2624
          %2933 = vmatprep.subr.bf16.mxu0 %v2629
          %2934 = vmatpush1.bf16.msra.mxu0 %v2628
          %2935 = vmatprep.subr.bf16.mxu0 %v2633
          %2936 = vmatpush1.bf16.msra.mxu0 %v2632
          %2937 = vmatprep.subr.bf16.mxu0 %v2637
          %2938 = vmatpush1.bf16.msra.mxu0 %v2636
          %2939 = vmatprep.subr.bf16.mxu0 %v2641
          %2940 = vmatpush1.bf16.msra.mxu0 %v2640
          %2941 = vmatprep.subr.bf16.mxu0 %v2645
          %2942 = vmatpush1.bf16.msra.mxu0 %v2644
          %2943 = vmatprep.subr.bf16.mxu0 %v2649
          %2944 = vmatpush1.bf16.msra.mxu0 %v2648
          %2945 = vmatprep.subr.bf16.mxu0 %v2653
          %2946 = vmatpush1.bf16.msra.mxu0 %v2652
          %2947 = vmatprep.subr.bf16.mxu0 %v2657
          %2948 = vmatpush1.bf16.msra.mxu0 %v2656
          %2949 = vmatprep.subr.bf16.mxu0 %v2661
          %2950 = vmatpush1.bf16.msra.mxu0 %v2660
          %2951 = vmatprep.mubr.bf16.mxu0 %v2021
          %2952 = vmatmul.mubr.bf16.gmra.mrb[0].mxu0 %v2020
          %v2953 = vpop.f32.mrb[0].mxu0
          %v2954 = vadd.f32 %v2911, %v2953
          %v2955 = vpop.f32.mrb[0].mxu0
          %v2956 = vadd.f32 %v2913, %v2955
          %v2957 = vpop.f32.mrb[0].mxu0
          %v2958 = vadd.f32 %v2915, %v2957
          %v2959 = vpop.f32.mrb[0].mxu0
          %v2960 = vadd.f32 %v2917, %v2959
          %2961 = vdwg.mxu0
          %v2962 = vld [vmem:[#allocation14] sm:$0xf]
          %v2963 = vld [vmem:[#allocation16] sm:$0xf]
          %v2964 = vadd.f32 %v2868, %v2872
          %v2965 = vrot.slane %v2964, 4
          %v2966 = vadd.f32 %v2964, %v2965
          %v2967 = vrot.slane %v2966, 2
          %v2968 = vadd.f32 %v2966, %v2967
          %v2969 = vrot.slane %v2968, 1
          %v2970 = vadd.f32 %v2968, %v2969
          %v2971 = vadd.f32 %v2870, %v2874
          %v2972 = vrot.slane %v2971, 4
          %v2973 = vadd.f32 %v2971, %v2972
          %v2974 = vrot.slane %v2973, 2
          %v2975 = vadd.f32 %v2973, %v2974
          %v2976 = vrot.slane %v2975, 1
          %v2977 = vadd.f32 %v2975, %v2976
          %v2978 = vadd.f32 %v2954, %v2958
          %v2979 = vrot.slane %v2978, 4
          %v2980 = vadd.f32 %v2978, %v2979
          %v2981 = vrot.slane %v2980, 2
          %v2982 = vadd.f32 %v2980, %v2981
          %v2983 = vrot.slane %v2982, 1
          %v2984 = vadd.f32 %v2982, %v2983
          %v2985 = vadd.f32 %v2956, %v2960
          %v2986 = vrot.slane %v2985, 4
          %v2987 = vadd.f32 %v2985, %v2986
          %v2988 = vrot.slane %v2987, 2
          %v2989 = vadd.f32 %v2987, %v2988
          %v2990 = vrot.slane %v2989, 1
          %v2991 = vadd.f32 %v2989, %v2990
          %v2992 = vmul.f32 %v2970, %v1809
          %v2993 = vmul.f32 %v2977, %v1809
          %v2994 = vmul.f32 %v2984, %v1809
          %v2995 = vmul.f32 %v2991, %v1809
          %v2996 = vmul.f32 %v2868, %v2868
          %v2997 = vmul.f32 %v2870, %v2870
          %v2998 = vmul.f32 %v2954, %v2954
          %v2999 = vmul.f32 %v2956, %v2956
          %v3000 = vmul.f32 %v2872, %v2872
          %v3001 = vmul.f32 %v2874, %v2874
          %v3002 = vmul.f32 %v2958, %v2958
          %v3003 = vmul.f32 %v2960, %v2960
          %v3004 = vadd.f32 %v2996, %v3000
          %v3005 = vrot.slane %v3004, 4
          %v3006 = vadd.f32 %v3004, %v3005
          %v3007 = vrot.slane %v3006, 2
          %v3008 = vadd.f32 %v3006, %v3007
          %v3009 = vrot.slane %v3008, 1
          %v3010 = vadd.f32 %v3008, %v3009
          %v3011 = vadd.f32 %v2997, %v3001
          %v3012 = vrot.slane %v3011, 4
          %v3013 = vadd.f32 %v3011, %v3012
          %v3014 = vrot.slane %v3013, 2
          %v3015 = vadd.f32 %v3013, %v3014
          %v3016 = vrot.slane %v3015, 1
          %v3017 = vadd.f32 %v3015, %v3016
          %v3018 = vadd.f32 %v2998, %v3002
          %v3019 = vrot.slane %v3018, 4
          %v3020 = vadd.f32 %v3018, %v3019
          %v3021 = vrot.slane %v3020, 2
          %v3022 = vadd.f32 %v3020, %v3021
          %v3023 = vrot.slane %v3022, 1
          %v3024 = vadd.f32 %v3022, %v3023
          %v3025 = vadd.f32 %v2999, %v3003
          %v3026 = vrot.slane %v3025, 4
          %v3027 = vadd.f32 %v3025, %v3026
          %v3028 = vrot.slane %v3027, 2
          %v3029 = vadd.f32 %v3027, %v3028
          %v3030 = vrot.slane %v3029, 1
          %v3031 = vadd.f32 %v3029, %v3030
          %v3032 = vmul.f32 %v3010, %v1809
          %v3033 = vmul.f32 %v3017, %v1809
          %v3034 = vmul.f32 %v3024, %v1809
          %v3035 = vmul.f32 %v3031, %v1809
          %v3036 = vmul.f32 %v2992, %v2992
          %v3037 = vmul.f32 %v2993, %v2993
          %v3038 = vmul.f32 %v2994, %v2994
          %v3039 = vmul.f32 %v2995, %v2995
          %v3040 = vsub.f32 %v3032, %v3036
          %v3041 = vsub.f32 %v3033, %v3037
          %v3042 = vsub.f32 %v3034, %v3038
          %v3043 = vsub.f32 %v3035, %v3039
          %v3044 = vadd.f32 %v3040, 1e-05
          %v3045 = vadd.f32 %v3041, 1e-05
          %v3046 = vadd.f32 %v3042, 1e-05
          %v3047 = vadd.f32 %v3043, 1e-05
          %v3048 = vrsqrt.pop %v3044
          %v3049 = vrsqrt.pop %v3045
          %v3050 = vrsqrt.pop %v3046
          %v3051 = vrsqrt.pop %v3047
          %v3056 = vcombine.low %v3048, %v3049
          %v3057 = vcombine.low %v3050, %v3051
          %v3059 = vunpack.c.l.s4 1966171168
          %v3060 = vunpack.c.0.s8 %v3059
          %v3061 = vlaneseq
          %v3062 = vshrl.u32 %v3061, 7
          %v3063 = vsub.s32 %v3060, %v3062
          %v3064 = vrot.slane %v3056, %v3063
          %v3066 = vunpack.c.l.s4 1966171168
          %v3067 = vunpack.c.0.s8 %v3066
          %v3068 = vlaneseq
          %v3069 = vshrl.u32 %v3068, 7
          %v3070 = vsub.s32 %v3067, %v3069
          %v3071 = vrot.slane %v3057, %v3070
          %v3072 = vcombine.low %v3064, %v3071
          %v3074 = vunpack.c.l.s4 1966171168
          %v3075 = vunpack.c.0.s8 %v3074
          %v3076 = vlaneseq
          %v3077 = vshrl.u32 %v3076, 7
          %v3078 = vsub.s32 %v3075, %v3077
          %v3079 = vrot.slane %v3072, %v3078
          %v3081 = vmul.f32 %v2962, %v3079
          %v3083 = vlaneseq
          %v3084 = vshrl.u32 %v3083, 7
          %v3085 = vsub.s32 0, %v3084
          %v3086 = vrot.slane %v3081, %v3085
          %v3087 = vlaneseq
          %v3088 = vshrl.u32 %v3087, 7
          %v3089 = vsub.s32 1, %v3088
          %v3090 = vrot.slane %v3081, %v3089
          %v3091 = vlaneseq
          %v3092 = vshrl.u32 %v3091, 7
          %v3093 = vsub.s32 2, %v3092
          %v3094 = vrot.slane %v3081, %v3093
          %v3095 = vlaneseq
          %v3096 = vshrl.u32 %v3095, 7
          %v3097 = vsub.s32 3, %v3096
          %v3098 = vrot.slane %v3081, %v3097
          %v3103 = vmul.f32 %v2992, %v3086
          %v3104 = vmul.f32 %v2993, %v3090
          %v3105 = vmul.f32 %v2994, %v3094
          %v3106 = vmul.f32 %v2995, %v3098
          %v3111 = vcombine.low %v3103, %v3104
          %v3112 = vcombine.low %v3105, %v3106
          %v3114 = vunpack.c.l.s4 1966171168
          %v3115 = vunpack.c.0.s8 %v3114
          %v3116 = vlaneseq
          %v3117 = vshrl.u32 %v3116, 7
          %v3118 = vsub.s32 %v3115, %v3117
          %v3119 = vrot.slane %v3111, %v3118
          %v3121 = vunpack.c.l.s4 1966171168
          %v3122 = vunpack.c.0.s8 %v3121
          %v3123 = vlaneseq
          %v3124 = vshrl.u32 %v3123, 7
          %v3125 = vsub.s32 %v3122, %v3124
          %v3126 = vrot.slane %v3112, %v3125
          %v3127 = vcombine.low %v3119, %v3126
          %v3129 = vunpack.c.l.s4 1966171168
          %v3130 = vunpack.c.0.s8 %v3129
          %v3131 = vlaneseq
          %v3132 = vshrl.u32 %v3131, 7
          %v3133 = vsub.s32 %v3130, %v3132
          %v3134 = vrot.slane %v3127, %v3133
          %v3136 = vsub.f32 %v2963, %v3134
          %v3137 = vmul.f32 %v2868, %v3086
          %v3138 = vmul.f32 %v2870, %v3090
          %v3139 = vmul.f32 %v2954, %v3094
          %v3140 = vmul.f32 %v2956, %v3098
          %v3141 = vmul.f32 %v2872, %v3086
          %v3142 = vmul.f32 %v2874, %v3090
          %v3143 = vmul.f32 %v2958, %v3094
          %v3144 = vmul.f32 %v2960, %v3098
          %v3146 = vlaneseq
          %v3147 = vshrl.u32 %v3146, 7
          %v3148 = vsub.s32 0, %v3147
          %v3149 = vrot.slane %v3136, %v3148
          %v3150 = vlaneseq
          %v3151 = vshrl.u32 %v3150, 7
          %v3152 = vsub.s32 1, %v3151
          %v3153 = vrot.slane %v3136, %v3152
          %v3154 = vlaneseq
          %v3155 = vshrl.u32 %v3154, 7
          %v3156 = vsub.s32 2, %v3155
          %v3157 = vrot.slane %v3136, %v3156
          %v3158 = vlaneseq
          %v3159 = vshrl.u32 %v3158, 7
          %v3160 = vsub.s32 3, %v3159
          %v3161 = vrot.slane %v3136, %v3160
          %v3166 = vadd.f32 %v3137, %v3149
          %v3167 = vadd.f32 %v3138, %v3153
          %v3168 = vadd.f32 %v3139, %v3157
          %v3169 = vadd.f32 %v3140, %v3161
          %v3170 = vadd.f32 %v3141, %v3149
          %v3171 = vadd.f32 %v3142, %v3153
          %v3172 = vadd.f32 %v3143, %v3157
          %v3173 = vadd.f32 %v3144, %v3161
          %v3174 = vmax.f32 %v3166, 0.0
          %v3175 = vmax.f32 %v3167, 0.0
          %v3176 = vmax.f32 %v3168, 0.0
          %v3177 = vmax.f32 %v3169, 0.0
          %v3178 = vmax.f32 %v3170, 0.0
          %v3179 = vmax.f32 %v3171, 0.0
          %v3180 = vmax.f32 %v3172, 0.0
          %v3181 = vmax.f32 %v3173, 0.0
          %v3182 = vpack.c.bf16 %v3178, %v3174
          %v3183 = vpack.c.bf16 %v3179, %v3175
          %v3184 = vpack.c.bf16 %v3180, %v3176
          %v3185 = vpack.c.bf16 %v3181, %v3177
          %v3186 = vld [vmem:[#allocation17] sm:$0xff]
          %v3187 = vld [vmem:[#allocation17 + $0x8] sm:$0xff]
          %v3188 = vld [vmem:[#allocation17 + $0x10] sm:$0xff]
          %v3189 = vld [vmem:[#allocation17 + $0x18] sm:$0xff]
          %v3190 = vld [vmem:[#allocation17 + $0x20] sm:$0xff]
          %v3191 = vld [vmem:[#allocation17 + $0x28] sm:$0xff]
          %v3192 = vld [vmem:[#allocation17 + $0x30] sm:$0xff]
          %v3193 = vld [vmem:[#allocation17 + $0x38] sm:$0xff]
          %v3194 = vld [vmem:[#allocation17 + $0x40] sm:$0xff]
          %v3195 = vld [vmem:[#allocation17 + $0x48] sm:$0xff]
          %v3196 = vld [vmem:[#allocation17 + $0x50] sm:$0xff]
          %v3197 = vld [vmem:[#allocation17 + $0x58] sm:$0xff]
          %v3198 = vld [vmem:[#allocation17 + $0x60] sm:$0xff]
          %v3199 = vld [vmem:[#allocation17 + $0x68] sm:$0xff]
          %v3200 = vld [vmem:[#allocation17 + $0x70] sm:$0xff]
          %v3201 = vld [vmem:[#allocation17 + $0x78] sm:$0xff]
          %v3202 = vld [vmem:[#allocation17 + $0x80] sm:$0xff]
          %v3203 = vld [vmem:[#allocation17 + $0x88] sm:$0xff]
          %v3204 = vld [vmem:[#allocation17 + $0x90] sm:$0xff]
          %v3205 = vld [vmem:[#allocation17 + $0x98] sm:$0xff]
          %v3206 = vld [vmem:[#allocation17 + $0xa0] sm:$0xff]
          %v3207 = vld [vmem:[#allocation17 + $0xa8] sm:$0xff]
          %v3208 = vld [vmem:[#allocation17 + $0xb0] sm:$0xff]
          %v3209 = vld [vmem:[#allocation17 + $0xb8] sm:$0xff]
          %v3210 = vld [vmem:[#allocation17 + $0xc0] sm:$0xff]
          %v3211 = vld [vmem:[#allocation17 + $0xc8] sm:$0xff]
          %v3212 = vld [vmem:[#allocation17 + $0xd0] sm:$0xff]
          %v3213 = vld [vmem:[#allocation17 + $0xd8] sm:$0xff]
          %v3214 = vld [vmem:[#allocation17 + $0xe0] sm:$0xff]
          %v3215 = vld [vmem:[#allocation17 + $0xe8] sm:$0xff]
          %v3216 = vld [vmem:[#allocation17 + $0xf0] sm:$0xff]
          %v3217 = vld [vmem:[#allocation17 + $0xf8] sm:$0xff]
          %v3218 = vld [vmem:[#allocation17 + $0x100] sm:$0xff]
          %v3219 = vld [vmem:[#allocation17 + $0x108] sm:$0xff]
          %v3220 = vld [vmem:[#allocation17 + $0x110] sm:$0xff]
          %v3221 = vld [vmem:[#allocation17 + $0x118] sm:$0xff]
          %v3222 = vld [vmem:[#allocation17 + $0x120] sm:$0xff]
          %v3223 = vld [vmem:[#allocation17 + $0x128] sm:$0xff]
          %v3224 = vld [vmem:[#allocation17 + $0x130] sm:$0xff]
          %v3225 = vld [vmem:[#allocation17 + $0x138] sm:$0xff]
          %v3226 = vld [vmem:[#allocation17 + $0x140] sm:$0xff]
          %v3227 = vld [vmem:[#allocation17 + $0x148] sm:$0xff]
          %v3228 = vld [vmem:[#allocation17 + $0x150] sm:$0xff]
          %v3229 = vld [vmem:[#allocation17 + $0x158] sm:$0xff]
          %v3230 = vld [vmem:[#allocation17 + $0x160] sm:$0xff]
          %v3231 = vld [vmem:[#allocation17 + $0x168] sm:$0xff]
          %v3232 = vld [vmem:[#allocation17 + $0x170] sm:$0xff]
          %v3233 = vld [vmem:[#allocation17 + $0x178] sm:$0xff]
          %v3234 = vld [vmem:[#allocation17 + $0x180] sm:$0xff]
          %v3235 = vld [vmem:[#allocation17 + $0x188] sm:$0xff]
          %v3236 = vld [vmem:[#allocation17 + $0x190] sm:$0xff]
          %v3237 = vld [vmem:[#allocation17 + $0x198] sm:$0xff]
          %v3238 = vld [vmem:[#allocation17 + $0x1a0] sm:$0xff]
          %v3239 = vld [vmem:[#allocation17 + $0x1a8] sm:$0xff]
          %v3240 = vld [vmem:[#allocation17 + $0x1b0] sm:$0xff]
          %v3241 = vld [vmem:[#allocation17 + $0x1b8] sm:$0xff]
          %v3242 = vld [vmem:[#allocation17 + $0x1c0] sm:$0xff]
          %v3243 = vld [vmem:[#allocation17 + $0x1c8] sm:$0xff]
          %v3244 = vld [vmem:[#allocation17 + $0x1d0] sm:$0xff]
          %v3245 = vld [vmem:[#allocation17 + $0x1d8] sm:$0xff]
          %v3246 = vld [vmem:[#allocation17 + $0x1e0] sm:$0xff]
          %v3247 = vld [vmem:[#allocation17 + $0x1e8] sm:$0xff]
          %v3248 = vld [vmem:[#allocation17 + $0x1f0] sm:$0xff]
          %v3249 = vld [vmem:[#allocation17 + $0x1f8] sm:$0xff]
          %v3250 = vld [vmem:[#allocation17 + $0x200] sm:$0xff]
          %v3251 = vld [vmem:[#allocation17 + $0x208] sm:$0xff]
          %v3252 = vld [vmem:[#allocation17 + $0x210] sm:$0xff]
          %v3253 = vld [vmem:[#allocation17 + $0x218] sm:$0xff]
          %v3254 = vld [vmem:[#allocation17 + $0x220] sm:$0xff]
          %v3255 = vld [vmem:[#allocation17 + $0x228] sm:$0xff]
          %v3256 = vld [vmem:[#allocation17 + $0x230] sm:$0xff]
          %v3257 = vld [vmem:[#allocation17 + $0x238] sm:$0xff]
          %v3258 = vld [vmem:[#allocation17 + $0x240] sm:$0xff]
          %v3259 = vld [vmem:[#allocation17 + $0x248] sm:$0xff]
          %v3260 = vld [vmem:[#allocation17 + $0x250] sm:$0xff]
          %v3261 = vld [vmem:[#allocation17 + $0x258] sm:$0xff]
          %v3262 = vld [vmem:[#allocation17 + $0x260] sm:$0xff]
          %v3263 = vld [vmem:[#allocation17 + $0x268] sm:$0xff]
          %v3264 = vld [vmem:[#allocation17 + $0x270] sm:$0xff]
          %v3265 = vld [vmem:[#allocation17 + $0x278] sm:$0xff]
          %v3266 = vld [vmem:[#allocation17 + $0x280] sm:$0xff]
          %v3267 = vld [vmem:[#allocation17 + $0x288] sm:$0xff]
          %v3268 = vld [vmem:[#allocation17 + $0x290] sm:$0xff]
          %v3269 = vld [vmem:[#allocation17 + $0x298] sm:$0xff]
          %v3270 = vld [vmem:[#allocation17 + $0x2a0] sm:$0xff]
          %v3271 = vld [vmem:[#allocation17 + $0x2a8] sm:$0xff]
          %v3272 = vld [vmem:[#allocation17 + $0x2b0] sm:$0xff]
          %v3273 = vld [vmem:[#allocation17 + $0x2b8] sm:$0xff]
          %v3274 = vld [vmem:[#allocation17 + $0x2c0] sm:$0xff]
          %v3275 = vld [vmem:[#allocation17 + $0x2c8] sm:$0xff]
          %v3276 = vld [vmem:[#allocation17 + $0x2d0] sm:$0xff]
          %v3277 = vld [vmem:[#allocation17 + $0x2d8] sm:$0xff]
          %v3278 = vld [vmem:[#allocation17 + $0x2e0] sm:$0xff]
          %v3279 = vld [vmem:[#allocation17 + $0x2e8] sm:$0xff]
          %v3280 = vld [vmem:[#allocation17 + $0x2f0] sm:$0xff]
          %v3281 = vld [vmem:[#allocation17 + $0x2f8] sm:$0xff]
          %v3282 = vld [vmem:[#allocation17 + $0x300] sm:$0xff]
          %v3283 = vld [vmem:[#allocation17 + $0x308] sm:$0xff]
          %v3284 = vld [vmem:[#allocation17 + $0x310] sm:$0xff]
          %v3285 = vld [vmem:[#allocation17 + $0x318] sm:$0xff]
          %v3286 = vld [vmem:[#allocation17 + $0x320] sm:$0xff]
          %v3287 = vld [vmem:[#allocation17 + $0x328] sm:$0xff]
          %v3288 = vld [vmem:[#allocation17 + $0x330] sm:$0xff]
          %v3289 = vld [vmem:[#allocation17 + $0x338] sm:$0xff]
          %v3290 = vld [vmem:[#allocation17 + $0x340] sm:$0xff]
          %v3291 = vld [vmem:[#allocation17 + $0x348] sm:$0xff]
          %v3292 = vld [vmem:[#allocation17 + $0x350] sm:$0xff]
          %v3293 = vld [vmem:[#allocation17 + $0x358] sm:$0xff]
          %v3294 = vld [vmem:[#allocation17 + $0x360] sm:$0xff]
          %v3295 = vld [vmem:[#allocation17 + $0x368] sm:$0xff]
          %v3296 = vld [vmem:[#allocation17 + $0x370] sm:$0xff]
          %v3297 = vld [vmem:[#allocation17 + $0x378] sm:$0xff]
          %v3298 = vld [vmem:[#allocation17 + $0x380] sm:$0xff]
          %v3299 = vld [vmem:[#allocation17 + $0x388] sm:$0xff]
          %v3300 = vld [vmem:[#allocation17 + $0x390] sm:$0xff]
          %v3301 = vld [vmem:[#allocation17 + $0x398] sm:$0xff]
          %v3302 = vld [vmem:[#allocation17 + $0x3a0] sm:$0xff]
          %v3303 = vld [vmem:[#allocation17 + $0x3a8] sm:$0xff]
          %v3304 = vld [vmem:[#allocation17 + $0x3b0] sm:$0xff]
          %v3305 = vld [vmem:[#allocation17 + $0x3b8] sm:$0xff]
          %v3306 = vld [vmem:[#allocation17 + $0x3c0] sm:$0xff]
          %v3307 = vld [vmem:[#allocation17 + $0x3c8] sm:$0xff]
          %v3308 = vld [vmem:[#allocation17 + $0x3d0] sm:$0xff]
          %v3309 = vld [vmem:[#allocation17 + $0x3d8] sm:$0xff]
          %v3310 = vld [vmem:[#allocation17 + $0x3e0] sm:$0xff]
          %v3311 = vld [vmem:[#allocation17 + $0x3e8] sm:$0xff]
          %v3312 = vld [vmem:[#allocation17 + $0x3f0] sm:$0xff]
          %v3313 = vld [vmem:[#allocation17 + $0x3f8] sm:$0xff]
          %v3314 = vld [vmem:[#allocation19] sm:$0xf]
          %v3316 = vlaneseq
          %v3317 = vshrl.u32 %v3316, 7
          %v3318 = vsub.s32 0, %v3317
          %v3319 = vrot.slane %v3314, %v3318
          %v3320 = vlaneseq
          %v3321 = vshrl.u32 %v3320, 7
          %v3322 = vsub.s32 1, %v3321
          %v3323 = vrot.slane %v3314, %v3322
          %v3324 = vlaneseq
          %v3325 = vshrl.u32 %v3324, 7
          %v3326 = vsub.s32 2, %v3325
          %v3327 = vrot.slane %v3314, %v3326
          %v3328 = vlaneseq
          %v3329 = vshrl.u32 %v3328, 7
          %v3330 = vsub.s32 3, %v3329
          %v3331 = vrot.slane %v3314, %v3330
          %v3464 = vunpack.c.l.b16 %v3186
          %v3465 = vunpack.c.h.b16 %v3186
          %v3466 = vunpack.c.l.b16 %v3187
          %v3467 = vunpack.c.h.b16 %v3187
          %v3468 = vunpack.c.l.b16 %v3188
          %v3469 = vunpack.c.h.b16 %v3188
          %v3470 = vunpack.c.l.b16 %v3189
          %v3471 = vunpack.c.h.b16 %v3189
          %v3472 = vunpack.c.l.b16 %v3190
          %v3473 = vunpack.c.h.b16 %v3190
          %v3474 = vunpack.c.l.b16 %v3191
          %v3475 = vunpack.c.h.b16 %v3191
          %v3476 = vunpack.c.l.b16 %v3192
          %v3477 = vunpack.c.h.b16 %v3192
          %v3478 = vunpack.c.l.b16 %v3193
          %v3479 = vunpack.c.h.b16 %v3193
          %v3480 = vunpack.c.l.b16 %v3194
          %v3481 = vunpack.c.h.b16 %v3194
          %v3482 = vunpack.c.l.b16 %v3195
          %v3483 = vunpack.c.h.b16 %v3195
          %v3484 = vunpack.c.l.b16 %v3196
          %v3485 = vunpack.c.h.b16 %v3196
          %v3486 = vunpack.c.l.b16 %v3197
          %v3487 = vunpack.c.h.b16 %v3197
          %v3488 = vunpack.c.l.b16 %v3198
          %v3489 = vunpack.c.h.b16 %v3198
          %v3490 = vunpack.c.l.b16 %v3199
          %v3491 = vunpack.c.h.b16 %v3199
          %v3492 = vunpack.c.l.b16 %v3200
          %v3493 = vunpack.c.h.b16 %v3200
          %v3494 = vunpack.c.l.b16 %v3201
          %v3495 = vunpack.c.h.b16 %v3201
          %v3496 = vunpack.c.l.b16 %v3202
          %v3497 = vunpack.c.h.b16 %v3202
          %v3498 = vunpack.c.l.b16 %v3203
          %v3499 = vunpack.c.h.b16 %v3203
          %v3500 = vunpack.c.l.b16 %v3204
          %v3501 = vunpack.c.h.b16 %v3204
          %v3502 = vunpack.c.l.b16 %v3205
          %v3503 = vunpack.c.h.b16 %v3205
          %v3504 = vunpack.c.l.b16 %v3206
          %v3505 = vunpack.c.h.b16 %v3206
          %v3506 = vunpack.c.l.b16 %v3207
          %v3507 = vunpack.c.h.b16 %v3207
          %v3508 = vunpack.c.l.b16 %v3208
          %v3509 = vunpack.c.h.b16 %v3208
          %v3510 = vunpack.c.l.b16 %v3209
          %v3511 = vunpack.c.h.b16 %v3209
          %v3512 = vunpack.c.l.b16 %v3210
          %v3513 = vunpack.c.h.b16 %v3210
          %v3514 = vunpack.c.l.b16 %v3211
          %v3515 = vunpack.c.h.b16 %v3211
          %v3516 = vunpack.c.l.b16 %v3212
          %v3517 = vunpack.c.h.b16 %v3212
          %v3518 = vunpack.c.l.b16 %v3213
          %v3519 = vunpack.c.h.b16 %v3213
          %v3520 = vunpack.c.l.b16 %v3214
          %v3521 = vunpack.c.h.b16 %v3214
          %v3522 = vunpack.c.l.b16 %v3215
          %v3523 = vunpack.c.h.b16 %v3215
          %v3524 = vunpack.c.l.b16 %v3216
          %v3525 = vunpack.c.h.b16 %v3216
          %v3526 = vunpack.c.l.b16 %v3217
          %v3527 = vunpack.c.h.b16 %v3217
          %v3528 = vunpack.c.l.b16 %v3218
          %v3529 = vunpack.c.h.b16 %v3218
          %v3530 = vunpack.c.l.b16 %v3219
          %v3531 = vunpack.c.h.b16 %v3219
          %v3532 = vunpack.c.l.b16 %v3220
          %v3533 = vunpack.c.h.b16 %v3220
          %v3534 = vunpack.c.l.b16 %v3221
          %v3535 = vunpack.c.h.b16 %v3221
          %v3536 = vunpack.c.l.b16 %v3222
          %v3537 = vunpack.c.h.b16 %v3222
          %v3538 = vunpack.c.l.b16 %v3223
          %v3539 = vunpack.c.h.b16 %v3223
          %v3540 = vunpack.c.l.b16 %v3224
          %v3541 = vunpack.c.h.b16 %v3224
          %v3542 = vunpack.c.l.b16 %v3225
          %v3543 = vunpack.c.h.b16 %v3225
          %v3544 = vunpack.c.l.b16 %v3226
          %v3545 = vunpack.c.h.b16 %v3226
          %v3546 = vunpack.c.l.b16 %v3227
          %v3547 = vunpack.c.h.b16 %v3227
          %v3548 = vunpack.c.l.b16 %v3228
          %v3549 = vunpack.c.h.b16 %v3228
          %v3550 = vunpack.c.l.b16 %v3229
          %v3551 = vunpack.c.h.b16 %v3229
          %v3552 = vunpack.c.l.b16 %v3230
          %v3553 = vunpack.c.h.b16 %v3230
          %v3554 = vunpack.c.l.b16 %v3231
          %v3555 = vunpack.c.h.b16 %v3231
          %v3556 = vunpack.c.l.b16 %v3232
          %v3557 = vunpack.c.h.b16 %v3232
          %v3558 = vunpack.c.l.b16 %v3233
          %v3559 = vunpack.c.h.b16 %v3233
          %v3560 = vunpack.c.l.b16 %v3234
          %v3561 = vunpack.c.h.b16 %v3234
          %v3562 = vunpack.c.l.b16 %v3235
          %v3563 = vunpack.c.h.b16 %v3235
          %v3564 = vunpack.c.l.b16 %v3236
          %v3565 = vunpack.c.h.b16 %v3236
          %v3566 = vunpack.c.l.b16 %v3237
          %v3567 = vunpack.c.h.b16 %v3237
          %v3568 = vunpack.c.l.b16 %v3238
          %v3569 = vunpack.c.h.b16 %v3238
          %v3570 = vunpack.c.l.b16 %v3239
          %v3571 = vunpack.c.h.b16 %v3239
          %v3572 = vunpack.c.l.b16 %v3240
          %v3573 = vunpack.c.h.b16 %v3240
          %v3574 = vunpack.c.l.b16 %v3241
          %v3575 = vunpack.c.h.b16 %v3241
          %v3576 = vunpack.c.l.b16 %v3242
          %v3577 = vunpack.c.h.b16 %v3242
          %v3578 = vunpack.c.l.b16 %v3243
          %v3579 = vunpack.c.h.b16 %v3243
          %v3580 = vunpack.c.l.b16 %v3244
          %v3581 = vunpack.c.h.b16 %v3244
          %v3582 = vunpack.c.l.b16 %v3245
          %v3583 = vunpack.c.h.b16 %v3245
          %v3584 = vunpack.c.l.b16 %v3246
          %v3585 = vunpack.c.h.b16 %v3246
          %v3586 = vunpack.c.l.b16 %v3247
          %v3587 = vunpack.c.h.b16 %v3247
          %v3588 = vunpack.c.l.b16 %v3248
          %v3589 = vunpack.c.h.b16 %v3248
          %v3590 = vunpack.c.l.b16 %v3249
          %v3591 = vunpack.c.h.b16 %v3249
          %v3592 = vunpack.c.l.b16 %v3250
          %v3593 = vunpack.c.h.b16 %v3250
          %v3594 = vunpack.c.l.b16 %v3251
          %v3595 = vunpack.c.h.b16 %v3251
          %v3596 = vunpack.c.l.b16 %v3252
          %v3597 = vunpack.c.h.b16 %v3252
          %v3598 = vunpack.c.l.b16 %v3253
          %v3599 = vunpack.c.h.b16 %v3253
          %v3600 = vunpack.c.l.b16 %v3254
          %v3601 = vunpack.c.h.b16 %v3254
          %v3602 = vunpack.c.l.b16 %v3255
          %v3603 = vunpack.c.h.b16 %v3255
          %v3604 = vunpack.c.l.b16 %v3256
          %v3605 = vunpack.c.h.b16 %v3256
          %v3606 = vunpack.c.l.b16 %v3257
          %v3607 = vunpack.c.h.b16 %v3257
          %v3608 = vunpack.c.l.b16 %v3258
          %v3609 = vunpack.c.h.b16 %v3258
          %v3610 = vunpack.c.l.b16 %v3259
          %v3611 = vunpack.c.h.b16 %v3259
          %v3612 = vunpack.c.l.b16 %v3260
          %v3613 = vunpack.c.h.b16 %v3260
          %v3614 = vunpack.c.l.b16 %v3261
          %v3615 = vunpack.c.h.b16 %v3261
          %v3616 = vunpack.c.l.b16 %v3262
          %v3617 = vunpack.c.h.b16 %v3262
          %v3618 = vunpack.c.l.b16 %v3263
          %v3619 = vunpack.c.h.b16 %v3263
          %v3620 = vunpack.c.l.b16 %v3264
          %v3621 = vunpack.c.h.b16 %v3264
          %v3622 = vunpack.c.l.b16 %v3265
          %v3623 = vunpack.c.h.b16 %v3265
          %v3624 = vunpack.c.l.b16 %v3266
          %v3625 = vunpack.c.h.b16 %v3266
          %v3626 = vunpack.c.l.b16 %v3267
          %v3627 = vunpack.c.h.b16 %v3267
          %v3628 = vunpack.c.l.b16 %v3268
          %v3629 = vunpack.c.h.b16 %v3268
          %v3630 = vunpack.c.l.b16 %v3269
          %v3631 = vunpack.c.h.b16 %v3269
          %v3632 = vunpack.c.l.b16 %v3270
          %v3633 = vunpack.c.h.b16 %v3270
          %v3634 = vunpack.c.l.b16 %v3271
          %v3635 = vunpack.c.h.b16 %v3271
          %v3636 = vunpack.c.l.b16 %v3272
          %v3637 = vunpack.c.h.b16 %v3272
          %v3638 = vunpack.c.l.b16 %v3273
          %v3639 = vunpack.c.h.b16 %v3273
          %v3640 = vunpack.c.l.b16 %v3274
          %v3641 = vunpack.c.h.b16 %v3274
          %v3642 = vunpack.c.l.b16 %v3275
          %v3643 = vunpack.c.h.b16 %v3275
          %v3644 = vunpack.c.l.b16 %v3276
          %v3645 = vunpack.c.h.b16 %v3276
          %v3646 = vunpack.c.l.b16 %v3277
          %v3647 = vunpack.c.h.b16 %v3277
          %v3648 = vunpack.c.l.b16 %v3278
          %v3649 = vunpack.c.h.b16 %v3278
          %v3650 = vunpack.c.l.b16 %v3279
          %v3651 = vunpack.c.h.b16 %v3279
          %v3652 = vunpack.c.l.b16 %v3280
          %v3653 = vunpack.c.h.b16 %v3280
          %v3654 = vunpack.c.l.b16 %v3281
          %v3655 = vunpack.c.h.b16 %v3281
          %v3656 = vunpack.c.l.b16 %v3282
          %v3657 = vunpack.c.h.b16 %v3282
          %v3658 = vunpack.c.l.b16 %v3283
          %v3659 = vunpack.c.h.b16 %v3283
          %v3660 = vunpack.c.l.b16 %v3284
          %v3661 = vunpack.c.h.b16 %v3284
          %v3662 = vunpack.c.l.b16 %v3285
          %v3663 = vunpack.c.h.b16 %v3285
          %v3664 = vunpack.c.l.b16 %v3286
          %v3665 = vunpack.c.h.b16 %v3286
          %v3666 = vunpack.c.l.b16 %v3287
          %v3667 = vunpack.c.h.b16 %v3287
          %v3668 = vunpack.c.l.b16 %v3288
          %v3669 = vunpack.c.h.b16 %v3288
          %v3670 = vunpack.c.l.b16 %v3289
          %v3671 = vunpack.c.h.b16 %v3289
          %v3672 = vunpack.c.l.b16 %v3290
          %v3673 = vunpack.c.h.b16 %v3290
          %v3674 = vunpack.c.l.b16 %v3291
          %v3675 = vunpack.c.h.b16 %v3291
          %v3676 = vunpack.c.l.b16 %v3292
          %v3677 = vunpack.c.h.b16 %v3292
          %v3678 = vunpack.c.l.b16 %v3293
          %v3679 = vunpack.c.h.b16 %v3293
          %v3680 = vunpack.c.l.b16 %v3294
          %v3681 = vunpack.c.h.b16 %v3294
          %v3682 = vunpack.c.l.b16 %v3295
          %v3683 = vunpack.c.h.b16 %v3295
          %v3684 = vunpack.c.l.b16 %v3296
          %v3685 = vunpack.c.h.b16 %v3296
          %v3686 = vunpack.c.l.b16 %v3297
          %v3687 = vunpack.c.h.b16 %v3297
          %v3688 = vunpack.c.l.b16 %v3298
          %v3689 = vunpack.c.h.b16 %v3298
          %v3690 = vunpack.c.l.b16 %v3299
          %v3691 = vunpack.c.h.b16 %v3299
          %v3692 = vunpack.c.l.b16 %v3300
          %v3693 = vunpack.c.h.b16 %v3300
          %v3694 = vunpack.c.l.b16 %v3301
          %v3695 = vunpack.c.h.b16 %v3301
          %v3696 = vunpack.c.l.b16 %v3302
          %v3697 = vunpack.c.h.b16 %v3302
          %v3698 = vunpack.c.l.b16 %v3303
          %v3699 = vunpack.c.h.b16 %v3303
          %v3700 = vunpack.c.l.b16 %v3304
          %v3701 = vunpack.c.h.b16 %v3304
          %v3702 = vunpack.c.l.b16 %v3305
          %v3703 = vunpack.c.h.b16 %v3305
          %v3704 = vunpack.c.l.b16 %v3306
          %v3705 = vunpack.c.h.b16 %v3306
          %v3706 = vunpack.c.l.b16 %v3307
          %v3707 = vunpack.c.h.b16 %v3307
          %v3708 = vunpack.c.l.b16 %v3308
          %v3709 = vunpack.c.h.b16 %v3308
          %v3710 = vunpack.c.l.b16 %v3309
          %v3711 = vunpack.c.h.b16 %v3309
          %v3712 = vunpack.c.l.b16 %v3310
          %v3713 = vunpack.c.h.b16 %v3310
          %v3714 = vunpack.c.l.b16 %v3311
          %v3715 = vunpack.c.h.b16 %v3311
          %v3716 = vunpack.c.l.b16 %v3312
          %v3717 = vunpack.c.h.b16 %v3312
          %v3718 = vunpack.c.l.b16 %v3313
          %v3719 = vunpack.c.h.b16 %v3313
          %v3720 = vpack.c.b16 %v3468, %v3464
          %v3721 = vpack.c.b16 %v3469, %v3465
          %v3722 = vpack.c.b16 %v3470, %v3466
          %v3723 = vpack.c.b16 %v3471, %v3467
          %v3724 = vpack.c.b16 %v3476, %v3472
          %v3725 = vpack.c.b16 %v3477, %v3473
          %v3726 = vpack.c.b16 %v3478, %v3474
          %v3727 = vpack.c.b16 %v3479, %v3475
          %v3728 = vpack.c.b16 %v3484, %v3480
          %v3729 = vpack.c.b16 %v3485, %v3481
          %v3730 = vpack.c.b16 %v3486, %v3482
          %v3731 = vpack.c.b16 %v3487, %v3483
          %v3732 = vpack.c.b16 %v3492, %v3488
          %v3733 = vpack.c.b16 %v3493, %v3489
          %v3734 = vpack.c.b16 %v3494, %v3490
          %v3735 = vpack.c.b16 %v3495, %v3491
          %v3736 = vpack.c.b16 %v3500, %v3496
          %v3737 = vpack.c.b16 %v3501, %v3497
          %v3738 = vpack.c.b16 %v3502, %v3498
          %v3739 = vpack.c.b16 %v3503, %v3499
          %v3740 = vpack.c.b16 %v3508, %v3504
          %v3741 = vpack.c.b16 %v3509, %v3505
          %v3742 = vpack.c.b16 %v3510, %v3506
          %v3743 = vpack.c.b16 %v3511, %v3507
          %v3744 = vpack.c.b16 %v3516, %v3512
          %v3745 = vpack.c.b16 %v3517, %v3513
          %v3746 = vpack.c.b16 %v3518, %v3514
          %v3747 = vpack.c.b16 %v3519, %v3515
          %v3748 = vpack.c.b16 %v3524, %v3520
          %v3749 = vpack.c.b16 %v3525, %v3521
          %v3750 = vpack.c.b16 %v3526, %v3522
          %v3751 = vpack.c.b16 %v3527, %v3523
          %v3752 = vpack.c.b16 %v3532, %v3528
          %v3753 = vpack.c.b16 %v3533, %v3529
          %v3754 = vpack.c.b16 %v3534, %v3530
          %v3755 = vpack.c.b16 %v3535, %v3531
          %v3756 = vpack.c.b16 %v3540, %v3536
          %v3757 = vpack.c.b16 %v3541, %v3537
          %v3758 = vpack.c.b16 %v3542, %v3538
          %v3759 = vpack.c.b16 %v3543, %v3539
          %v3760 = vpack.c.b16 %v3548, %v3544
          %v3761 = vpack.c.b16 %v3549, %v3545
          %v3762 = vpack.c.b16 %v3550, %v3546
          %v3763 = vpack.c.b16 %v3551, %v3547
          %v3764 = vpack.c.b16 %v3556, %v3552
          %v3765 = vpack.c.b16 %v3557, %v3553
          %v3766 = vpack.c.b16 %v3558, %v3554
          %v3767 = vpack.c.b16 %v3559, %v3555
          %v3768 = vpack.c.b16 %v3564, %v3560
          %v3769 = vpack.c.b16 %v3565, %v3561
          %v3770 = vpack.c.b16 %v3566, %v3562
          %v3771 = vpack.c.b16 %v3567, %v3563
          %v3772 = vpack.c.b16 %v3572, %v3568
          %v3773 = vpack.c.b16 %v3573, %v3569
          %v3774 = vpack.c.b16 %v3574, %v3570
          %v3775 = vpack.c.b16 %v3575, %v3571
          %v3776 = vpack.c.b16 %v3580, %v3576
          %v3777 = vpack.c.b16 %v3581, %v3577
          %v3778 = vpack.c.b16 %v3582, %v3578
          %v3779 = vpack.c.b16 %v3583, %v3579
          %v3780 = vpack.c.b16 %v3588, %v3584
          %v3781 = vpack.c.b16 %v3589, %v3585
          %v3782 = vpack.c.b16 %v3590, %v3586
          %v3783 = vpack.c.b16 %v3591, %v3587
          %v3784 = vpack.c.b16 %v3596, %v3592
          %v3785 = vpack.c.b16 %v3597, %v3593
          %v3786 = vpack.c.b16 %v3598, %v3594
          %v3787 = vpack.c.b16 %v3599, %v3595
          %v3788 = vpack.c.b16 %v3604, %v3600
          %v3789 = vpack.c.b16 %v3605, %v3601
          %v3790 = vpack.c.b16 %v3606, %v3602
          %v3791 = vpack.c.b16 %v3607, %v3603
          %v3792 = vpack.c.b16 %v3612, %v3608
          %v3793 = vpack.c.b16 %v3613, %v3609
          %v3794 = vpack.c.b16 %v3614, %v3610
          %v3795 = vpack.c.b16 %v3615, %v3611
          %v3796 = vpack.c.b16 %v3620, %v3616
          %v3797 = vpack.c.b16 %v3621, %v3617
          %v3798 = vpack.c.b16 %v3622, %v3618
          %v3799 = vpack.c.b16 %v3623, %v3619
          %v3800 = vpack.c.b16 %v3628, %v3624
          %v3801 = vpack.c.b16 %v3629, %v3625
          %v3802 = vpack.c.b16 %v3630, %v3626
          %v3803 = vpack.c.b16 %v3631, %v3627
          %v3804 = vpack.c.b16 %v3636, %v3632
          %v3805 = vpack.c.b16 %v3637, %v3633
          %v3806 = vpack.c.b16 %v3638, %v3634
          %v3807 = vpack.c.b16 %v3639, %v3635
          %v3808 = vpack.c.b16 %v3644, %v3640
          %v3809 = vpack.c.b16 %v3645, %v3641
          %v3810 = vpack.c.b16 %v3646, %v3642
          %v3811 = vpack.c.b16 %v3647, %v3643
          %v3812 = vpack.c.b16 %v3652, %v3648
          %v3813 = vpack.c.b16 %v3653, %v3649
          %v3814 = vpack.c.b16 %v3654, %v3650
          %v3815 = vpack.c.b16 %v3655, %v3651
          %v3816 = vpack.c.b16 %v3660, %v3656
          %v3817 = vpack.c.b16 %v3661, %v3657
          %v3818 = vpack.c.b16 %v3662, %v3658
          %v3819 = vpack.c.b16 %v3663, %v3659
          %v3820 = vpack.c.b16 %v3668, %v3664
          %v3821 = vpack.c.b16 %v3669, %v3665
          %v3822 = vpack.c.b16 %v3670, %v3666
          %v3823 = vpack.c.b16 %v3671, %v3667
          %v3824 = vpack.c.b16 %v3676, %v3672
          %v3825 = vpack.c.b16 %v3677, %v3673
          %v3826 = vpack.c.b16 %v3678, %v3674
          %v3827 = vpack.c.b16 %v3679, %v3675
          %v3828 = vpack.c.b16 %v3684, %v3680
          %v3829 = vpack.c.b16 %v3685, %v3681
          %v3830 = vpack.c.b16 %v3686, %v3682
          %v3831 = vpack.c.b16 %v3687, %v3683
          %v3832 = vpack.c.b16 %v3692, %v3688
          %v3833 = vpack.c.b16 %v3693, %v3689
          %v3834 = vpack.c.b16 %v3694, %v3690
          %v3835 = vpack.c.b16 %v3695, %v3691
          %v3836 = vpack.c.b16 %v3700, %v3696
          %v3837 = vpack.c.b16 %v3701, %v3697
          %v3838 = vpack.c.b16 %v3702, %v3698
          %v3839 = vpack.c.b16 %v3703, %v3699
          %v3840 = vpack.c.b16 %v3708, %v3704
          %v3841 = vpack.c.b16 %v3709, %v3705
          %v3842 = vpack.c.b16 %v3710, %v3706
          %v3843 = vpack.c.b16 %v3711, %v3707
          %v3844 = vpack.c.b16 %v3716, %v3712
          %v3845 = vpack.c.b16 %v3717, %v3713
          %v3846 = vpack.c.b16 %v3718, %v3714
          %v3847 = vpack.c.b16 %v3719, %v3715
          %3976 = vmatprep.subr.bf16.mxu0 %v3721
          %3977 = vmatpush1.bf16.msra.mxu0 %v3720
          %3978 = vmatprep.subr.bf16.mxu0 %v3725
          %3979 = vmatpush1.bf16.msra.mxu0 %v3724
          %3980 = vmatprep.subr.bf16.mxu0 %v3729
          %3981 = vmatpush1.bf16.msra.mxu0 %v3728
          %3982 = vmatprep.subr.bf16.mxu0 %v3733
          %3983 = vmatpush1.bf16.msra.mxu0 %v3732
          %3984 = vmatprep.subr.bf16.mxu0 %v3737
          %3985 = vmatpush1.bf16.msra.mxu0 %v3736
          %3986 = vmatprep.subr.bf16.mxu0 %v3741
          %3987 = vmatpush1.bf16.msra.mxu0 %v3740
          %3988 = vmatprep.subr.bf16.mxu0 %v3745
          %3989 = vmatpush1.bf16.msra.mxu0 %v3744
          %3990 = vmatprep.subr.bf16.mxu0 %v3749
          %3991 = vmatpush1.bf16.msra.mxu0 %v3748
          %3992 = vmatprep.subr.bf16.mxu0 %v3753
          %3993 = vmatpush1.bf16.msra.mxu0 %v3752
          %3994 = vmatprep.subr.bf16.mxu0 %v3757
          %3995 = vmatpush1.bf16.msra.mxu0 %v3756
          %3996 = vmatprep.subr.bf16.mxu0 %v3761
          %3997 = vmatpush1.bf16.msra.mxu0 %v3760
          %3998 = vmatprep.subr.bf16.mxu0 %v3765
          %3999 = vmatpush1.bf16.msra.mxu0 %v3764
          %4000 = vmatprep.subr.bf16.mxu0 %v3769
          %4001 = vmatpush1.bf16.msra.mxu0 %v3768
          %4002 = vmatprep.subr.bf16.mxu0 %v3773
          %4003 = vmatpush1.bf16.msra.mxu0 %v3772
          %4004 = vmatprep.subr.bf16.mxu0 %v3777
          %4005 = vmatpush1.bf16.msra.mxu0 %v3776
          %4006 = vmatprep.subr.bf16.mxu0 %v3781
          %4007 = vmatpush1.bf16.msra.mxu0 %v3780
          %4008 = vmatprep.mubr.bf16.mxu0 %v3183
          %4009 = vmatmul.mubr.bf16.gmra.mrb[0].mxu0 %v3182
          %v4010 = vpop.f32.mrb[0].mxu0
          %v4011 = vadd.f32 %v3319, %v4010
          %v4012 = vpop.f32.mrb[0].mxu0
          %v4013 = vadd.f32 %v3323, %v4012
          %v4014 = vpop.f32.mrb[0].mxu0
          %v4015 = vadd.f32 %v3319, %v4014
          %v4016 = vpop.f32.mrb[0].mxu0
          %v4017 = vadd.f32 %v3323, %v4016
          %4018 = vdwg.mxu0
          %4019 = vmatprep.subr.bf16.mxu0 %v3785
          %4020 = vmatpush1.bf16.msra.mxu0 %v3784
          %4021 = vmatprep.subr.bf16.mxu0 %v3789
          %4022 = vmatpush1.bf16.msra.mxu0 %v3788
          %4023 = vmatprep.subr.bf16.mxu0 %v3793
          %4024 = vmatpush1.bf16.msra.mxu0 %v3792
          %4025 = vmatprep.subr.bf16.mxu0 %v3797
          %4026 = vmatpush1.bf16.msra.mxu0 %v3796
          %4027 = vmatprep.subr.bf16.mxu0 %v3801
          %4028 = vmatpush1.bf16.msra.mxu0 %v3800
          %4029 = vmatprep.subr.bf16.mxu0 %v3805
          %4030 = vmatpush1.bf16.msra.mxu0 %v3804
          %4031 = vmatprep.subr.bf16.mxu0 %v3809
          %4032 = vmatpush1.bf16.msra.mxu0 %v3808
          %4033 = vmatprep.subr.bf16.mxu0 %v3813
          %4034 = vmatpush1.bf16.msra.mxu0 %v3812
          %4035 = vmatprep.subr.bf16.mxu0 %v3817
          %4036 = vmatpush1.bf16.msra.mxu0 %v3816
          %4037 = vmatprep.subr.bf16.mxu0 %v3821
          %4038 = vmatpush1.bf16.msra.mxu0 %v3820
          %4039 = vmatprep.subr.bf16.mxu0 %v3825
          %4040 = vmatpush1.bf16.msra.mxu0 %v3824
          %4041 = vmatprep.subr.bf16.mxu0 %v3829
          %4042 = vmatpush1.bf16.msra.mxu0 %v3828
          %4043 = vmatprep.subr.bf16.mxu0 %v3833
          %4044 = vmatpush1.bf16.msra.mxu0 %v3832
          %4045 = vmatprep.subr.bf16.mxu0 %v3837
          %4046 = vmatpush1.bf16.msra.mxu0 %v3836
          %4047 = vmatprep.subr.bf16.mxu0 %v3841
          %4048 = vmatpush1.bf16.msra.mxu0 %v3840
          %4049 = vmatprep.subr.bf16.mxu0 %v3845
          %4050 = vmatpush1.bf16.msra.mxu0 %v3844
          %4051 = vmatprep.mubr.bf16.mxu0 %v3185
          %4052 = vmatmul.mubr.bf16.gmra.mrb[0].mxu0 %v3184
          %v4053 = vpop.f32.mrb[0].mxu0
          %v4054 = vadd.f32 %v4011, %v4053
          %v4055 = vpop.f32.mrb[0].mxu0
          %v4056 = vadd.f32 %v4013, %v4055
          %v4057 = vpop.f32.mrb[0].mxu0
          %v4058 = vadd.f32 %v4015, %v4057
          %v4059 = vpop.f32.mrb[0].mxu0
          %v4060 = vadd.f32 %v4017, %v4059
          %4061 = vdwg.mxu0
          %4062 = vmatprep.subr.bf16.mxu0 %v3723
          %4063 = vmatpush1.bf16.msra.mxu0 %v3722
          %4064 = vmatprep.subr.bf16.mxu0 %v3727
          %4065 = vmatpush1.bf16.msra.mxu0 %v3726
          %4066 = vmatprep.subr.bf16.mxu0 %v3731
          %4067 = vmatpush1.bf16.msra.mxu0 %v3730
          %4068 = vmatprep.subr.bf16.mxu0 %v3735
          %4069 = vmatpush1.bf16.msra.mxu0 %v3734
          %4070 = vmatprep.subr.bf16.mxu0 %v3739
          %4071 = vmatpush1.bf16.msra.mxu0 %v3738
          %4072 = vmatprep.subr.bf16.mxu0 %v3743
          %4073 = vmatpush1.bf16.msra.mxu0 %v3742
          %4074 = vmatprep.subr.bf16.mxu0 %v3747
          %4075 = vmatpush1.bf16.msra.mxu0 %v3746
          %4076 = vmatprep.subr.bf16.mxu0 %v3751
          %4077 = vmatpush1.bf16.msra.mxu0 %v3750
          %4078 = vmatprep.subr.bf16.mxu0 %v3755
          %4079 = vmatpush1.bf16.msra.mxu0 %v3754
          %4080 = vmatprep.subr.bf16.mxu0 %v3759
          %4081 = vmatpush1.bf16.msra.mxu0 %v3758
          %4082 = vmatprep.subr.bf16.mxu0 %v3763
          %4083 = vmatpush1.bf16.msra.mxu0 %v3762
          %4084 = vmatprep.subr.bf16.mxu0 %v3767
          %4085 = vmatpush1.bf16.msra.mxu0 %v3766
          %4086 = vmatprep.subr.bf16.mxu0 %v3771
          %4087 = vmatpush1.bf16.msra.mxu0 %v3770
          %4088 = vmatprep.subr.bf16.mxu0 %v3775
          %4089 = vmatpush1.bf16.msra.mxu0 %v3774
          %4090 = vmatprep.subr.bf16.mxu0 %v3779
          %4091 = vmatpush1.bf16.msra.mxu0 %v3778
          %4092 = vmatprep.subr.bf16.mxu0 %v3783
          %4093 = vmatpush1.bf16.msra.mxu0 %v3782
          %4094 = vmatprep.mubr.bf16.mxu0 %v3183
          %4095 = vmatmul.mubr.bf16.gmra.mrb[0].mxu0 %v3182
          %v4096 = vpop.f32.mrb[0].mxu0
          %v4097 = vadd.f32 %v3327, %v4096
          %v4098 = vpop.f32.mrb[0].mxu0
          %v4099 = vadd.f32 %v3331, %v4098
          %v4100 = vpop.f32.mrb[0].mxu0
          %v4101 = vadd.f32 %v3327, %v4100
          %v4102 = vpop.f32.mrb[0].mxu0
          %v4103 = vadd.f32 %v3331, %v4102
          %4104 = vdwg.mxu0
          %4105 = vmatprep.subr.bf16.mxu0 %v3787
          %4106 = vmatpush1.bf16.msra.mxu0 %v3786
          %4107 = vmatprep.subr.bf16.mxu0 %v3791
          %4108 = vmatpush1.bf16.msra.mxu0 %v3790
          %4109 = vmatprep.subr.bf16.mxu0 %v3795
          %4110 = vmatpush1.bf16.msra.mxu0 %v3794
          %4111 = vmatprep.subr.bf16.mxu0 %v3799
          %4112 = vmatpush1.bf16.msra.mxu0 %v3798
          %4113 = vmatprep.subr.bf16.mxu0 %v3803
          %4114 = vmatpush1.bf16.msra.mxu0 %v3802
          %4115 = vmatprep.subr.bf16.mxu0 %v3807
          %4116 = vmatpush1.bf16.msra.mxu0 %v3806
          %4117 = vmatprep.subr.bf16.mxu0 %v3811
          %4118 = vmatpush1.bf16.msra.mxu0 %v3810
          %4119 = vmatprep.subr.bf16.mxu0 %v3815
          %4120 = vmatpush1.bf16.msra.mxu0 %v3814
          %4121 = vmatprep.subr.bf16.mxu0 %v3819
          %4122 = vmatpush1.bf16.msra.mxu0 %v3818
          %4123 = vmatprep.subr.bf16.mxu0 %v3823
          %4124 = vmatpush1.bf16.msra.mxu0 %v3822
          %4125 = vmatprep.subr.bf16.mxu0 %v3827
          %4126 = vmatpush1.bf16.msra.mxu0 %v3826
          %4127 = vmatprep.subr.bf16.mxu0 %v3831
          %4128 = vmatpush1.bf16.msra.mxu0 %v3830
          %4129 = vmatprep.subr.bf16.mxu0 %v3835
          %4130 = vmatpush1.bf16.msra.mxu0 %v3834
          %4131 = vmatprep.subr.bf16.mxu0 %v3839
          %4132 = vmatpush1.bf16.msra.mxu0 %v3838
          %4133 = vmatprep.subr.bf16.mxu0 %v3843
          %4134 = vmatpush1.bf16.msra.mxu0 %v3842
          %4135 = vmatprep.subr.bf16.mxu0 %v3847
          %4136 = vmatpush1.bf16.msra.mxu0 %v3846
          %4137 = vmatprep.mubr.bf16.mxu0 %v3185
          %4138 = vmatmul.mubr.bf16.gmra.mrb[0].mxu0 %v3184
          %v4139 = vpop.f32.mrb[0].mxu0
          %v4140 = vadd.f32 %v4097, %v4139
          %v4141 = vpop.f32.mrb[0].mxu0
          %v4142 = vadd.f32 %v4099, %v4141
          %v4143 = vpop.f32.mrb[0].mxu0
          %v4144 = vadd.f32 %v4101, %v4143
          %v4145 = vpop.f32.mrb[0].mxu0
          %v4146 = vadd.f32 %v4103, %v4145
          %4147 = vdwg.mxu0
          %v4148 = vmax.f32 %v4054, 0.0
          %v4149 = vmax.f32 %v4056, 0.0
          %v4150 = vmax.f32 %v4140, 0.0
          %v4151 = vmax.f32 %v4142, 0.0
          %v4152 = vmax.f32 %v4058, 0.0
          %v4153 = vmax.f32 %v4060, 0.0
          %v4154 = vmax.f32 %v4144, 0.0
          %v4155 = vmax.f32 %v4146, 0.0
          %4156 = vst [vmem:[#allocation20] sm:$0xff] %v4148
          %4157 = vst [vmem:[#allocation20 + $0x8] sm:$0xff] %v4149
          %4158 = vst [vmem:[#allocation20 + $0x10] sm:$0xff] %v4150
          %4159 = vst [vmem:[#allocation20 + $0x18] sm:$0xff] %v4151
          %4160 = vst [vmem:[#allocation20 + $0x20] sm:$0xff] %v4152
          %4161 = vst [vmem:[#allocation20 + $0x28] sm:$0xff] %v4153
          %4162 = vst [vmem:[#allocation20 + $0x30] sm:$0xff] %v4154
          %4163 = vst [vmem:[#allocation20 + $0x38] sm:$0xff] %v4155
        $region100: #{tpu_custom_call.1} parent=55 // pred_fallthru
          _
        // Predicated region
        $region101: #{tpu_custom_call.1} parent=55 // pred_check
          %p4164 = pneg %p244
        $region102: #{tpu_custom_call.1} parent=55 // pred_check_branch
          %4166 = sbr.rel (%p4164) target = $region104
        $region103: #{tpu_custom_call.1} parent=55 // pred_region
          %s4168 = ssub.s32 1024, 1024
          %4169 = vsyncadd [#allocation7], %s4168
          %s4170 = sshll.u32 [#allocation20], 4
          %s4171 = int_to_ptr.vmem [resolvable:$true] %s4170
          %4176 = dma.vmem_to_hbm [thread:$0]  %s4171, 1024, %s10, [#allocation7], 512, 512, 32
        $region104: #{tpu_custom_call.1} parent=55 // pred_fallthru
          _
        // Predicated region
        $region105: #{tpu_custom_call.1} parent=55 // pred_check
          %p4177 = pneg %p244
        $region106: #{tpu_custom_call.1} parent=55 // pred_check_branch
          %4179 = sbr.rel (%p4177) target = $region108
        $region107: #{tpu_custom_call.1} parent=55 // pred_region
          %4180 = dma.done [#allocation7], 1024
        $region108: #{tpu_custom_call.1} parent=55 // pred_fallthru
          _
      $region56: #{tpu_custom_call.1} parent=5 // pred_fallthru
        _
      %p4181 = scmp.le.s32.totalorder 2, %s27
      // Predicated region
      $region109: #{tpu_custom_call.1} parent=5 // pred_check
        %p4182 = pneg %p4181
      $region110: #{tpu_custom_call.1} parent=5 // pred_check_branch
        %4184 = sbr.rel (%p4182) target = $region112
      $region111: #{tpu_custom_call.1} parent=5 // pred_region
        %s4185 = ssub.s32 %s27, 2
      $region112: #{tpu_custom_call.1} parent=5 // pred_fallthru
        _
    $region6: #{tpu_custom_call.1} parent=1 // loop_footer
      %s31 = sadd.s32 1, %s27
    $region7: #{tpu_custom_call.1} parent=1 // loop_footer_branch
      %26 = sbr.rel target = $region3
    $region8: #{tpu_custom_call.1} parent=1 // loop_exit
      _
    %4186 = vsyncpa [#allocation6], 1
    %s4187 = scalar_lea.sflag [#allocation6], 1
    %4188 = vsyncpa %s4187, 1
    %4189 = vsyncpa [#allocation9], 1
    %s4190 = scalar_lea.sflag [#allocation9], 1
    %4191 = vsyncpa %s4190, 1
    %4192 = vsyncpa [#allocation12], 1
    %4193 = vsyncpa [#allocation15], 1
    %4194 = vsyncpa [#allocation18], 1
    %4195 = vsyncpa [#allocation7], 1
    %s4196 = scalar_lea.sflag [#allocation7], 1
    %4197 = vsyncpa %s4196, 1

</llo_original>
